<compile_context>
chip_gen: v6e
topology: v6e:2x2x1
jax: 0.10.0
libtpu: 0.0.40
codegen_flags: <defaults>
</compile_context>

<pallas_src>
import jax
import jax.numpy as jnp
from jax import lax
from jax.experimental import pallas as pl
from jax.experimental.pallas import tpu as pltpu


_COMPILER_PARAMS = None


def _compiler_params():
    """Megacore-parallel over images; generation-aware scoped-VMEM limit."""
    global _COMPILER_PARAMS
    if _COMPILER_PARAMS is None:
        vmem_limit = 32 * 1024 * 1024
        try:
            cap = int(getattr(pltpu.get_tpu_info(), "vmem_capacity_bytes", 0))
            if cap > 0:
                # ~3/4 of physical VMEM (headroom for Mosaic internal scratch +
                # double buffers): ~48 MiB on v7x, ~96 MiB on v5e/v6e.
                vmem_limit = min((cap * 3) // 4, 100 * 1024 * 1024)
        except Exception:
            pass
        _COMPILER_PARAMS = pltpu.CompilerParams(
            dimension_semantics=("parallel",),
            vmem_limit_bytes=int(vmem_limit),
        )
    return _COMPILER_PARAMS


# ---------------------------------------------------------------------------
# In-kernel helpers
# ---------------------------------------------------------------------------
def _zero_pad_hw(x, top, bottom, left, right):
    """Zero-pad an in-register (H, W, C) tile spatially via concats with zero
    slabs (no VMEM scratch write/readback, no per-step re-zero).  Static pads."""
    if min(top, bottom, left, right) < 0:
        # TODO(synk): negative diff (crop) as PyTorch F.pad allows is unsupported.
        raise NotImplementedError("negative pad (crop) not supported")
    hh, ww, cc = x.shape
    if left or right:
        parts = ([jnp.zeros((hh, left, cc), x.dtype)] if left else []) + [x] + \
                ([jnp.zeros((hh, right, cc), x.dtype)] if right else [])
        x = jnp.concatenate(parts, axis=1)
        ww = ww + left + right
    if top or bottom:
        parts = ([jnp.zeros((top, ww, cc), x.dtype)] if top else []) + [x] + \
                ([jnp.zeros((bottom, ww, cc), x.dtype)] if bottom else [])
        x = jnp.concatenate(parts, axis=0)
    return x


def _conv3x3_bias(x_hwc, w_ref, b_ref, H, W, cin):
    """3x3 'same' conv of one in-register (H, W, cin) tile as ONE bf16 MXU
    matmul with K = 9*cin.  Halo built in-register; the 3 dx sublane shifts are
    computed once and reused across dy; the 9 taps are concatenated along the
    lane axis and reshaped once.  Returns the (H*W, cout) f32 pre-BN result."""
    xp = _zero_pad_hw(x_hwc, 1, 1, 1, 1).astype(jnp.bfloat16)      # (H+2, W+2, cin)
    shifted = [xp[:, dx:dx + W, :] for dx in range(3)]             # 3 sublane shifts
    taps = [shifted[dx][dy:dy + H] for dy in range(3) for dx in range(3)]
    patch = jnp.concatenate(taps, axis=-1).reshape(H * W, 9 * cin)  # bf16
    acc = jnp.dot(patch, w_ref[...], preferred_element_type=jnp.float32)
    return acc + b_ref[0]                                           # (H*W, cout) f32


# ---------------------------------------------------------------------------
# Kernel bodies
# ---------------------------------------------------------------------------
def _make_up_cat_conv1_kernel(h, w, cin, H, W, cs, cout):
    """Fused ConvTranspose2d(k=2,s=2) -> [pad] -> concat(skip) -> conv3x3+bias,
    emitting per-image per-channel sum / sum-of-squares so the BatchNorm1 batch
    stats never need a separate full-tensor HBM pass."""
    cup = cout                       # upsample output channels
    ccat = cup + cs                  # DoubleConv input channels
    py0, px0 = (H - 2 * h) // 2, (W - 2 * w) // 2

    def kernel(x_ref, skip_ref, wt_ref, bt_ref, w1_ref, b1_ref,
               y_ref, sum_ref, sq_ref):
        # ConvTranspose2d as ONE bf16 MXU matmul; x arrives channel-major
        # (cin, h*w), one small 2-D (XLU) transpose builds the (h*w, cin) LHS.
        xf = x_ref[0].T.astype(jnp.bfloat16)                       # (h*w, cin)
        up = jnp.dot(xf, wt_ref[...], preferred_element_type=jnp.float32)
        up = up + bt_ref[0]                                        # (h*w, 4*cup)
        # (dy, dx) un-interleave entirely in-register (flat-order-preserving
        # reshapes + 3 tiny concats): the upsampled tensor never touches HBM.
        quad = [up[:, k * cup:(k + 1) * cup].reshape(h, w, 1, cup)
                for k in range(4)]                                  # k = dy*2 + dx
        row0 = jnp.concatenate(quad[0:2], axis=2).reshape(h, 1, 2 * w, cup)
        row1 = jnp.concatenate(quad[2:4], axis=2).reshape(h, 1, 2 * w, cup)
        up_hwc = jnp.concatenate([row0, row1], axis=1).reshape(2 * h, 2 * w, cup)
        # F.pad to the skip size (static; no-op when shapes already match).
        up_hwc = _zero_pad_hw(up_hwc, py0, H - 2 * h - py0, px0, W - 2 * w - px0)

        # Implicit channel-concat [up, skip] -> ONE conv matmul with K = 9*ccat.
        skip_hwc = skip_ref[0].T.reshape(H, W, cs)
        z = jnp.concatenate([up_hwc, skip_hwc], axis=-1)            # (H, W, ccat)
        acc = _conv3x3_bias(z, w1_ref, b1_ref, H, W, ccat)

        # Store channel-major (cout, H*W): lane-dense even at cout = 8 and the
        # wrapper reshape back to NCHW is free.  bf16 HBM intermediate; BN
        # batch-stat partials taken from the f32 accumulator.
        y_ref[...] = acc.T.reshape(1, cup, H * W).astype(y_ref.dtype)
        sum_ref[...] = jnp.sum(acc, axis=0, keepdims=True).reshape(1, 1, cout)
        sq_ref[...] = jnp.sum(acc * acc, axis=0, keepdims=True).reshape(1, 1, cout)

    return kernel


def _make_conv2_kernel(H, W, cout):
    """conv3x3+bias with the previous BatchNorm+ReLU folded into the lane-dense
    channel-major input read; emits per-image BN2 batch-stat partial sums."""
    def kernel(y1_ref, scale_ref, shift_ref, w2_ref, b2_ref,
               y_ref, sum_ref, sq_ref):
        z = y1_ref[0].astype(jnp.float32)                           # (cout, H*W)
        z = jnp.maximum(z * scale_ref[...] + shift_ref[...], 0.0)   # BN1 + ReLU
        acc = _conv3x3_bias(z.T.reshape(H, W, cout), w2_ref, b2_ref, H, W, cout)
        y_ref[...] = acc.T.reshape(1, cout, H * W)
        sum_ref[...] = jnp.sum(acc, axis=0, keepdims=True).reshape(1, 1, cout)
        sq_ref[...] = jnp.sum(acc * acc, axis=0, keepdims=True).reshape(1, 1, cout)
    return kernel


def _bn_relu_kernel(x_ref, scale_ref, shift_ref, o_ref):
    """Final BN-affine + ReLU on the lane-dense channel-major slab, in place
    (input_output_aliases); per-channel (C, 1) scale/shift broadcast over lanes."""
    o_ref[...] = jnp.maximum(x_ref[...] * scale_ref[...] + shift_ref[...], 0.0)


# ---------------------------------------------------------------------------
# BatchNorm fold (tiny XLA glue between the conv kernels)
# ---------------------------------------------------------------------------
def _bn_scale_shift(ch_sum, ch_sq, gamma, beta, count, eps=1e-5):
    """Fold training-mode BatchNorm (biased batch stats over N,H,W) into a
    per-channel scale/shift from the conv kernels' partial sums."""
    total = jnp.sum(ch_sum, axis=(0, 1))
    total_sq = jnp.sum(ch_sq, axis=(0, 1))
    mean = total / count
    var = jnp.maximum(total_sq / count - mean * mean, 0.0)
    scale = gamma * lax.rsqrt(var + eps)
    shift = beta - mean * scale
    return scale, shift


# ---------------------------------------------------------------------------
# DecoderBlock forward
# ---------------------------------------------------------------------------
def decoder_block(x_nchw, skip_nchw, params, eps=1e-5):
    """DecoderBlock.forward (bilinear=False): upsample -> [pad] -> cat -> DoubleConv."""
    N, cin, h, w = x_nchw.shape
    _, cs, H, W = skip_nchw.shape
    cout = params["wt"].shape[1]
    ccat = cout + cs
    count = N * H * W
    cp = _compiler_params()

    # NCHW is kept as the storage layout end-to-end: activations are handed to
    # the kernels as channel-major (C, H*W) slabs via FREE metadata reshapes.
    x_flat = x_nchw.reshape(N, cin, h * w)
    skip_flat = skip_nchw.reshape(N, cs, H * W)

    # Weight repacks (tiny, once per call).
    wt_flat = jnp.transpose(params["wt"], (0, 2, 3, 1)).reshape(cin, 4 * cout)
    wt_flat = wt_flat.astype(jnp.bfloat16)                          # cols (dy, dx, co)
    bt_flat = jnp.tile(params["bt"], 4).reshape(1, 4 * cout).astype(jnp.float32)
    w1_flat = params["w1"].reshape(9 * ccat, cout).astype(jnp.bfloat16)
    b1 = params["b1"].reshape(1, cout).astype(jnp.float32)
    w2_flat = params["w2"].reshape(9 * cout, cout).astype(jnp.bfloat16)
    b2 = params["b2"].reshape(1, cout).astype(jnp.float32)

    # ---- fused: upsample + pad + concat(skip) + conv1 (+ BN1 stat partials) ----
    y1, s1, q1 = pl.pallas_call(
        _make_up_cat_conv1_kernel(h, w, cin, H, W, cs, cout),
        out_shape=(jax.ShapeDtypeStruct((N, cout, H * W), jnp.bfloat16),
                   jax.ShapeDtypeStruct((N, 1, cout), jnp.float32),
                   jax.ShapeDtypeStruct((N, 1, cout), jnp.float32)),
        grid_spec=pltpu.PrefetchScalarGridSpec(
            num_scalar_prefetch=0,
            grid=(N,),
            in_specs=[
                pl.BlockSpec((1, cin, h * w), lambda n: (n, 0, 0)),
                pl.BlockSpec((1, cs, H * W), lambda n: (n, 0, 0)),
                pl.BlockSpec((cin, 4 * cout), lambda n: (0, 0)),
                pl.BlockSpec((1, 4 * cout), lambda n: (0, 0)),
                pl.BlockSpec((9 * ccat, cout), lambda n: (0, 0)),
                pl.BlockSpec((1, cout), lambda n: (0, 0)),
            ],
            out_specs=[
                pl.BlockSpec((1, cout, H * W), lambda n: (n, 0, 0)),
                pl.BlockSpec((1, 1, cout), lambda n: (n, 0, 0)),
                pl.BlockSpec((1, 1, cout), lambda n: (n, 0, 0)),
            ],
        ),
        compiler_params=cp,
    )(x_flat, skip_flat, wt_flat, bt_flat, w1_flat, b1)
    scale1, shift1 = _bn_scale_shift(s1, q1, params["g1"], params["be1"], count, eps)

    # ---- conv2 with BN1+ReLU folded on its input read (+ BN2 stat partials) ----
    y2, s2, q2 = pl.pallas_call(
        _make_conv2_kernel(H, W, cout),
        out_shape=(jax.ShapeDtypeStruct((N, cout, H * W), jnp.float32),
                   jax.ShapeDtypeStruct((N, 1, cout), jnp.float32),
                   jax.ShapeDtypeStruct((N, 1, cout), jnp.float32)),
        grid_spec=pltpu.PrefetchScalarGridSpec(
            num_scalar_prefetch=0,
            grid=(N,),
            in_specs=[
                pl.BlockSpec((1, cout, H * W), lambda n: (n, 0, 0)),
                pl.BlockSpec((cout, 1), lambda n: (0, 0)),
                pl.BlockSpec((cout, 1), lambda n: (0, 0)),
                pl.BlockSpec((9 * cout, cout), lambda n: (0, 0)),
                pl.BlockSpec((1, cout), lambda n: (0, 0)),
            ],
            out_specs=[
                pl.BlockSpec((1, cout, H * W), lambda n: (n, 0, 0)),
                pl.BlockSpec((1, 1, cout), lambda n: (n, 0, 0)),
                pl.BlockSpec((1, 1, cout), lambda n: (n, 0, 0)),
            ],
        ),
        compiler_params=cp,
    )(y1, scale1.reshape(cout, 1), shift1.reshape(cout, 1), w2_flat, b2)
    scale2, shift2 = _bn_scale_shift(s2, q2, params["g2"], params["be2"], count, eps)

    # ---- final BN2 + ReLU epilogue: lane-dense and in place (aliased output) ----
    out_flat = pl.pallas_call(
        _bn_relu_kernel,
        out_shape=jax.ShapeDtypeStruct((N, cout, H * W), jnp.float32),
        grid_spec=pltpu.PrefetchScalarGridSpec(
            num_scalar_prefetch=0,
            grid=(N,),
            in_specs=[
                pl.BlockSpec((1, cout, H * W), lambda n: (n, 0, 0)),
                pl.BlockSpec((cout, 1), lambda n: (0, 0)),
                pl.BlockSpec((cout, 1), lambda n: (0, 0)),
            ],
            out_specs=pl.BlockSpec((1, cout, H * W), lambda n: (n, 0, 0)),
        ),
        input_output_aliases={0: 0},
        compiler_params=cp,
    )(y2, scale2.reshape(cout, 1), shift2.reshape(cout, 1))

    return out_flat.reshape(N, cout, H, W)          # NCHW, free metadata reshape


# ---------------------------------------------------------------------------
# Pure-JAX reference (correctness check)
# ---------------------------------------------------------------------------
def decoder_block_ref(x_nchw, skip_nchw, params, eps=1e-5):
    wt, bt = params["wt"], params["bt"]
    N, _, h, w = x_nchw.shape
    Cout = wt.shape[1]
    up = jnp.einsum("ncij,copq->noipjq", x_nchw, wt).reshape(N, Cout, 2 * h, 2 * w)
    up = up + bt[None, :, None, None]
    H, W = skip_nchw.shape[2], skip_nchw.shape[3]
    if (up.shape[2], up.shape[3]) != (H, W):
        dy, dx = H - up.shape[2], W - up.shape[3]
        up = jnp.pad(up, ((0, 0), (0, 0), (dy // 2, dy - dy // 2),
                          (dx // 2, dx - dx // 2)))
    z = jnp.concatenate([up, skip_nchw], axis=1)

    def conv(v, w_hwio, b):
        wk = jnp.transpose(w_hwio, (3, 2, 0, 1))     # HWIO -> OIHW
        y = lax.conv_general_dilated(v, wk, (1, 1), ((1, 1), (1, 1)),
                                     dimension_numbers=("NCHW", "OIHW", "NCHW"))
        return y + b[None, :, None, None]

    def bn_relu(y, g, be):
        m = jnp.mean(y, axis=(0, 2, 3), keepdims=True)
        v = jnp.mean((y - m) ** 2, axis=(0, 2, 3), keepdims=True)
        yhat = (y - m) / jnp.sqrt(v + eps) * g[None, :, None, None] + be[None, :, None, None]
        return jnp.maximum(yhat, 0.0)

    y = bn_relu(conv(z, params["w1"], params["b1"]), params["g1"], params["be1"])
    y = bn_relu(conv(y, params["w2"], params["b2"]), params["g2"], params["be2"])
    return y


# ---------------------------------------------------------------------------
if __name__ == "__main__":
    N, Cin, Cout = 2, 8, 8          # DecoderBlock(in_channels=8, out_channels=8)
    h = w = 8                       # decoder input spatial; skip is 2h x 2w
    Cskip = Cin // 2
    Ccat = Cout + Cskip             # DoubleConv input channels = 12

    key = jax.random.PRNGKey(0)
    ks = jax.random.split(key, 12)
    params = {
        # ConvTranspose2d weight in PyTorch layout (Cin, Cout, 2, 2)
        "wt": jax.random.normal(ks[0], (Cin, Cout, 2, 2), jnp.float32) * 0.1,
        "bt": jax.random.normal(ks[1], (Cout,), jnp.float32) * 0.1,
        # DoubleConv conv weights stored as HWIO
        "w1": jax.random.normal(ks[2], (3, 3, Ccat, Cout), jnp.float32) * 0.1,
        "b1": jax.random.normal(ks[3], (Cout,), jnp.float32) * 0.1,
        "w2": jax.random.normal(ks[4], (3, 3, Cout, Cout), jnp.float32) * 0.1,
        "b2": jax.random.normal(ks[5], (Cout,), jnp.float32) * 0.1,
        # BatchNorm affine params (perturbed to exercise scale/shift paths)
        "g1": 1.0 + 0.1 * jax.random.normal(ks[6], (Cout,), jnp.float32),
        "be1": 0.1 * jax.random.normal(ks[7], (Cout,), jnp.float32),
        "g2": 1.0 + 0.1 * jax.random.normal(ks[8], (Cout,), jnp.float32),
        "be2": 0.1 * jax.random.normal(ks[9], (Cout,), jnp.float32),
    }

    x = jax.random.normal(ks[10], (N, Cin, h, w), jnp.float32)
    skip = jax.random.normal(ks[11], (N, Cskip, 2 * h, 2 * w), jnp.float32)

    out = jax.block_until_ready(decoder_block(x, skip, params))
    ref = jax.block_until_ready(decoder_block_ref(x, skip, params))

    assert out.shape == (N, Cout, 2 * h, 2 * w), out.shape
    max_err = float(jnp.max(jnp.abs(out - ref)))
    # bf16 MXU operands (f32 accumulation, f32 batch stats): post-BN outputs are
    # O(1), so 5e-2 is ~10x the expected bf16 error while staying meaningful.
    assert jnp.allclose(out, ref, atol=5e-2, rtol=5e-2), f"mismatch, max_err={max_err}"
    print("KERNEL_OK")
</pallas_src>

<mosaic_0001>
module attributes {stable_mosaic.version = 11 : i64} {
  func.func @kernel(%arg0: i32, %arg1: memref<1x8x64xf32, #tpu.memory_space<vmem>>, %arg2: memref<1x4x256xf32, #tpu.memory_space<vmem>>, %arg3: memref<8x32xbf16, #tpu.memory_space<vmem>>, %arg4: memref<1x32xf32, #tpu.memory_space<vmem>>, %arg5: memref<108x8xbf16, #tpu.memory_space<vmem>>, %arg6: memref<1x8xf32, #tpu.memory_space<vmem>>, %arg7: memref<1x8x256xbf16, #tpu.memory_space<vmem>>, %arg8: memref<1x1x8xf32, #tpu.memory_space<vmem>>, %arg9: memref<1x1x8xf32, #tpu.memory_space<vmem>>) attributes {dimension_semantics = [#tpu.dimension_semantics<parallel>], iteration_bounds = array<i64: 2>, scalar_prefetch = 0 : i64, scratch_operands = 0 : i64, tpu.core_type = #tpu.core_type<tc>, window_params = [{transform_indices = @transform_0, window_bounds = array<i64: 1, 8, 64>}, {transform_indices = @transform_1, window_bounds = array<i64: 1, 4, 256>}, {pipeline_mode = #tpu.pipeline_mode<synchronous>, transform_indices = @transform_2, window_bounds = array<i64: 8, 32>}, {pipeline_mode = #tpu.pipeline_mode<synchronous>, transform_indices = @transform_3, window_bounds = array<i64: 1, 32>}, {pipeline_mode = #tpu.pipeline_mode<synchronous>, transform_indices = @transform_4, window_bounds = array<i64: 108, 8>}, {pipeline_mode = #tpu.pipeline_mode<synchronous>, transform_indices = @transform_5, window_bounds = array<i64: 1, 8>}, {transform_indices = @transform_6, window_bounds = array<i64: 1, 8, 256>}, {transform_indices = @transform_7, window_bounds = array<i64: 1, 1, 8>}, {transform_indices = @transform_8, window_bounds = array<i64: 1, 1, 8>}]} {
    %c0 = arith.constant 0 : index
    %c0_0 = arith.constant 0 : index
    %c0_1 = arith.constant 0 : index
    %0 = vector.load %arg1[%c0, %c0_0, %c0_1] : memref<1x8x64xf32, #tpu.memory_space<vmem>>, vector<1x8x64xf32>
    %1 = vector.shape_cast %0 : vector<1x8x64xf32> to vector<8x64xf32>
    %2 = tpu.transpose %1, [1, 0] : vector<8x64xf32> -> vector<64x8xf32>
    %3 = arith.truncf %2 : vector<64x8xf32> to vector<64x8xbf16>
    %c0_2 = arith.constant 0 : index
    %c0_3 = arith.constant 0 : index
    %4 = vector.load %arg3[%c0_2, %c0_3] : memref<8x32xbf16, #tpu.memory_space<vmem>>, vector<8x32xbf16>
    %cst = arith.constant dense<0.000000e+00> : vector<64x32xf32>
    %5 = tpu.matmul %3, %4, %cst {dimension_numbers = #tpu.dot_dimension_numbers<[1], [0], [0], [1], [0, 0, 1, 1], [], []>} : vector<64x8xbf16>, vector<8x32xbf16>, vector<64x32xf32> -> vector<64x32xf32>
    %c0_4 = arith.constant 0 : index
    %c0_5 = arith.constant 0 : index
    %6 = vector.load %arg4[%c0_4, %c0_5] : memref<1x32xf32, #tpu.memory_space<vmem>>, vector<1x32xf32>
    %7 = vector.shape_cast %6 : vector<1x32xf32> to vector<32xf32>
    %8 = vector.shape_cast %7 : vector<32xf32> to vector<1x32xf32>
    %9 = vector.broadcast %8 : vector<1x32xf32> to vector<64x32xf32>
    %10 = arith.addf %5, %9 : vector<64x32xf32>
    %11 = vector.extract_strided_slice %10 {offsets = [0, 0], sizes = [64, 8], strides = [1, 1]} : vector<64x32xf32> to vector<64x8xf32>
    %12 = vector.shape_cast %11 : vector<64x8xf32> to vector<8x8x1x8xf32>
    %13 = vector.extract_strided_slice %10 {offsets = [0, 8], sizes = [64, 8], strides = [1, 1]} : vector<64x32xf32> to vector<64x8xf32>
    %14 = vector.shape_cast %13 : vector<64x8xf32> to vector<8x8x1x8xf32>
    %15 = vector.extract_strided_slice %10 {offsets = [0, 16], sizes = [64, 8], strides = [1, 1]} : vector<64x32xf32> to vector<64x8xf32>
    %16 = vector.shape_cast %15 : vector<64x8xf32> to vector<8x8x1x8xf32>
    %17 = vector.extract_strided_slice %10 {offsets = [0, 24], sizes = [64, 8], strides = [1, 1]} : vector<64x32xf32> to vector<64x8xf32>
    %18 = vector.shape_cast %17 : vector<64x8xf32> to vector<8x8x1x8xf32>
    %19 = tpu.concatenate %12, %14 in 2 : vector<8x8x1x8xf32>, vector<8x8x1x8xf32> -> vector<8x8x2x8xf32>
    %20 = vector.shape_cast %19 : vector<8x8x2x8xf32> to vector<8x1x16x8xf32>
    %21 = tpu.concatenate %16, %18 in 2 : vector<8x8x1x8xf32>, vector<8x8x1x8xf32> -> vector<8x8x2x8xf32>
    %22 = vector.shape_cast %21 : vector<8x8x2x8xf32> to vector<8x1x16x8xf32>
    %23 = tpu.concatenate %20, %22 in 1 : vector<8x1x16x8xf32>, vector<8x1x16x8xf32> -> vector<8x2x16x8xf32>
    %24 = vector.shape_cast %23 : vector<8x2x16x8xf32> to vector<16x16x8xf32>
    %c0_6 = arith.constant 0 : index
    %c0_7 = arith.constant 0 : index
    %c0_8 = arith.constant 0 : index
    %25 = vector.load %arg2[%c0_6, %c0_7, %c0_8] : memref<1x4x256xf32, #tpu.memory_space<vmem>>, vector<1x4x256xf32>
    %26 = vector.shape_cast %25 : vector<1x4x256xf32> to vector<4x256xf32>
    %27 = tpu.transpose %26, [1, 0] : vector<4x256xf32> -> vector<256x4xf32>
    %28 = vector.shape_cast %27 : vector<256x4xf32> to vector<16x16x4xf32>
    %29 = tpu.concatenate %24, %28 in 2 : vector<16x16x8xf32>, vector<16x16x4xf32> -> vector<16x16x12xf32>
    %cst_9 = arith.constant 0.000000e+00 : f32
    %30 = vector.broadcast %cst_9 : f32 to vector<16x1x12xf32>
    %cst_10 = arith.constant 0.000000e+00 : f32
    %31 = vector.broadcast %cst_10 : f32 to vector<16x1x12xf32>
    %32 = tpu.concatenate %30, %29, %31 in 1 : vector<16x1x12xf32>, vector<16x16x12xf32>, vector<16x1x12xf32> -> vector<16x18x12xf32>
    %cst_11 = arith.constant 0.000000e+00 : f32
    %33 = vector.broadcast %cst_11 : f32 to vector<1x18x12xf32>
    %cst_12 = arith.constant 0.000000e+00 : f32
    %34 = vector.broadcast %cst_12 : f32 to vector<1x18x12xf32>
    %35 = tpu.concatenate %33, %32, %34 in 0 : vector<1x18x12xf32>, vector<16x18x12xf32>, vector<1x18x12xf32> -> vector<18x18x12xf32>
    %36 = arith.truncf %35 : vector<18x18x12xf32> to vector<18x18x12xbf16>
    %37 = vector.extract_strided_slice %36 {offsets = [0, 0, 0], sizes = [18, 16, 12], strides = [1, 1, 1]} : vector<18x18x12xbf16> to vector<18x16x12xbf16>
    %38 = vector.extract_strided_slice %36 {offsets = [0, 1, 0], sizes = [18, 16, 12], strides = [1, 1, 1]} : vector<18x18x12xbf16> to vector<18x16x12xbf16>
    %39 = vector.extract_strided_slice %36 {offsets = [0, 2, 0], sizes = [18, 16, 12], strides = [1, 1, 1]} : vector<18x18x12xbf16> to vector<18x16x12xbf16>
    %40 = vector.extract_strided_slice %37 {offsets = [0, 0, 0], sizes = [16, 16, 12], strides = [1, 1, 1]} : vector<18x16x12xbf16> to vector<16x16x12xbf16>
    %41 = vector.extract_strided_slice %38 {offsets = [0, 0, 0], sizes = [16, 16, 12], strides = [1, 1, 1]} : vector<18x16x12xbf16> to vector<16x16x12xbf16>
    %42 = vector.extract_strided_slice %39 {offsets = [0, 0, 0], sizes = [16, 16, 12], strides = [1, 1, 1]} : vector<18x16x12xbf16> to vector<16x16x12xbf16>
    %43 = vector.extract_strided_slice %37 {offsets = [1, 0, 0], sizes = [16, 16, 12], strides = [1, 1, 1]} : vector<18x16x12xbf16> to vector<16x16x12xbf16>
    %44 = vector.extract_strided_slice %38 {offsets = [1, 0, 0], sizes = [16, 16, 12], strides = [1, 1, 1]} : vector<18x16x12xbf16> to vector<16x16x12xbf16>
    %45 = vector.extract_strided_slice %39 {offsets = [1, 0, 0], sizes = [16, 16, 12], strides = [1, 1, 1]} : vector<18x16x12xbf16> to vector<16x16x12xbf16>
    %46 = vector.extract_strided_slice %37 {offsets = [2, 0, 0], sizes = [16, 16, 12], strides = [1, 1, 1]} : vector<18x16x12xbf16> to vector<16x16x12xbf16>
    %47 = vector.extract_strided_slice %38 {offsets = [2, 0, 0], sizes = [16, 16, 12], strides = [1, 1, 1]} : vector<18x16x12xbf16> to vector<16x16x12xbf16>
    %48 = vector.extract_strided_slice %39 {offsets = [2, 0, 0], sizes = [16, 16, 12], strides = [1, 1, 1]} : vector<18x16x12xbf16> to vector<16x16x12xbf16>
    %49 = tpu.concatenate %40, %41, %42, %43, %44, %45, %46, %47, %48 in 2 : vector<16x16x12xbf16>, vector<16x16x12xbf16>, vector<16x16x12xbf16>, vector<16x16x12xbf16>, vector<16x16x12xbf16>, vector<16x16x12xbf16>, vector<16x16x12xbf16>, vector<16x16x12xbf16>, vector<16x16x12xbf16> -> vector<16x16x108xbf16>
    %50 = vector.shape_cast %49 : vector<16x16x108xbf16> to vector<256x108xbf16>
    %c0_13 = arith.constant 0 : index
    %c0_14 = arith.constant 0 : index
    %51 = vector.load %arg5[%c0_13, %c0_14] : memref<108x8xbf16, #tpu.memory_space<vmem>>, vector<108x8xbf16>
    %cst_15 = arith.constant dense<0.000000e+00> : vector<256x8xf32>
    %52 = tpu.matmul %50, %51, %cst_15 {dimension_numbers = #tpu.dot_dimension_numbers<[1], [0], [0], [1], [0, 0, 1, 1], [], []>} : vector<256x108xbf16>, vector<108x8xbf16>, vector<256x8xf32> -> vector<256x8xf32>
    %c0_16 = arith.constant 0 : index
    %c0_17 = arith.constant 0 : index
    %53 = vector.load %arg6[%c0_16, %c0_17] : memref<1x8xf32, #tpu.memory_space<vmem>>, vector<1x8xf32>
    %54 = vector.shape_cast %53 : vector<1x8xf32> to vector<8xf32>
    %55 = vector.shape_cast %54 : vector<8xf32> to vector<1x8xf32>
    %56 = vector.broadcast %55 : vector<1x8xf32> to vector<256x8xf32>
    %57 = arith.addf %52, %56 : vector<256x8xf32>
    %58 = tpu.transpose %57, [1, 0] : vector<256x8xf32> -> vector<8x256xf32>
    %59 = vector.shape_cast %58 : vector<8x256xf32> to vector<1x8x256xf32>
    %60 = arith.truncf %59 : vector<1x8x256xf32> to vector<1x8x256xbf16>
    %c0_18 = arith.constant 0 : index
    %c0_19 = arith.constant 0 : index
    %c0_20 = arith.constant 0 : index
    %61 = vector.load %arg7[%c0_18, %c0_19, %c0_20] : memref<1x8x256xbf16, #tpu.memory_space<vmem>>, vector<1x8x256xbf16>
    tpu.vector_store %arg7[%c0_18, %c0_19, %c0_20], %60 {strides = array<i32>} : memref<1x8x256xbf16, #tpu.memory_space<vmem>>, vector<1x8x256xbf16>,
    %cst_21 = arith.constant dense<0.000000e+00> : vector<8xf32>
    %62 = vector.multi_reduction <add>, %57, %cst_21 [0] : vector<256x8xf32> to vector<8xf32>
    %63 = vector.shape_cast %62 : vector<8xf32> to vector<1x8xf32>
    %64 = vector.shape_cast %63 : vector<1x8xf32> to vector<1x1x8xf32>
    %c0_22 = arith.constant 0 : index
    %c0_23 = arith.constant 0 : index
    %c0_24 = arith.constant 0 : index
    %65 = vector.load %arg8[%c0_22, %c0_23, %c0_24] : memref<1x1x8xf32, #tpu.memory_space<vmem>>, vector<1x1x8xf32>
    tpu.vector_store %arg8[%c0_22, %c0_23, %c0_24], %64 {strides = array<i32>} : memref<1x1x8xf32, #tpu.memory_space<vmem>>, vector<1x1x8xf32>,
    %66 = arith.mulf %57, %57 : vector<256x8xf32>
    %cst_25 = arith.constant dense<0.000000e+00> : vector<8xf32>
    %67 = vector.multi_reduction <add>, %66, %cst_25 [0] : vector<256x8xf32> to vector<8xf32>
    %68 = vector.shape_cast %67 : vector<8xf32> to vector<1x8xf32>
    %69 = vector.shape_cast %68 : vector<1x8xf32> to vector<1x1x8xf32>
    %c0_26 = arith.constant 0 : index
    %c0_27 = arith.constant 0 : index
    %c0_28 = arith.constant 0 : index
    %70 = vector.load %arg9[%c0_26, %c0_27, %c0_28] : memref<1x1x8xf32, #tpu.memory_space<vmem>>, vector<1x1x8xf32>
    tpu.vector_store %arg9[%c0_26, %c0_27, %c0_28], %69 {strides = array<i32>} : memref<1x1x8xf32, #tpu.memory_space<vmem>>, vector<1x1x8xf32>,
    return
  }
  func.func @transform_0(%arg0: i32) -> (i32, i32, i32) {
    %c0_i32 = arith.constant 0 : i32
    %c0_i32_0 = arith.constant 0 : i32
    %c0_i32_1 = arith.constant 0 : i32
    return %arg0, %c0_i32, %c0_i32_0 : i32, i32, i32
  }
  func.func @transform_1(%arg0: i32) -> (i32, i32, i32) {
    %c0_i32 = arith.constant 0 : i32
    %c0_i32_0 = arith.constant 0 : i32
    %c0_i32_1 = arith.constant 0 : i32
    return %arg0, %c0_i32, %c0_i32_0 : i32, i32, i32
  }
  func.func @transform_2(%arg0: i32) -> (i32, i32) {
    %c0_i32 = arith.constant 0 : i32
    %c0_i32_0 = arith.constant 0 : i32
    %c0_i32_1 = arith.constant 0 : i32
    return %c0_i32, %c0_i32_0 : i32, i32
  }
  func.func @transform_3(%arg0: i32) -> (i32, i32) {
    %c0_i32 = arith.constant 0 : i32
    %c0_i32_0 = arith.constant 0 : i32
    %c0_i32_1 = arith.constant 0 : i32
    return %c0_i32, %c0_i32_0 : i32, i32
  }
  func.func @transform_4(%arg0: i32) -> (i32, i32) {
    %c0_i32 = arith.constant 0 : i32
    %c0_i32_0 = arith.constant 0 : i32
    %c0_i32_1 = arith.constant 0 : i32
    return %c0_i32, %c0_i32_0 : i32, i32
  }
  func.func @transform_5(%arg0: i32) -> (i32, i32) {
    %c0_i32 = arith.constant 0 : i32
    %c0_i32_0 = arith.constant 0 : i32
    %c0_i32_1 = arith.constant 0 : i32
    return %c0_i32, %c0_i32_0 : i32, i32
  }
  func.func @transform_6(%arg0: i32) -> (i32, i32, i32) {
    %c0_i32 = arith.constant 0 : i32
    %c0_i32_0 = arith.constant 0 : i32
    %c0_i32_1 = arith.constant 0 : i32
    return %arg0, %c0_i32, %c0_i32_0 : i32, i32, i32
  }
  func.func @transform_7(%arg0: i32) -> (i32, i32, i32) {
    %c0_i32 = arith.constant 0 : i32
    %c0_i32_0 = arith.constant 0 : i32
    %c0_i32_1 = arith.constant 0 : i32
    return %arg0, %c0_i32, %c0_i32_0 : i32, i32, i32
  }
  func.func @transform_8(%arg0: i32) -> (i32, i32, i32) {
    %c0_i32 = arith.constant 0 : i32
    %c0_i32_0 = arith.constant 0 : i32
    %c0_i32_1 = arith.constant 0 : i32
    return %arg0, %c0_i32, %c0_i32_0 : i32, i32, i32
  }
}

</mosaic_0001>

<llo_original>
// kernel: tpu_custom_call.1
$region0: #{tpu_custom_call.1}
  #allocation0 [shape = 'u32[]', space=smem, size = 0x4, offset = 0x4, fixed_abs, tag = 'smem constant byte address 0x4 - core index']
  #allocation1 [shape = 'u32[144,128]{1,0:T(1,128)}', space=vmem, size = 0x12000, scoped, tag = 'internal scratch']
  %s0 = inlined_call_operand.vmem [shape: f32[2,8,64], index: 0, kind: input, shape index: {}]
  %s1 = inlined_call_operand.vmem [shape: f32[2,4,256], index: 1, kind: input, shape index: {}]
  %s2 = inlined_call_operand.vmem [shape: bf16[8,32], index: 2, kind: input, shape index: {}]
  %s3 = inlined_call_operand.vmem [shape: f32[1,32], index: 3, kind: input, shape index: {}]
  %s4 = inlined_call_operand.vmem [shape: bf16[108,8], index: 4, kind: input, shape index: {}]
  %s5 = inlined_call_operand.vmem [shape: f32[1,8], index: 5, kind: input, shape index: {}]
  %s6 = inlined_call_operand.hbm [shape: bf16[2,8,256], index: 6, kind: output, shape index: {0}]
  %s7 = inlined_call_operand.hbm [shape: f32[2,1,8], index: 7, kind: output, shape index: {1}]
  %s8 = inlined_call_operand.hbm [shape: f32[2,1,8], index: 8, kind: output, shape index: {2}]
  %9 = xla_tuple %s6, %s7, %s8
  %s10 = sld [smem:[#allocation0]]
  $region73: #{tpu_custom_call.1} parent=0
    _
  %s12 = ssub.s32 1, %s10
  %s13 = scalar_select 0, %s12, %s10
  $region1: #{tpu_custom_call.1} parent=0
    #allocation2 [shape = 'u8[8192]{0}', space=vmem, size = 0x2000, scoped, tag = 'output window, operand 0']
    #allocation3 [shape = 's32[2]{0}', space=sflag, size = 0x8, scoped, tag = 'scoped memory for tpu_custom_call.1']
    #allocation4 [shape = 'u8[1024]{0}', space=vmem, size = 0x400, scoped, tag = 'output window, operand 1']
    #allocation5 [shape = 's32[2]{0}', space=sflag, size = 0x8, scoped, tag = 'scoped memory for tpu_custom_call.1']
    #allocation6 [shape = 'u8[1024]{0}', space=vmem, size = 0x400, scoped, tag = 'output window, operand 2']
    %14 = vsyncpa [#allocation3], 0
    %s15 = scalar_lea.sflag [#allocation3], 1
    %16 = vsyncpa %s15, 0
    %17 = vsyncpa [#allocation5], 0
    %s18 = scalar_lea.sflag [#allocation5], 1
    %19 = vsyncpa %s18, 0
    loop: start=0, step=1, limit=4
    $region2: #{tpu_custom_call.1} parent=1 // loop_pre_header
      _
    $region3: #{tpu_custom_call.1} parent=1 // loop_header
      %s21 = sphi 0, %s25
      %p22 = scmp.ge.s32.totalorder %s21, 4
      %s31 = sphi 0, %s33
      %s34 = sphi 0, %s31
      %s35 = sphi 0, %s34
      %s51 = sphi 0, %s35
      %s57 = sphi 0, %s59
      %s60 = sphi 0, %s57
      %s61 = sphi 0, %s60
      %s77 = sphi 0, %s61
      %s81 = sphi 0, %s81
      %s83 = sphi 0, %s81
      %s84 = sphi 0, %s83
      %s98 = sphi 0, %s84
      %s102 = sphi 0, %s102
      %s104 = sphi 0, %s102
      %s105 = sphi 0, %s104
      %s119 = sphi 0, %s105
      %s123 = sphi 0, %s123
      %s125 = sphi 0, %s123
      %s126 = sphi 0, %s125
      %s140 = sphi 0, %s126
      %s144 = sphi 0, %s144
      %s146 = sphi 0, %s144
      %s147 = sphi 0, %s146
      %s161 = sphi 0, %s147
      %s167 = sphi 0, %s169
      %s170 = sphi 0, %s167
      %s171 = sphi 0, %s170
      %s187 = sphi 0, %s171
      %s193 = sphi 0, %s195
      %s196 = sphi 0, %s193
      %s197 = sphi 0, %s196
      %s213 = sphi 0, %s197
      %s219 = sphi 0, %s221
      %s222 = sphi 0, %s219
      %s223 = sphi 0, %s222
      %s239 = sphi 0, %s223
    $region4: #{tpu_custom_call.1} parent=1 // loop_header_branch
      %24 = sbr.rel (%p22) target = $region8
    $region5: #{tpu_custom_call.1} parent=1 // loop_body
      %s26 = ssub.s32 %s21, 1
      %s27 = ssub.s32 %s21, 2
      %s28 = sadd.s32 %s21, 1
      %s29 = ssub.s32 %s21, %s28
      %p30 = scmp.eq.s32.totalorder %s29, 0
      %s32 = sadd.s32 %s31, 1
      %s33 = scalar_select %p30, %s31, %s32
      %p36 = pneg %p30
      %p37 = scmp.eq.s32.totalorder %s21, 1
      %p38 = por %p36, %p37
      %p39 = scmp.ne.s32.totalorder %s31, %s34
      %p40 = scmp.eq.s32.totalorder %s21, 0
      %p41 = por %p39, %p40
      %p42 = scmp.ne.s32.totalorder %s31, %s34
      %p43 = scmp.eq.s32.totalorder %s26, 1
      %p44 = por %p42, %p43
      %p45 = scmp.ne.s32.totalorder %s34, %s35
      %p46 = scmp.eq.s32.totalorder %s26, 0
      %p47 = por %p45, %p46
      %p48 = scmp.ne.s32.totalorder %s34, %s35
      %p49 = scmp.eq.s32.totalorder %s27, 1
      %p50 = por %p48, %p49
      %p52 = scmp.ne.s32.totalorder %s35, %s51
      %p53 = scmp.eq.s32.totalorder %s27, 0
      %p54 = por %p52, %p53
      %s55 = ssub.s32 %s21, %s28
      %p56 = scmp.eq.s32.totalorder %s55, 0
      %s58 = sadd.s32 %s57, 1
      %s59 = scalar_select %p56, %s57, %s58
      %p62 = pneg %p56
      %p63 = scmp.eq.s32.totalorder %s21, 1
      %p64 = por %p62, %p63
      %p65 = scmp.ne.s32.totalorder %s57, %s60
      %p66 = scmp.eq.s32.totalorder %s21, 0
      %p67 = por %p65, %p66
      %p68 = scmp.ne.s32.totalorder %s57, %s60
      %p69 = scmp.eq.s32.totalorder %s26, 1
      %p70 = por %p68, %p69
      %p71 = scmp.ne.s32.totalorder %s60, %s61
      %p72 = scmp.eq.s32.totalorder %s26, 0
      %p73 = por %p71, %p72
      %p74 = scmp.ne.s32.totalorder %s60, %s61
      %p75 = scmp.eq.s32.totalorder %s27, 1
      %p76 = por %p74, %p75
      %p78 = scmp.ne.s32.totalorder %s61, %s77
      %p79 = scmp.eq.s32.totalorder %s27, 0
      %p80 = por %p78, %p79
      %s82 = sadd.s32 %s81, 1
      %p85 = scmp.eq.s32.totalorder %s21, 1
      %p86 = scmp.ne.s32.totalorder %s81, %s83
      %p87 = scmp.eq.s32.totalorder %s21, 0
      %p88 = por %p86, %p87
      %p89 = scmp.ne.s32.totalorder %s81, %s83
      %p90 = scmp.eq.s32.totalorder %s26, 1
      %p91 = por %p89, %p90
      %p92 = scmp.ne.s32.totalorder %s83, %s84
      %p93 = scmp.eq.s32.totalorder %s26, 0
      %p94 = por %p92, %p93
      %p95 = scmp.ne.s32.totalorder %s83, %s84
      %p96 = scmp.eq.s32.totalorder %s27, 1
      %p97 = por %p95, %p96
      %p99 = scmp.ne.s32.totalorder %s84, %s98
      %p100 = scmp.eq.s32.totalorder %s27, 0
      %p101 = por %p99, %p100
      %s103 = sadd.s32 %s102, 1
      %p106 = scmp.eq.s32.totalorder %s21, 1
      %p107 = scmp.ne.s32.totalorder %s102, %s104
      %p108 = scmp.eq.s32.totalorder %s21, 0
      %p109 = por %p107, %p108
      %p110 = scmp.ne.s32.totalorder %s102, %s104
      %p111 = scmp.eq.s32.totalorder %s26, 1
      %p112 = por %p110, %p111
      %p113 = scmp.ne.s32.totalorder %s104, %s105
      %p114 = scmp.eq.s32.totalorder %s26, 0
      %p115 = por %p113, %p114
      %p116 = scmp.ne.s32.totalorder %s104, %s105
      %p117 = scmp.eq.s32.totalorder %s27, 1
      %p118 = por %p116, %p117
      %p120 = scmp.ne.s32.totalorder %s105, %s119
      %p121 = scmp.eq.s32.totalorder %s27, 0
      %p122 = por %p120, %p121
      %s124 = sadd.s32 %s123, 1
      %p127 = scmp.eq.s32.totalorder %s21, 1
      %p128 = scmp.ne.s32.totalorder %s123, %s125
      %p129 = scmp.eq.s32.totalorder %s21, 0
      %p130 = por %p128, %p129
      %p131 = scmp.ne.s32.totalorder %s123, %s125
      %p132 = scmp.eq.s32.totalorder %s26, 1
      %p133 = por %p131, %p132
      %p134 = scmp.ne.s32.totalorder %s125, %s126
      %p135 = scmp.eq.s32.totalorder %s26, 0
      %p136 = por %p134, %p135
      %p137 = scmp.ne.s32.totalorder %s125, %s126
      %p138 = scmp.eq.s32.totalorder %s27, 1
      %p139 = por %p137, %p138
      %p141 = scmp.ne.s32.totalorder %s126, %s140
      %p142 = scmp.eq.s32.totalorder %s27, 0
      %p143 = por %p141, %p142
      %s145 = sadd.s32 %s144, 1
      %p148 = scmp.eq.s32.totalorder %s21, 1
      %p149 = scmp.ne.s32.totalorder %s144, %s146
      %p150 = scmp.eq.s32.totalorder %s21, 0
      %p151 = por %p149, %p150
      %p152 = scmp.ne.s32.totalorder %s144, %s146
      %p153 = scmp.eq.s32.totalorder %s26, 1
      %p154 = por %p152, %p153
      %p155 = scmp.ne.s32.totalorder %s146, %s147
      %p156 = scmp.eq.s32.totalorder %s26, 0
      %p157 = por %p155, %p156
      %p158 = scmp.ne.s32.totalorder %s146, %s147
      %p159 = scmp.eq.s32.totalorder %s27, 1
      %p160 = por %p158, %p159
      %p162 = scmp.ne.s32.totalorder %s147, %s161
      %p163 = scmp.eq.s32.totalorder %s27, 0
      %p164 = por %p162, %p163
      %s165 = ssub.s32 %s21, %s28
      %p166 = scmp.eq.s32.totalorder %s165, 0
      %s168 = sadd.s32 %s167, 1
      %s169 = scalar_select %p166, %s167, %s168
      %p172 = pneg %p166
      %p173 = scmp.eq.s32.totalorder %s21, 1
      %p174 = por %p172, %p173
      %p175 = scmp.ne.s32.totalorder %s167, %s170
      %p176 = scmp.eq.s32.totalorder %s21, 0
      %p177 = por %p175, %p176
      %p178 = scmp.ne.s32.totalorder %s167, %s170
      %p179 = scmp.eq.s32.totalorder %s26, 1
      %p180 = por %p178, %p179
      %p181 = scmp.ne.s32.totalorder %s170, %s171
      %p182 = scmp.eq.s32.totalorder %s26, 0
      %p183 = por %p181, %p182
      %p184 = scmp.ne.s32.totalorder %s170, %s171
      %p185 = scmp.eq.s32.totalorder %s27, 1
      %p186 = por %p184, %p185
      %p188 = scmp.ne.s32.totalorder %s171, %s187
      %p189 = scmp.eq.s32.totalorder %s27, 0
      %p190 = por %p188, %p189
      %s191 = ssub.s32 %s21, %s28
      %p192 = scmp.eq.s32.totalorder %s191, 0
      %s194 = sadd.s32 %s193, 1
      %s195 = scalar_select %p192, %s193, %s194
      %p198 = pneg %p192
      %p199 = scmp.eq.s32.totalorder %s21, 1
      %p200 = por %p198, %p199
      %p201 = scmp.ne.s32.totalorder %s193, %s196
      %p202 = scmp.eq.s32.totalorder %s21, 0
      %p203 = por %p201, %p202
      %p204 = scmp.ne.s32.totalorder %s193, %s196
      %p205 = scmp.eq.s32.totalorder %s26, 1
      %p206 = por %p204, %p205
      %p207 = scmp.ne.s32.totalorder %s196, %s197
      %p208 = scmp.eq.s32.totalorder %s26, 0
      %p209 = por %p207, %p208
      %p210 = scmp.ne.s32.totalorder %s196, %s197
      %p211 = scmp.eq.s32.totalorder %s27, 1
      %p212 = por %p210, %p211
      %p214 = scmp.ne.s32.totalorder %s197, %s213
      %p215 = scmp.eq.s32.totalorder %s27, 0
      %p216 = por %p214, %p215
      %s217 = ssub.s32 %s21, %s28
      %p218 = scmp.eq.s32.totalorder %s217, 0
      %s220 = sadd.s32 %s219, 1
      %s221 = scalar_select %p218, %s219, %s220
      %p224 = pneg %p218
      %p225 = scmp.eq.s32.totalorder %s21, 1
      %p226 = por %p224, %p225
      %p227 = scmp.ne.s32.totalorder %s219, %s222
      %p228 = scmp.eq.s32.totalorder %s21, 0
      %p229 = por %p227, %p228
      %p230 = scmp.ne.s32.totalorder %s219, %s222
      %p231 = scmp.eq.s32.totalorder %s26, 1
      %p232 = por %p230, %p231
      %p233 = scmp.ne.s32.totalorder %s222, %s223
      %p234 = scmp.eq.s32.totalorder %s26, 0
      %p235 = por %p233, %p234
      %p236 = scmp.ne.s32.totalorder %s222, %s223
      %p237 = scmp.eq.s32.totalorder %s27, 1
      %p238 = por %p236, %p237
      %p240 = scmp.ne.s32.totalorder %s223, %s239
      %p241 = scmp.eq.s32.totalorder %s27, 0
      %p242 = por %p240, %p241
      %p243 = scmp.le.s32.totalorder 1, %s21
      %p244 = scmp.lt.s32.totalorder %s21, 3
      %p245 = pnand %p243, %p244
      %p246 = pneg %p245
      // Predicated region
      $region9: #{tpu_custom_call.1} parent=5 // pred_check
        _
      $region10: #{tpu_custom_call.1} parent=5 // pred_check_branch
        %248 = sbr.rel (%p245) target = $region12
      $region11: #{tpu_custom_call.1} parent=5 // pred_region
        %s249 = ssub.s32 %s21, 1
        // Predicated region
        $region13: #{tpu_custom_call.1} parent=11 // pred_check
          %p250 = pneg %p94
        $region14: #{tpu_custom_call.1} parent=11 // pred_check_branch
          %252 = sbr.rel (%p250) target = $region16
        $region15: #{tpu_custom_call.1} parent=11 // pred_region
          _
        $region16: #{tpu_custom_call.1} parent=11 // pred_fallthru
          _
        // Predicated region
        $region17: #{tpu_custom_call.1} parent=11 // pred_check
          %p253 = pneg %p115
        $region18: #{tpu_custom_call.1} parent=11 // pred_check_branch
          %255 = sbr.rel (%p253) target = $region20
        $region19: #{tpu_custom_call.1} parent=11 // pred_region
          _
        $region20: #{tpu_custom_call.1} parent=11 // pred_fallthru
          _
        // Predicated region
        $region21: #{tpu_custom_call.1} parent=11 // pred_check
          %p256 = pneg %p136
        $region22: #{tpu_custom_call.1} parent=11 // pred_check_branch
          %258 = sbr.rel (%p256) target = $region24
        $region23: #{tpu_custom_call.1} parent=11 // pred_region
          _
        $region24: #{tpu_custom_call.1} parent=11 // pred_fallthru
          _
        // Predicated region
        $region25: #{tpu_custom_call.1} parent=11 // pred_check
          %p259 = pneg %p157
        $region26: #{tpu_custom_call.1} parent=11 // pred_check_branch
          %261 = sbr.rel (%p259) target = $region28
        $region27: #{tpu_custom_call.1} parent=11 // pred_region
          _
        $region28: #{tpu_custom_call.1} parent=11 // pred_fallthru
          _
      $region12: #{tpu_custom_call.1} parent=5 // pred_fallthru
        _
      %p262 = scmp.lt.s32.totalorder %s21, 2
      // Predicated region
      $region29: #{tpu_custom_call.1} parent=5 // pred_check
        %p263 = pneg %p262
      $region30: #{tpu_custom_call.1} parent=5 // pred_check_branch
        %265 = sbr.rel (%p263) target = $region32
      $region31: #{tpu_custom_call.1} parent=5 // pred_region
        // Predicated region
        $region33: #{tpu_custom_call.1} parent=31 // pred_check
          %p266 = pneg %p41
        $region34: #{tpu_custom_call.1} parent=31 // pred_check_branch
          %268 = sbr.rel (%p266) target = $region36
        $region35: #{tpu_custom_call.1} parent=31 // pred_region
          %p269 = scmp.lt.s32.totalorder %s21, 1
          %s270 = scalar_select %p269, %s21, 1
          %s271 = smul.addr %s270, 8
          %s272 = scalar_lea.vmem %s0, %s271
        $region36: #{tpu_custom_call.1} parent=31 // pred_fallthru
          _
        // Predicated region
        $region37: #{tpu_custom_call.1} parent=31 // pred_check
          %p273 = pneg %p67
        $region38: #{tpu_custom_call.1} parent=31 // pred_check_branch
          %275 = sbr.rel (%p273) target = $region40
        $region39: #{tpu_custom_call.1} parent=31 // pred_region
          %p276 = scmp.lt.s32.totalorder %s21, 1
          %s277 = scalar_select %p276, %s21, 1
          %s278 = smul.addr %s277, 2
          %s279 = smul.addr %s278, 4
          %s280 = scalar_lea.vmem %s1, %s279
        $region40: #{tpu_custom_call.1} parent=31 // pred_fallthru
          _
      $region32: #{tpu_custom_call.1} parent=5 // pred_fallthru
        _
      %p281 = scmp.le.s32.totalorder 1, %s21
      %p282 = scmp.lt.s32.totalorder %s21, 3
      %p283 = pnand %p281, %p282
      %p284 = pneg %p283
      // Predicated region
      $region41: #{tpu_custom_call.1} parent=5 // pred_check
        _
      $region42: #{tpu_custom_call.1} parent=5 // pred_check_branch
        %286 = sbr.rel (%p283) target = $region44
      $region43: #{tpu_custom_call.1} parent=5 // pred_region
        %s287 = ssub.s32 %s21, 1
        %p288 = scmp.lt.s32.totalorder %s26, 1
        %s289 = scalar_select %p288, %s26, 1
        %s290 = smul.addr %s289, 8
        %s291 = scalar_lea.vmem %s0, %s290
        %p292 = pneg %p47
        %p293 = pneg %p44
        %p294 = scmp.lt.s32.totalorder %s26, 1
        %s295 = scalar_select %p294, %s26, 1
        %s296 = smul.addr %s295, 2
        %s297 = smul.addr %s296, 4
        %s298 = scalar_lea.vmem %s1, %s297
        %p299 = pneg %p73
        %p300 = pneg %p70
        %p301 = pneg %p94
        %p302 = pneg %p91
        %p303 = pneg %p115
        %p304 = pneg %p112
        %p305 = pneg %p136
        %p306 = pneg %p133
        %p307 = pneg %p157
        %p308 = pneg %p154
        %p309 = pneg %p183
        %p310 = pneg %p180
        %s311 = sand.u32 %s170, 1
        %s312 = scalar_lea.sflag [#allocation3], %s311
        %s313 = sand.u32 %s170, 1
        %s314 = smul.addr %s313, 8
        %s315 = scalar_lea.vmem [#allocation2], %s314
        %p316 = pneg %p209
        %p317 = pneg %p206
        %s318 = sand.u32 %s26, 1
        %s319 = scalar_lea.sflag [#allocation5], %s318
        %s320 = sand.u32 %s196, 1
        %s321 = scalar_lea.vmem [#allocation4], %s320
        %p322 = pneg %p235
        %p323 = pneg %p232
        %s324 = sand.u32 %s26, 1
        %s325 = scalar_lea.sflag [#allocation5], %s324
        %s326 = sand.u32 %s222, 1
        %s327 = scalar_lea.vmem [#allocation6], %s326
        %p328 = scmp.lt.s32.totalorder %s26, 1
        %s329 = scalar_select %p328, %s26, 1
        %s330 = smul.addr %s329, 8
        %s331 = scalar_lea.vmem %s0, %s330
        %p332 = scmp.lt.s32.totalorder %s26, 1
        %s333 = scalar_select %p332, %s26, 1
        %s334 = smul.addr %s333, 2
        %s335 = smul.addr %s334, 4
        %s336 = scalar_lea.vmem %s1, %s335
        %v338 = vld [vmem:[%s331] sm:$0xff]
        %339 = vxpose.xlu0.b32.start [1/16] %v338, 128
        %340 = vxpose.xlu0.b32.cont [2/16] 0.0, 128
        %341 = vxpose.xlu0.b32.cont [3/16] 0.0, 128
        %342 = vxpose.xlu0.b32.cont [4/16] 0.0, 128
        %343 = vxpose.xlu0.b32.cont [5/16] 0.0, 128
        %344 = vxpose.xlu0.b32.cont [6/16] 0.0, 128
        %345 = vxpose.xlu0.b32.cont [7/16] 0.0, 128
        %346 = vxpose.xlu0.b32.cont [8/16] 0.0, 128
        %347 = vxpose.xlu0.b32.cont [9/16] 0.0, 128
        %348 = vxpose.xlu0.b32.cont [10/16] 0.0, 128
        %349 = vxpose.xlu0.b32.cont [11/16] 0.0, 128
        %350 = vxpose.xlu0.b32.cont [12/16] 0.0, 128
        %351 = vxpose.xlu0.b32.cont [13/16] 0.0, 128
        %352 = vxpose.xlu0.b32.cont [14/16] 0.0, 128
        %353 = vxpose.xlu0.b32.cont [15/16] 0.0, 128
        %354 = vxpose.xlu0.b32.end [16/16] 0.0, 128
        %v355 = vpop.trf.xlu0
        %v356 = vpop.trf.xlu0
        %v357 = vpop.trf.xlu0
        %v358 = vpop.trf.xlu0
        %v359 = vpop.trf.xlu0
        %v360 = vpop.trf.xlu0
        %v361 = vpop.trf.xlu0
        %v362 = vpop.trf.xlu0
        %v363 = vpop.trf.xlu0
        %v364 = vpop.trf.xlu0
        %v365 = vpop.trf.xlu0
        %v366 = vpop.trf.xlu0
        %v367 = vpop.trf.xlu0
        %v368 = vpop.trf.xlu0
        %v369 = vpop.trf.xlu0
        %v370 = vpop.trf.xlu0
        %v371 = vpack.c.bf16 %v356, %v355
        %v372 = vpack.c.bf16 %v358, %v357
        %v373 = vpack.c.bf16 %v360, %v359
        %v374 = vpack.c.bf16 %v362, %v361
        %v375 = vld [vmem:[%s2] sm:$0xf]
        %v376 = vld [vmem:[%s3] sm:$0x1]
        %v378 = vlaneseq
        %v379 = vshrl.u32 %v378, 7
        %v380 = vsub.s32 0, %v379
        %v381 = vrot.slane %v376, %v380
        %vm383 = vcmask 64512
        %v385 = vsel %vm383, %v371, 0
        %v388 = vsel %vm383, %v372, 0
        %v391 = vsel %vm383, %v373, 0
        %v394 = vsel %vm383, %v374, 0
        %vm396 = vcmask 1043456
        %v398 = vsel %vm396, %v375, 0
        %400 = vmatprep.subr.bf16.mxu0 0
        %401 = vmatpush1.bf16.msra.mxu0 0
        %402 = vmatprep.subr.bf16.mxu0 0
        %403 = vmatpush1.bf16.msra.mxu0 0
        %404 = vmatprep.subr.bf16.mxu0 0
        %405 = vmatpush1.bf16.msra.mxu0 0
        %406 = vmatprep.subr.bf16.mxu0 0
        %407 = vmatpush1.bf16.msra.mxu0 0
        %408 = vmatprep.subr.bf16.mxu0 0
        %409 = vmatpush1.bf16.msra.mxu0 0
        %410 = vmatprep.subr.bf16.mxu0 0
        %411 = vmatpush1.bf16.msra.mxu0 0
        %412 = vmatprep.subr.bf16.mxu0 0
        %413 = vmatpush1.bf16.msra.mxu0 0
        %414 = vmatprep.subr.bf16.mxu0 0
        %415 = vmatpush1.bf16.msra.mxu0 %v398
        %416 = vmatprep.subr.bf16.mxu0 0
        %417 = vmatpush2.bf16.msra.mxu0 0
        %418 = vmatprep.subr.bf16.mxu0 0
        %419 = vmatpush2.bf16.msra.mxu0 0
        %420 = vmatprep.subr.bf16.mxu0 0
        %421 = vmatpush2.bf16.msra.mxu0 0
        %422 = vmatprep.subr.bf16.mxu0 0
        %423 = vmatpush2.bf16.msra.mxu0 0
        %424 = vmatprep.subr.bf16.mxu0 0
        %425 = vmatpush2.bf16.msra.mxu0 0
        %426 = vmatprep.subr.bf16.mxu0 0
        %427 = vmatpush2.bf16.msra.mxu0 0
        %428 = vmatprep.subr.bf16.mxu0 0
        %429 = vmatpush2.bf16.msra.mxu0 0
        %430 = vmatprep.subr.bf16.mxu0 0
        %431 = vmatpush2.bf16.msra.mxu0 0
        %432 = vmatprep.mubr.bf16.mxu0 0
        %433 = vmatmul.mubr.bf16.gmra.mxu0 %v385
        %v434 = vpop.f32.mrf.mxu0
        %v435 = vadd.f32 %v381, %v434
        %v436 = vpop.f32.mrf.mxu0
        %v437 = vpop.f32.mrf.mxu0
        %v438 = vadd.f32 %v381, %v437
        %v439 = vpop.f32.mrf.mxu0
        %440 = vmatprep.mubr.bf16.mxu0 0
        %441 = vmatmul.mubr.bf16.gmra.mxu0 %v388
        %v442 = vpop.f32.mrf.mxu0
        %v443 = vadd.f32 %v381, %v442
        %v444 = vpop.f32.mrf.mxu0
        %v445 = vpop.f32.mrf.mxu0
        %v446 = vadd.f32 %v381, %v445
        %v447 = vpop.f32.mrf.mxu0
        %448 = vmatprep.mubr.bf16.mxu0 0
        %449 = vmatmul.mubr.bf16.gmra.mxu0 %v391
        %v450 = vpop.f32.mrf.mxu0
        %v451 = vadd.f32 %v381, %v450
        %v452 = vpop.f32.mrf.mxu0
        %v453 = vpop.f32.mrf.mxu0
        %v454 = vadd.f32 %v381, %v453
        %v455 = vpop.f32.mrf.mxu0
        %456 = vmatprep.mubr.bf16.mxu0 0
        %457 = vmatmul.mubr.bf16.gmra.mxu0 %v394
        %v458 = vpop.f32.mrf.mxu0
        %v459 = vadd.f32 %v381, %v458
        %v460 = vpop.f32.mrf.mxu0
        %v461 = vpop.f32.mrf.mxu0
        %v462 = vadd.f32 %v381, %v461
        %v463 = vpop.f32.mrf.mxu0
        %464 = vdwg.mxu0
        %v473 = vcombine.high %v435, %v435
        %v475 = vunpack.c.l.s4 1966171168
        %v476 = vunpack.c.0.s8 %v475
        %v477 = vlaneseq
        %v478 = vshrl.u32 %v477, 7
        %v479 = vsub.s32 %v476, %v478
        %v480 = vrot.slane %v435, %v479
        %v482 = vunpack.c.l.s4 1966171168
        %v483 = vunpack.c.0.s8 %v482
        %v484 = vlaneseq
        %v485 = vshrl.u32 %v484, 7
        %v486 = vsub.s32 %v483, %v485
        %v487 = vrot.slane %v473, %v486
        %v488 = vcombine.high %v480, %v480
        %v489 = vcombine.high %v487, %v487
        %v491 = vunpack.c.l.s4 1966171168
        %v492 = vunpack.c.0.s8 %v491
        %v493 = vlaneseq
        %v494 = vshrl.u32 %v493, 7
        %v495 = vsub.s32 %v492, %v494
        %v496 = vrot.slane %v480, %v495
        %v498 = vunpack.c.l.s4 1966171168
        %v499 = vunpack.c.0.s8 %v498
        %v500 = vlaneseq
        %v501 = vshrl.u32 %v500, 7
        %v502 = vsub.s32 %v499, %v501
        %v503 = vrot.slane %v487, %v502
        %v505 = vunpack.c.l.s4 1966171168
        %v506 = vunpack.c.0.s8 %v505
        %v507 = vlaneseq
        %v508 = vshrl.u32 %v507, 7
        %v509 = vsub.s32 %v506, %v508
        %v510 = vrot.slane %v488, %v509
        %v512 = vunpack.c.l.s4 1966171168
        %v513 = vunpack.c.0.s8 %v512
        %v514 = vlaneseq
        %v515 = vshrl.u32 %v514, 7
        %v516 = vsub.s32 %v513, %v515
        %v517 = vrot.slane %v489, %v516
        %v518 = vcombine.high %v496, %v496
        %v519 = vcombine.high %v503, %v503
        %v520 = vcombine.high %v510, %v510
        %v521 = vcombine.high %v517, %v517
        %v522 = vcombine.high %v438, %v438
        %v524 = vunpack.c.l.s4 1966171168
        %v525 = vunpack.c.0.s8 %v524
        %v526 = vlaneseq
        %v527 = vshrl.u32 %v526, 7
        %v528 = vsub.s32 %v525, %v527
        %v529 = vrot.slane %v438, %v528
        %v531 = vunpack.c.l.s4 1966171168
        %v532 = vunpack.c.0.s8 %v531
        %v533 = vlaneseq
        %v534 = vshrl.u32 %v533, 7
        %v535 = vsub.s32 %v532, %v534
        %v536 = vrot.slane %v522, %v535
        %v537 = vcombine.high %v529, %v529
        %v538 = vcombine.high %v536, %v536
        %v540 = vunpack.c.l.s4 1966171168
        %v541 = vunpack.c.0.s8 %v540
        %v542 = vlaneseq
        %v543 = vshrl.u32 %v542, 7
        %v544 = vsub.s32 %v541, %v543
        %v545 = vrot.slane %v529, %v544
        %v547 = vunpack.c.l.s4 1966171168
        %v548 = vunpack.c.0.s8 %v547
        %v549 = vlaneseq
        %v550 = vshrl.u32 %v549, 7
        %v551 = vsub.s32 %v548, %v550
        %v552 = vrot.slane %v536, %v551
        %v554 = vunpack.c.l.s4 1966171168
        %v555 = vunpack.c.0.s8 %v554
        %v556 = vlaneseq
        %v557 = vshrl.u32 %v556, 7
        %v558 = vsub.s32 %v555, %v557
        %v559 = vrot.slane %v537, %v558
        %v561 = vunpack.c.l.s4 1966171168
        %v562 = vunpack.c.0.s8 %v561
        %v563 = vlaneseq
        %v564 = vshrl.u32 %v563, 7
        %v565 = vsub.s32 %v562, %v564
        %v566 = vrot.slane %v538, %v565
        %v567 = vcombine.high %v545, %v545
        %v568 = vcombine.high %v552, %v552
        %v569 = vcombine.high %v559, %v559
        %v570 = vcombine.high %v566, %v566
        %v571 = vcombine.high %v443, %v443
        %v573 = vunpack.c.l.s4 1966171168
        %v574 = vunpack.c.0.s8 %v573
        %v575 = vlaneseq
        %v576 = vshrl.u32 %v575, 7
        %v577 = vsub.s32 %v574, %v576
        %v578 = vrot.slane %v443, %v577
        %v580 = vunpack.c.l.s4 1966171168
        %v581 = vunpack.c.0.s8 %v580
        %v582 = vlaneseq
        %v583 = vshrl.u32 %v582, 7
        %v584 = vsub.s32 %v581, %v583
        %v585 = vrot.slane %v571, %v584
        %v586 = vcombine.high %v578, %v578
        %v587 = vcombine.high %v585, %v585
        %v589 = vunpack.c.l.s4 1966171168
        %v590 = vunpack.c.0.s8 %v589
        %v591 = vlaneseq
        %v592 = vshrl.u32 %v591, 7
        %v593 = vsub.s32 %v590, %v592
        %v594 = vrot.slane %v578, %v593
        %v596 = vunpack.c.l.s4 1966171168
        %v597 = vunpack.c.0.s8 %v596
        %v598 = vlaneseq
        %v599 = vshrl.u32 %v598, 7
        %v600 = vsub.s32 %v597, %v599
        %v601 = vrot.slane %v585, %v600
        %v603 = vunpack.c.l.s4 1966171168
        %v604 = vunpack.c.0.s8 %v603
        %v605 = vlaneseq
        %v606 = vshrl.u32 %v605, 7
        %v607 = vsub.s32 %v604, %v606
        %v608 = vrot.slane %v586, %v607
        %v610 = vunpack.c.l.s4 1966171168
        %v611 = vunpack.c.0.s8 %v610
        %v612 = vlaneseq
        %v613 = vshrl.u32 %v612, 7
        %v614 = vsub.s32 %v611, %v613
        %v615 = vrot.slane %v587, %v614
        %v616 = vcombine.high %v594, %v594
        %v617 = vcombine.high %v601, %v601
        %v618 = vcombine.high %v608, %v608
        %v619 = vcombine.high %v615, %v615
        %v620 = vcombine.high %v446, %v446
        %v622 = vunpack.c.l.s4 1966171168
        %v623 = vunpack.c.0.s8 %v622
        %v624 = vlaneseq
        %v625 = vshrl.u32 %v624, 7
        %v626 = vsub.s32 %v623, %v625
        %v627 = vrot.slane %v446, %v626
        %v629 = vunpack.c.l.s4 1966171168
        %v630 = vunpack.c.0.s8 %v629
        %v631 = vlaneseq
        %v632 = vshrl.u32 %v631, 7
        %v633 = vsub.s32 %v630, %v632
        %v634 = vrot.slane %v620, %v633
        %v635 = vcombine.high %v627, %v627
        %v636 = vcombine.high %v634, %v634
        %v638 = vunpack.c.l.s4 1966171168
        %v639 = vunpack.c.0.s8 %v638
        %v640 = vlaneseq
        %v641 = vshrl.u32 %v640, 7
        %v642 = vsub.s32 %v639, %v641
        %v643 = vrot.slane %v627, %v642
        %v645 = vunpack.c.l.s4 1966171168
        %v646 = vunpack.c.0.s8 %v645
        %v647 = vlaneseq
        %v648 = vshrl.u32 %v647, 7
        %v649 = vsub.s32 %v646, %v648
        %v650 = vrot.slane %v634, %v649
        %v652 = vunpack.c.l.s4 1966171168
        %v653 = vunpack.c.0.s8 %v652
        %v654 = vlaneseq
        %v655 = vshrl.u32 %v654, 7
        %v656 = vsub.s32 %v653, %v655
        %v657 = vrot.slane %v635, %v656
        %v659 = vunpack.c.l.s4 1966171168
        %v660 = vunpack.c.0.s8 %v659
        %v661 = vlaneseq
        %v662 = vshrl.u32 %v661, 7
        %v663 = vsub.s32 %v660, %v662
        %v664 = vrot.slane %v636, %v663
        %v665 = vcombine.high %v643, %v643
        %v666 = vcombine.high %v650, %v650
        %v667 = vcombine.high %v657, %v657
        %v668 = vcombine.high %v664, %v664
        %v669 = vcombine.high %v451, %v451
        %v671 = vunpack.c.l.s4 1966171168
        %v672 = vunpack.c.0.s8 %v671
        %v673 = vlaneseq
        %v674 = vshrl.u32 %v673, 7
        %v675 = vsub.s32 %v672, %v674
        %v676 = vrot.slane %v451, %v675
        %v678 = vunpack.c.l.s4 1966171168
        %v679 = vunpack.c.0.s8 %v678
        %v680 = vlaneseq
        %v681 = vshrl.u32 %v680, 7
        %v682 = vsub.s32 %v679, %v681
        %v683 = vrot.slane %v669, %v682
        %v684 = vcombine.high %v676, %v676
        %v685 = vcombine.high %v683, %v683
        %v687 = vunpack.c.l.s4 1966171168
        %v688 = vunpack.c.0.s8 %v687
        %v689 = vlaneseq
        %v690 = vshrl.u32 %v689, 7
        %v691 = vsub.s32 %v688, %v690
        %v692 = vrot.slane %v676, %v691
        %v694 = vunpack.c.l.s4 1966171168
        %v695 = vunpack.c.0.s8 %v694
        %v696 = vlaneseq
        %v697 = vshrl.u32 %v696, 7
        %v698 = vsub.s32 %v695, %v697
        %v699 = vrot.slane %v683, %v698
        %v701 = vunpack.c.l.s4 1966171168
        %v702 = vunpack.c.0.s8 %v701
        %v703 = vlaneseq
        %v704 = vshrl.u32 %v703, 7
        %v705 = vsub.s32 %v702, %v704
        %v706 = vrot.slane %v684, %v705
        %v708 = vunpack.c.l.s4 1966171168
        %v709 = vunpack.c.0.s8 %v708
        %v710 = vlaneseq
        %v711 = vshrl.u32 %v710, 7
        %v712 = vsub.s32 %v709, %v711
        %v713 = vrot.slane %v685, %v712
        %v714 = vcombine.high %v692, %v692
        %v715 = vcombine.high %v699, %v699
        %v716 = vcombine.high %v706, %v706
        %v717 = vcombine.high %v713, %v713
        %v718 = vcombine.high %v454, %v454
        %v720 = vunpack.c.l.s4 1966171168
        %v721 = vunpack.c.0.s8 %v720
        %v722 = vlaneseq
        %v723 = vshrl.u32 %v722, 7
        %v724 = vsub.s32 %v721, %v723
        %v725 = vrot.slane %v454, %v724
        %v727 = vunpack.c.l.s4 1966171168
        %v728 = vunpack.c.0.s8 %v727
        %v729 = vlaneseq
        %v730 = vshrl.u32 %v729, 7
        %v731 = vsub.s32 %v728, %v730
        %v732 = vrot.slane %v718, %v731
        %v733 = vcombine.high %v725, %v725
        %v734 = vcombine.high %v732, %v732
        %v736 = vunpack.c.l.s4 1966171168
        %v737 = vunpack.c.0.s8 %v736
        %v738 = vlaneseq
        %v739 = vshrl.u32 %v738, 7
        %v740 = vsub.s32 %v737, %v739
        %v741 = vrot.slane %v725, %v740
        %v743 = vunpack.c.l.s4 1966171168
        %v744 = vunpack.c.0.s8 %v743
        %v745 = vlaneseq
        %v746 = vshrl.u32 %v745, 7
        %v747 = vsub.s32 %v744, %v746
        %v748 = vrot.slane %v732, %v747
        %v750 = vunpack.c.l.s4 1966171168
        %v751 = vunpack.c.0.s8 %v750
        %v752 = vlaneseq
        %v753 = vshrl.u32 %v752, 7
        %v754 = vsub.s32 %v751, %v753
        %v755 = vrot.slane %v733, %v754
        %v757 = vunpack.c.l.s4 1966171168
        %v758 = vunpack.c.0.s8 %v757
        %v759 = vlaneseq
        %v760 = vshrl.u32 %v759, 7
        %v761 = vsub.s32 %v758, %v760
        %v762 = vrot.slane %v734, %v761
        %v763 = vcombine.high %v741, %v741
        %v764 = vcombine.high %v748, %v748
        %v765 = vcombine.high %v755, %v755
        %v766 = vcombine.high %v762, %v762
        %v767 = vcombine.high %v459, %v459
        %v769 = vunpack.c.l.s4 1966171168
        %v770 = vunpack.c.0.s8 %v769
        %v771 = vlaneseq
        %v772 = vshrl.u32 %v771, 7
        %v773 = vsub.s32 %v770, %v772
        %v774 = vrot.slane %v459, %v773
        %v776 = vunpack.c.l.s4 1966171168
        %v777 = vunpack.c.0.s8 %v776
        %v778 = vlaneseq
        %v779 = vshrl.u32 %v778, 7
        %v780 = vsub.s32 %v777, %v779
        %v781 = vrot.slane %v767, %v780
        %v782 = vcombine.high %v774, %v774
        %v783 = vcombine.high %v781, %v781
        %v785 = vunpack.c.l.s4 1966171168
        %v786 = vunpack.c.0.s8 %v785
        %v787 = vlaneseq
        %v788 = vshrl.u32 %v787, 7
        %v789 = vsub.s32 %v786, %v788
        %v790 = vrot.slane %v774, %v789
        %v792 = vunpack.c.l.s4 1966171168
        %v793 = vunpack.c.0.s8 %v792
        %v794 = vlaneseq
        %v795 = vshrl.u32 %v794, 7
        %v796 = vsub.s32 %v793, %v795
        %v797 = vrot.slane %v781, %v796
        %v799 = vunpack.c.l.s4 1966171168
        %v800 = vunpack.c.0.s8 %v799
        %v801 = vlaneseq
        %v802 = vshrl.u32 %v801, 7
        %v803 = vsub.s32 %v800, %v802
        %v804 = vrot.slane %v782, %v803
        %v806 = vunpack.c.l.s4 1966171168
        %v807 = vunpack.c.0.s8 %v806
        %v808 = vlaneseq
        %v809 = vshrl.u32 %v808, 7
        %v810 = vsub.s32 %v807, %v809
        %v811 = vrot.slane %v783, %v810
        %v812 = vcombine.high %v790, %v790
        %v813 = vcombine.high %v797, %v797
        %v814 = vcombine.high %v804, %v804
        %v815 = vcombine.high %v811, %v811
        %v816 = vcombine.high %v462, %v462
        %v818 = vunpack.c.l.s4 1966171168
        %v819 = vunpack.c.0.s8 %v818
        %v820 = vlaneseq
        %v821 = vshrl.u32 %v820, 7
        %v822 = vsub.s32 %v819, %v821
        %v823 = vrot.slane %v462, %v822
        %v825 = vunpack.c.l.s4 1966171168
        %v826 = vunpack.c.0.s8 %v825
        %v827 = vlaneseq
        %v828 = vshrl.u32 %v827, 7
        %v829 = vsub.s32 %v826, %v828
        %v830 = vrot.slane %v816, %v829
        %v831 = vcombine.high %v823, %v823
        %v832 = vcombine.high %v830, %v830
        %v834 = vunpack.c.l.s4 1966171168
        %v835 = vunpack.c.0.s8 %v834
        %v836 = vlaneseq
        %v837 = vshrl.u32 %v836, 7
        %v838 = vsub.s32 %v835, %v837
        %v839 = vrot.slane %v823, %v838
        %v841 = vunpack.c.l.s4 1966171168
        %v842 = vunpack.c.0.s8 %v841
        %v843 = vlaneseq
        %v844 = vshrl.u32 %v843, 7
        %v845 = vsub.s32 %v842, %v844
        %v846 = vrot.slane %v830, %v845
        %v848 = vunpack.c.l.s4 1966171168
        %v849 = vunpack.c.0.s8 %v848
        %v850 = vlaneseq
        %v851 = vshrl.u32 %v850, 7
        %v852 = vsub.s32 %v849, %v851
        %v853 = vrot.slane %v831, %v852
        %v855 = vunpack.c.l.s4 1966171168
        %v856 = vunpack.c.0.s8 %v855
        %v857 = vlaneseq
        %v858 = vshrl.u32 %v857, 7
        %v859 = vsub.s32 %v856, %v858
        %v860 = vrot.slane %v832, %v859
        %v861 = vcombine.high %v839, %v839
        %v862 = vcombine.high %v846, %v846
        %v863 = vcombine.high %v853, %v853
        %v864 = vcombine.high %v860, %v860
        %v929 = vlaneseq
        %v930 = vshrl.u32 %v929, 7
        %v931 = vsub.s32 0, %v930
        %v932 = vrot.slane %v496, %v931
        %v933 = vlaneseq
        %v934 = vshrl.u32 %v933, 7
        %v935 = vsub.s32 0, %v934
        %v936 = vrot.slane %v510, %v935
        %v937 = vlaneseq
        %v938 = vshrl.u32 %v937, 7
        %v939 = vsub.s32 0, %v938
        %v940 = vrot.slane %v518, %v939
        %v941 = vlaneseq
        %v942 = vshrl.u32 %v941, 7
        %v943 = vsub.s32 0, %v942
        %v944 = vrot.slane %v520, %v943
        %v945 = vlaneseq
        %v946 = vshrl.u32 %v945, 7
        %v947 = vsub.s32 0, %v946
        %v948 = vrot.slane %v503, %v947
        %v949 = vlaneseq
        %v950 = vshrl.u32 %v949, 7
        %v951 = vsub.s32 0, %v950
        %v952 = vrot.slane %v517, %v951
        %v953 = vlaneseq
        %v954 = vshrl.u32 %v953, 7
        %v955 = vsub.s32 0, %v954
        %v956 = vrot.slane %v519, %v955
        %v957 = vlaneseq
        %v958 = vshrl.u32 %v957, 7
        %v959 = vsub.s32 0, %v958
        %v960 = vrot.slane %v521, %v959
        %v961 = vlaneseq
        %v962 = vshrl.u32 %v961, 7
        %v963 = vsub.s32 0, %v962
        %v964 = vrot.slane %v545, %v963
        %v965 = vlaneseq
        %v966 = vshrl.u32 %v965, 7
        %v967 = vsub.s32 0, %v966
        %v968 = vrot.slane %v559, %v967
        %v969 = vlaneseq
        %v970 = vshrl.u32 %v969, 7
        %v971 = vsub.s32 0, %v970
        %v972 = vrot.slane %v567, %v971
        %v973 = vlaneseq
        %v974 = vshrl.u32 %v973, 7
        %v975 = vsub.s32 0, %v974
        %v976 = vrot.slane %v569, %v975
        %v977 = vlaneseq
        %v978 = vshrl.u32 %v977, 7
        %v979 = vsub.s32 0, %v978
        %v980 = vrot.slane %v552, %v979
        %v981 = vlaneseq
        %v982 = vshrl.u32 %v981, 7
        %v983 = vsub.s32 0, %v982
        %v984 = vrot.slane %v566, %v983
        %v985 = vlaneseq
        %v986 = vshrl.u32 %v985, 7
        %v987 = vsub.s32 0, %v986
        %v988 = vrot.slane %v568, %v987
        %v989 = vlaneseq
        %v990 = vshrl.u32 %v989, 7
        %v991 = vsub.s32 0, %v990
        %v992 = vrot.slane %v570, %v991
        %v993 = vlaneseq
        %v994 = vshrl.u32 %v993, 7
        %v995 = vsub.s32 0, %v994
        %v996 = vrot.slane %v594, %v995
        %v997 = vlaneseq
        %v998 = vshrl.u32 %v997, 7
        %v999 = vsub.s32 0, %v998
        %v1000 = vrot.slane %v608, %v999
        %v1001 = vlaneseq
        %v1002 = vshrl.u32 %v1001, 7
        %v1003 = vsub.s32 0, %v1002
        %v1004 = vrot.slane %v616, %v1003
        %v1005 = vlaneseq
        %v1006 = vshrl.u32 %v1005, 7
        %v1007 = vsub.s32 0, %v1006
        %v1008 = vrot.slane %v618, %v1007
        %v1009 = vlaneseq
        %v1010 = vshrl.u32 %v1009, 7
        %v1011 = vsub.s32 0, %v1010
        %v1012 = vrot.slane %v601, %v1011
        %v1013 = vlaneseq
        %v1014 = vshrl.u32 %v1013, 7
        %v1015 = vsub.s32 0, %v1014
        %v1016 = vrot.slane %v615, %v1015
        %v1017 = vlaneseq
        %v1018 = vshrl.u32 %v1017, 7
        %v1019 = vsub.s32 0, %v1018
        %v1020 = vrot.slane %v617, %v1019
        %v1021 = vlaneseq
        %v1022 = vshrl.u32 %v1021, 7
        %v1023 = vsub.s32 0, %v1022
        %v1024 = vrot.slane %v619, %v1023
        %v1025 = vlaneseq
        %v1026 = vshrl.u32 %v1025, 7
        %v1027 = vsub.s32 0, %v1026
        %v1028 = vrot.slane %v643, %v1027
        %v1029 = vlaneseq
        %v1030 = vshrl.u32 %v1029, 7
        %v1031 = vsub.s32 0, %v1030
        %v1032 = vrot.slane %v657, %v1031
        %v1033 = vlaneseq
        %v1034 = vshrl.u32 %v1033, 7
        %v1035 = vsub.s32 0, %v1034
        %v1036 = vrot.slane %v665, %v1035
        %v1037 = vlaneseq
        %v1038 = vshrl.u32 %v1037, 7
        %v1039 = vsub.s32 0, %v1038
        %v1040 = vrot.slane %v667, %v1039
        %v1041 = vlaneseq
        %v1042 = vshrl.u32 %v1041, 7
        %v1043 = vsub.s32 0, %v1042
        %v1044 = vrot.slane %v650, %v1043
        %v1045 = vlaneseq
        %v1046 = vshrl.u32 %v1045, 7
        %v1047 = vsub.s32 0, %v1046
        %v1048 = vrot.slane %v664, %v1047
        %v1049 = vlaneseq
        %v1050 = vshrl.u32 %v1049, 7
        %v1051 = vsub.s32 0, %v1050
        %v1052 = vrot.slane %v666, %v1051
        %v1053 = vlaneseq
        %v1054 = vshrl.u32 %v1053, 7
        %v1055 = vsub.s32 0, %v1054
        %v1056 = vrot.slane %v668, %v1055
        %v1057 = vlaneseq
        %v1058 = vshrl.u32 %v1057, 7
        %v1059 = vsub.s32 0, %v1058
        %v1060 = vrot.slane %v692, %v1059
        %v1061 = vlaneseq
        %v1062 = vshrl.u32 %v1061, 7
        %v1063 = vsub.s32 0, %v1062
        %v1064 = vrot.slane %v706, %v1063
        %v1065 = vlaneseq
        %v1066 = vshrl.u32 %v1065, 7
        %v1067 = vsub.s32 0, %v1066
        %v1068 = vrot.slane %v714, %v1067
        %v1069 = vlaneseq
        %v1070 = vshrl.u32 %v1069, 7
        %v1071 = vsub.s32 0, %v1070
        %v1072 = vrot.slane %v716, %v1071
        %v1073 = vlaneseq
        %v1074 = vshrl.u32 %v1073, 7
        %v1075 = vsub.s32 0, %v1074
        %v1076 = vrot.slane %v699, %v1075
        %v1077 = vlaneseq
        %v1078 = vshrl.u32 %v1077, 7
        %v1079 = vsub.s32 0, %v1078
        %v1080 = vrot.slane %v713, %v1079
        %v1081 = vlaneseq
        %v1082 = vshrl.u32 %v1081, 7
        %v1083 = vsub.s32 0, %v1082
        %v1084 = vrot.slane %v715, %v1083
        %v1085 = vlaneseq
        %v1086 = vshrl.u32 %v1085, 7
        %v1087 = vsub.s32 0, %v1086
        %v1088 = vrot.slane %v717, %v1087
        %v1089 = vlaneseq
        %v1090 = vshrl.u32 %v1089, 7
        %v1091 = vsub.s32 0, %v1090
        %v1092 = vrot.slane %v741, %v1091
        %v1093 = vlaneseq
        %v1094 = vshrl.u32 %v1093, 7
        %v1095 = vsub.s32 0, %v1094
        %v1096 = vrot.slane %v755, %v1095
        %v1097 = vlaneseq
        %v1098 = vshrl.u32 %v1097, 7
        %v1099 = vsub.s32 0, %v1098
        %v1100 = vrot.slane %v763, %v1099
        %v1101 = vlaneseq
        %v1102 = vshrl.u32 %v1101, 7
        %v1103 = vsub.s32 0, %v1102
        %v1104 = vrot.slane %v765, %v1103
        %v1105 = vlaneseq
        %v1106 = vshrl.u32 %v1105, 7
        %v1107 = vsub.s32 0, %v1106
        %v1108 = vrot.slane %v748, %v1107
        %v1109 = vlaneseq
        %v1110 = vshrl.u32 %v1109, 7
        %v1111 = vsub.s32 0, %v1110
        %v1112 = vrot.slane %v762, %v1111
        %v1113 = vlaneseq
        %v1114 = vshrl.u32 %v1113, 7
        %v1115 = vsub.s32 0, %v1114
        %v1116 = vrot.slane %v764, %v1115
        %v1117 = vlaneseq
        %v1118 = vshrl.u32 %v1117, 7
        %v1119 = vsub.s32 0, %v1118
        %v1120 = vrot.slane %v766, %v1119
        %v1121 = vlaneseq
        %v1122 = vshrl.u32 %v1121, 7
        %v1123 = vsub.s32 0, %v1122
        %v1124 = vrot.slane %v790, %v1123
        %v1125 = vlaneseq
        %v1126 = vshrl.u32 %v1125, 7
        %v1127 = vsub.s32 0, %v1126
        %v1128 = vrot.slane %v804, %v1127
        %v1129 = vlaneseq
        %v1130 = vshrl.u32 %v1129, 7
        %v1131 = vsub.s32 0, %v1130
        %v1132 = vrot.slane %v812, %v1131
        %v1133 = vlaneseq
        %v1134 = vshrl.u32 %v1133, 7
        %v1135 = vsub.s32 0, %v1134
        %v1136 = vrot.slane %v814, %v1135
        %v1137 = vlaneseq
        %v1138 = vshrl.u32 %v1137, 7
        %v1139 = vsub.s32 0, %v1138
        %v1140 = vrot.slane %v797, %v1139
        %v1141 = vlaneseq
        %v1142 = vshrl.u32 %v1141, 7
        %v1143 = vsub.s32 0, %v1142
        %v1144 = vrot.slane %v811, %v1143
        %v1145 = vlaneseq
        %v1146 = vshrl.u32 %v1145, 7
        %v1147 = vsub.s32 0, %v1146
        %v1148 = vrot.slane %v813, %v1147
        %v1149 = vlaneseq
        %v1150 = vshrl.u32 %v1149, 7
        %v1151 = vsub.s32 0, %v1150
        %v1152 = vrot.slane %v815, %v1151
        %v1153 = vlaneseq
        %v1154 = vshrl.u32 %v1153, 7
        %v1155 = vsub.s32 0, %v1154
        %v1156 = vrot.slane %v839, %v1155
        %v1157 = vlaneseq
        %v1158 = vshrl.u32 %v1157, 7
        %v1159 = vsub.s32 0, %v1158
        %v1160 = vrot.slane %v853, %v1159
        %v1161 = vlaneseq
        %v1162 = vshrl.u32 %v1161, 7
        %v1163 = vsub.s32 0, %v1162
        %v1164 = vrot.slane %v861, %v1163
        %v1165 = vlaneseq
        %v1166 = vshrl.u32 %v1165, 7
        %v1167 = vsub.s32 0, %v1166
        %v1168 = vrot.slane %v863, %v1167
        %v1169 = vlaneseq
        %v1170 = vshrl.u32 %v1169, 7
        %v1171 = vsub.s32 0, %v1170
        %v1172 = vrot.slane %v846, %v1171
        %v1173 = vlaneseq
        %v1174 = vshrl.u32 %v1173, 7
        %v1175 = vsub.s32 0, %v1174
        %v1176 = vrot.slane %v860, %v1175
        %v1177 = vlaneseq
        %v1178 = vshrl.u32 %v1177, 7
        %v1179 = vsub.s32 0, %v1178
        %v1180 = vrot.slane %v862, %v1179
        %v1181 = vlaneseq
        %v1182 = vshrl.u32 %v1181, 7
        %v1183 = vsub.s32 0, %v1182
        %v1184 = vrot.slane %v864, %v1183
        %1185 = vrot.lane.b32.xlu0 %v932, 120
        %v1186 = vpop.permute.xlu0 %1185
        %1187 = vrot.lane.b32.xlu0 %v936, 120
        %v1188 = vpop.permute.xlu0 %1187
        %1189 = vrot.lane.b32.xlu0 %v940, 120
        %v1190 = vpop.permute.xlu0 %1189
        %1191 = vrot.lane.b32.xlu0 %v944, 120
        %v1192 = vpop.permute.xlu0 %1191
        %1193 = vrot.lane.b32.xlu0 %v948, 120
        %v1194 = vpop.permute.xlu0 %1193
        %1195 = vrot.lane.b32.xlu0 %v952, 120
        %v1196 = vpop.permute.xlu0 %1195
        %1197 = vrot.lane.b32.xlu0 %v956, 120
        %v1198 = vpop.permute.xlu0 %1197
        %1199 = vrot.lane.b32.xlu0 %v960, 120
        %v1200 = vpop.permute.xlu0 %1199
        %1201 = vrot.lane.b32.xlu0 %v964, 120
        %v1202 = vpop.permute.xlu0 %1201
        %1203 = vrot.lane.b32.xlu0 %v968, 120
        %v1204 = vpop.permute.xlu0 %1203
        %1205 = vrot.lane.b32.xlu0 %v972, 120
        %v1206 = vpop.permute.xlu0 %1205
        %1207 = vrot.lane.b32.xlu0 %v976, 120
        %v1208 = vpop.permute.xlu0 %1207
        %1209 = vrot.lane.b32.xlu0 %v980, 120
        %v1210 = vpop.permute.xlu0 %1209
        %1211 = vrot.lane.b32.xlu0 %v984, 120
        %v1212 = vpop.permute.xlu0 %1211
        %1213 = vrot.lane.b32.xlu0 %v988, 120
        %v1214 = vpop.permute.xlu0 %1213
        %1215 = vrot.lane.b32.xlu0 %v992, 120
        %v1216 = vpop.permute.xlu0 %1215
        %1217 = vrot.lane.b32.xlu0 %v996, 120
        %v1218 = vpop.permute.xlu0 %1217
        %1219 = vrot.lane.b32.xlu0 %v1000, 120
        %v1220 = vpop.permute.xlu0 %1219
        %1221 = vrot.lane.b32.xlu0 %v1004, 120
        %v1222 = vpop.permute.xlu0 %1221
        %1223 = vrot.lane.b32.xlu0 %v1008, 120
        %v1224 = vpop.permute.xlu0 %1223
        %1225 = vrot.lane.b32.xlu0 %v1012, 120
        %v1226 = vpop.permute.xlu0 %1225
        %1227 = vrot.lane.b32.xlu0 %v1016, 120
        %v1228 = vpop.permute.xlu0 %1227
        %1229 = vrot.lane.b32.xlu0 %v1020, 120
        %v1230 = vpop.permute.xlu0 %1229
        %1231 = vrot.lane.b32.xlu0 %v1024, 120
        %v1232 = vpop.permute.xlu0 %1231
        %1233 = vrot.lane.b32.xlu0 %v1028, 120
        %v1234 = vpop.permute.xlu0 %1233
        %1235 = vrot.lane.b32.xlu0 %v1032, 120
        %v1236 = vpop.permute.xlu0 %1235
        %1237 = vrot.lane.b32.xlu0 %v1036, 120
        %v1238 = vpop.permute.xlu0 %1237
        %1239 = vrot.lane.b32.xlu0 %v1040, 120
        %v1240 = vpop.permute.xlu0 %1239
        %1241 = vrot.lane.b32.xlu0 %v1044, 120
        %v1242 = vpop.permute.xlu0 %1241
        %1243 = vrot.lane.b32.xlu0 %v1048, 120
        %v1244 = vpop.permute.xlu0 %1243
        %1245 = vrot.lane.b32.xlu0 %v1052, 120
        %v1246 = vpop.permute.xlu0 %1245
        %1247 = vrot.lane.b32.xlu0 %v1056, 120
        %v1248 = vpop.permute.xlu0 %1247
        %1249 = vrot.lane.b32.xlu0 %v1060, 120
        %v1250 = vpop.permute.xlu0 %1249
        %1251 = vrot.lane.b32.xlu0 %v1064, 120
        %v1252 = vpop.permute.xlu0 %1251
        %1253 = vrot.lane.b32.xlu0 %v1068, 120
        %v1254 = vpop.permute.xlu0 %1253
        %1255 = vrot.lane.b32.xlu0 %v1072, 120
        %v1256 = vpop.permute.xlu0 %1255
        %1257 = vrot.lane.b32.xlu0 %v1076, 120
        %v1258 = vpop.permute.xlu0 %1257
        %1259 = vrot.lane.b32.xlu0 %v1080, 120
        %v1260 = vpop.permute.xlu0 %1259
        %1261 = vrot.lane.b32.xlu0 %v1084, 120
        %v1262 = vpop.permute.xlu0 %1261
        %1263 = vrot.lane.b32.xlu0 %v1088, 120
        %v1264 = vpop.permute.xlu0 %1263
        %1265 = vrot.lane.b32.xlu0 %v1092, 120
        %v1266 = vpop.permute.xlu0 %1265
        %1267 = vrot.lane.b32.xlu0 %v1096, 120
        %v1268 = vpop.permute.xlu0 %1267
        %1269 = vrot.lane.b32.xlu0 %v1100, 120
        %v1270 = vpop.permute.xlu0 %1269
        %1271 = vrot.lane.b32.xlu0 %v1104, 120
        %v1272 = vpop.permute.xlu0 %1271
        %1273 = vrot.lane.b32.xlu0 %v1108, 120
        %v1274 = vpop.permute.xlu0 %1273
        %1275 = vrot.lane.b32.xlu0 %v1112, 120
        %v1276 = vpop.permute.xlu0 %1275
        %1277 = vrot.lane.b32.xlu0 %v1116, 120
        %v1278 = vpop.permute.xlu0 %1277
        %1279 = vrot.lane.b32.xlu0 %v1120, 120
        %v1280 = vpop.permute.xlu0 %1279
        %1281 = vrot.lane.b32.xlu0 %v1124, 120
        %v1282 = vpop.permute.xlu0 %1281
        %1283 = vrot.lane.b32.xlu0 %v1128, 120
        %v1284 = vpop.permute.xlu0 %1283
        %1285 = vrot.lane.b32.xlu0 %v1132, 120
        %v1286 = vpop.permute.xlu0 %1285
        %1287 = vrot.lane.b32.xlu0 %v1136, 120
        %v1288 = vpop.permute.xlu0 %1287
        %1289 = vrot.lane.b32.xlu0 %v1140, 120
        %v1290 = vpop.permute.xlu0 %1289
        %1291 = vrot.lane.b32.xlu0 %v1144, 120
        %v1292 = vpop.permute.xlu0 %1291
        %1293 = vrot.lane.b32.xlu0 %v1148, 120
        %v1294 = vpop.permute.xlu0 %1293
        %1295 = vrot.lane.b32.xlu0 %v1152, 120
        %v1296 = vpop.permute.xlu0 %1295
        %1297 = vrot.lane.b32.xlu0 %v1156, 120
        %v1298 = vpop.permute.xlu0 %1297
        %1299 = vrot.lane.b32.xlu0 %v1160, 120
        %v1300 = vpop.permute.xlu0 %1299
        %1301 = vrot.lane.b32.xlu0 %v1164, 120
        %v1302 = vpop.permute.xlu0 %1301
        %1303 = vrot.lane.b32.xlu0 %v1168, 120
        %v1304 = vpop.permute.xlu0 %1303
        %1305 = vrot.lane.b32.xlu0 %v1172, 120
        %v1306 = vpop.permute.xlu0 %1305
        %1307 = vrot.lane.b32.xlu0 %v1176, 120
        %v1308 = vpop.permute.xlu0 %1307
        %1309 = vrot.lane.b32.xlu0 %v1180, 120
        %v1310 = vpop.permute.xlu0 %1309
        %1311 = vrot.lane.b32.xlu0 %v1184, 120
        %v1312 = vpop.permute.xlu0 %1311
        %vm1377 = vcmask 1040384
        %v1378 = vsel %vm1377, %v496, %v1186
        %v1379 = vsel %vm1377, %v510, %v1188
        %v1380 = vsel %vm1377, %v518, %v1190
        %v1381 = vsel %vm1377, %v520, %v1192
        %v1382 = vsel %vm1377, %v503, %v1194
        %v1383 = vsel %vm1377, %v517, %v1196
        %v1384 = vsel %vm1377, %v519, %v1198
        %v1385 = vsel %vm1377, %v521, %v1200
        %v1386 = vsel %vm1377, %v545, %v1202
        %v1387 = vsel %vm1377, %v559, %v1204
        %v1388 = vsel %vm1377, %v567, %v1206
        %v1389 = vsel %vm1377, %v569, %v1208
        %v1390 = vsel %vm1377, %v552, %v1210
        %v1391 = vsel %vm1377, %v566, %v1212
        %v1392 = vsel %vm1377, %v568, %v1214
        %v1393 = vsel %vm1377, %v570, %v1216
        %v1394 = vsel %vm1377, %v594, %v1218
        %v1395 = vsel %vm1377, %v608, %v1220
        %v1396 = vsel %vm1377, %v616, %v1222
        %v1397 = vsel %vm1377, %v618, %v1224
        %v1398 = vsel %vm1377, %v601, %v1226
        %v1399 = vsel %vm1377, %v615, %v1228
        %v1400 = vsel %vm1377, %v617, %v1230
        %v1401 = vsel %vm1377, %v619, %v1232
        %v1402 = vsel %vm1377, %v643, %v1234
        %v1403 = vsel %vm1377, %v657, %v1236
        %v1404 = vsel %vm1377, %v665, %v1238
        %v1405 = vsel %vm1377, %v667, %v1240
        %v1406 = vsel %vm1377, %v650, %v1242
        %v1407 = vsel %vm1377, %v664, %v1244
        %v1408 = vsel %vm1377, %v666, %v1246
        %v1409 = vsel %vm1377, %v668, %v1248
        %v1410 = vsel %vm1377, %v692, %v1250
        %v1411 = vsel %vm1377, %v706, %v1252
        %v1412 = vsel %vm1377, %v714, %v1254
        %v1413 = vsel %vm1377, %v716, %v1256
        %v1414 = vsel %vm1377, %v699, %v1258
        %v1415 = vsel %vm1377, %v713, %v1260
        %v1416 = vsel %vm1377, %v715, %v1262
        %v1417 = vsel %vm1377, %v717, %v1264
        %v1418 = vsel %vm1377, %v741, %v1266
        %v1419 = vsel %vm1377, %v755, %v1268
        %v1420 = vsel %vm1377, %v763, %v1270
        %v1421 = vsel %vm1377, %v765, %v1272
        %v1422 = vsel %vm1377, %v748, %v1274
        %v1423 = vsel %vm1377, %v762, %v1276
        %v1424 = vsel %vm1377, %v764, %v1278
        %v1425 = vsel %vm1377, %v766, %v1280
        %v1426 = vsel %vm1377, %v790, %v1282
        %v1427 = vsel %vm1377, %v804, %v1284
        %v1428 = vsel %vm1377, %v812, %v1286
        %v1429 = vsel %vm1377, %v814, %v1288
        %v1430 = vsel %vm1377, %v797, %v1290
        %v1431 = vsel %vm1377, %v811, %v1292
        %v1432 = vsel %vm1377, %v813, %v1294
        %v1433 = vsel %vm1377, %v815, %v1296
        %v1434 = vsel %vm1377, %v839, %v1298
        %v1435 = vsel %vm1377, %v853, %v1300
        %v1436 = vsel %vm1377, %v861, %v1302
        %v1437 = vsel %vm1377, %v863, %v1304
        %v1438 = vsel %vm1377, %v846, %v1306
        %v1439 = vsel %vm1377, %v860, %v1308
        %v1440 = vsel %vm1377, %v862, %v1310
        %v1441 = vsel %vm1377, %v864, %v1312
        %1506 = vrot.lane.b32.xlu0 %v1378, 112
        %v1507 = vpop.permute.xlu0 %1506
        %1508 = vrot.lane.b32.xlu0 %v1379, 112
        %v1509 = vpop.permute.xlu0 %1508
        %1510 = vrot.lane.b32.xlu0 %v1380, 112
        %v1511 = vpop.permute.xlu0 %1510
        %1512 = vrot.lane.b32.xlu0 %v1381, 112
        %v1513 = vpop.permute.xlu0 %1512
        %1514 = vrot.lane.b32.xlu0 %v1382, 112
        %v1515 = vpop.permute.xlu0 %1514
        %1516 = vrot.lane.b32.xlu0 %v1383, 112
        %v1517 = vpop.permute.xlu0 %1516
        %1518 = vrot.lane.b32.xlu0 %v1384, 112
        %v1519 = vpop.permute.xlu0 %1518
        %1520 = vrot.lane.b32.xlu0 %v1385, 112
        %v1521 = vpop.permute.xlu0 %1520
        %1522 = vrot.lane.b32.xlu0 %v1386, 112
        %v1523 = vpop.permute.xlu0 %1522
        %1524 = vrot.lane.b32.xlu0 %v1387, 112
        %v1525 = vpop.permute.xlu0 %1524
        %1526 = vrot.lane.b32.xlu0 %v1388, 112
        %v1527 = vpop.permute.xlu0 %1526
        %1528 = vrot.lane.b32.xlu0 %v1389, 112
        %v1529 = vpop.permute.xlu0 %1528
        %1530 = vrot.lane.b32.xlu0 %v1390, 112
        %v1531 = vpop.permute.xlu0 %1530
        %1532 = vrot.lane.b32.xlu0 %v1391, 112
        %v1533 = vpop.permute.xlu0 %1532
        %1534 = vrot.lane.b32.xlu0 %v1392, 112
        %v1535 = vpop.permute.xlu0 %1534
        %1536 = vrot.lane.b32.xlu0 %v1393, 112
        %v1537 = vpop.permute.xlu0 %1536
        %1538 = vrot.lane.b32.xlu0 %v1394, 112
        %v1539 = vpop.permute.xlu0 %1538
        %1540 = vrot.lane.b32.xlu0 %v1395, 112
        %v1541 = vpop.permute.xlu0 %1540
        %1542 = vrot.lane.b32.xlu0 %v1396, 112
        %v1543 = vpop.permute.xlu0 %1542
        %1544 = vrot.lane.b32.xlu0 %v1397, 112
        %v1545 = vpop.permute.xlu0 %1544
        %1546 = vrot.lane.b32.xlu0 %v1398, 112
        %v1547 = vpop.permute.xlu0 %1546
        %1548 = vrot.lane.b32.xlu0 %v1399, 112
        %v1549 = vpop.permute.xlu0 %1548
        %1550 = vrot.lane.b32.xlu0 %v1400, 112
        %v1551 = vpop.permute.xlu0 %1550
        %1552 = vrot.lane.b32.xlu0 %v1401, 112
        %v1553 = vpop.permute.xlu0 %1552
        %1554 = vrot.lane.b32.xlu0 %v1402, 112
        %v1555 = vpop.permute.xlu0 %1554
        %1556 = vrot.lane.b32.xlu0 %v1403, 112
        %v1557 = vpop.permute.xlu0 %1556
        %1558 = vrot.lane.b32.xlu0 %v1404, 112
        %v1559 = vpop.permute.xlu0 %1558
        %1560 = vrot.lane.b32.xlu0 %v1405, 112
        %v1561 = vpop.permute.xlu0 %1560
        %1562 = vrot.lane.b32.xlu0 %v1406, 112
        %v1563 = vpop.permute.xlu0 %1562
        %1564 = vrot.lane.b32.xlu0 %v1407, 112
        %v1565 = vpop.permute.xlu0 %1564
        %1566 = vrot.lane.b32.xlu0 %v1408, 112
        %v1567 = vpop.permute.xlu0 %1566
        %1568 = vrot.lane.b32.xlu0 %v1409, 112
        %v1569 = vpop.permute.xlu0 %1568
        %1570 = vrot.lane.b32.xlu0 %v1410, 112
        %v1571 = vpop.permute.xlu0 %1570
        %1572 = vrot.lane.b32.xlu0 %v1411, 112
        %v1573 = vpop.permute.xlu0 %1572
        %1574 = vrot.lane.b32.xlu0 %v1412, 112
        %v1575 = vpop.permute.xlu0 %1574
        %1576 = vrot.lane.b32.xlu0 %v1413, 112
        %v1577 = vpop.permute.xlu0 %1576
        %1578 = vrot.lane.b32.xlu0 %v1414, 112
        %v1579 = vpop.permute.xlu0 %1578
        %1580 = vrot.lane.b32.xlu0 %v1415, 112
        %v1581 = vpop.permute.xlu0 %1580
        %1582 = vrot.lane.b32.xlu0 %v1416, 112
        %v1583 = vpop.permute.xlu0 %1582
        %1584 = vrot.lane.b32.xlu0 %v1417, 112
        %v1585 = vpop.permute.xlu0 %1584
        %1586 = vrot.lane.b32.xlu0 %v1418, 112
        %v1587 = vpop.permute.xlu0 %1586
        %1588 = vrot.lane.b32.xlu0 %v1419, 112
        %v1589 = vpop.permute.xlu0 %1588
        %1590 = vrot.lane.b32.xlu0 %v1420, 112
        %v1591 = vpop.permute.xlu0 %1590
        %1592 = vrot.lane.b32.xlu0 %v1421, 112
        %v1593 = vpop.permute.xlu0 %1592
        %1594 = vrot.lane.b32.xlu0 %v1422, 112
        %v1595 = vpop.permute.xlu0 %1594
        %1596 = vrot.lane.b32.xlu0 %v1423, 112
        %v1597 = vpop.permute.xlu0 %1596
        %1598 = vrot.lane.b32.xlu0 %v1424, 112
        %v1599 = vpop.permute.xlu0 %1598
        %1600 = vrot.lane.b32.xlu0 %v1425, 112
        %v1601 = vpop.permute.xlu0 %1600
        %1602 = vrot.lane.b32.xlu0 %v1426, 112
        %v1603 = vpop.permute.xlu0 %1602
        %1604 = vrot.lane.b32.xlu0 %v1427, 112
        %v1605 = vpop.permute.xlu0 %1604
        %1606 = vrot.lane.b32.xlu0 %v1428, 112
        %v1607 = vpop.permute.xlu0 %1606
        %1608 = vrot.lane.b32.xlu0 %v1429, 112
        %v1609 = vpop.permute.xlu0 %1608
        %1610 = vrot.lane.b32.xlu0 %v1430, 112
        %v1611 = vpop.permute.xlu0 %1610
        %1612 = vrot.lane.b32.xlu0 %v1431, 112
        %v1613 = vpop.permute.xlu0 %1612
        %1614 = vrot.lane.b32.xlu0 %v1432, 112
        %v1615 = vpop.permute.xlu0 %1614
        %1616 = vrot.lane.b32.xlu0 %v1433, 112
        %v1617 = vpop.permute.xlu0 %1616
        %1618 = vrot.lane.b32.xlu0 %v1434, 112
        %v1619 = vpop.permute.xlu0 %1618
        %1620 = vrot.lane.b32.xlu0 %v1435, 112
        %v1621 = vpop.permute.xlu0 %1620
        %1622 = vrot.lane.b32.xlu0 %v1436, 112
        %v1623 = vpop.permute.xlu0 %1622
        %1624 = vrot.lane.b32.xlu0 %v1437, 112
        %v1625 = vpop.permute.xlu0 %1624
        %1626 = vrot.lane.b32.xlu0 %v1438, 112
        %v1627 = vpop.permute.xlu0 %1626
        %1628 = vrot.lane.b32.xlu0 %v1439, 112
        %v1629 = vpop.permute.xlu0 %1628
        %1630 = vrot.lane.b32.xlu0 %v1440, 112
        %v1631 = vpop.permute.xlu0 %1630
        %1632 = vrot.lane.b32.xlu0 %v1441, 112
        %v1633 = vpop.permute.xlu0 %1632
        %v1634 = vld [vmem:[%s336] sm:$0xff]
        %v1636 = vcombine.high %v1634, %v1634
        %1638 = vxpose.xlu0.b32.start [1/16] %v1634, 128
        %1639 = vxpose.xlu0.b32.cont [2/16] 0.0, 128
        %1640 = vxpose.xlu0.b32.cont [3/16] 0.0, 128
        %1641 = vxpose.xlu0.b32.cont [4/16] 0.0, 128
        %1642 = vxpose.xlu0.b32.cont [5/16] 0.0, 128
        %1643 = vxpose.xlu0.b32.cont [6/16] 0.0, 128
        %1644 = vxpose.xlu0.b32.cont [7/16] 0.0, 128
        %1645 = vxpose.xlu0.b32.cont [8/16] 0.0, 128
        %1646 = vxpose.xlu0.b32.cont [9/16] 0.0, 128
        %1647 = vxpose.xlu0.b32.cont [10/16] 0.0, 128
        %1648 = vxpose.xlu0.b32.cont [11/16] 0.0, 128
        %1649 = vxpose.xlu0.b32.cont [12/16] 0.0, 128
        %1650 = vxpose.xlu0.b32.cont [13/16] 0.0, 128
        %1651 = vxpose.xlu0.b32.cont [14/16] 0.0, 128
        %1652 = vxpose.xlu0.b32.cont [15/16] 0.0, 128
        %1653 = vxpose.xlu0.b32.end [16/16] 0.0, 128
        %v1654 = vpop.trf.xlu0
        %v1655 = vpop.trf.xlu0
        %v1656 = vpop.trf.xlu0
        %v1657 = vpop.trf.xlu0
        %v1658 = vpop.trf.xlu0
        %v1659 = vpop.trf.xlu0
        %v1660 = vpop.trf.xlu0
        %v1661 = vpop.trf.xlu0
        %v1662 = vpop.trf.xlu0
        %v1663 = vpop.trf.xlu0
        %v1664 = vpop.trf.xlu0
        %v1665 = vpop.trf.xlu0
        %v1666 = vpop.trf.xlu0
        %v1667 = vpop.trf.xlu0
        %v1668 = vpop.trf.xlu0
        %v1669 = vpop.trf.xlu0
        %1670 = vxpose.xlu0.b32.start [1/16] %v1636, 128
        %1671 = vxpose.xlu0.b32.cont [2/16] 0.0, 128
        %1672 = vxpose.xlu0.b32.cont [3/16] 0.0, 128
        %1673 = vxpose.xlu0.b32.cont [4/16] 0.0, 128
        %1674 = vxpose.xlu0.b32.cont [5/16] 0.0, 128
        %1675 = vxpose.xlu0.b32.cont [6/16] 0.0, 128
        %1676 = vxpose.xlu0.b32.cont [7/16] 0.0, 128
        %1677 = vxpose.xlu0.b32.cont [8/16] 0.0, 128
        %1678 = vxpose.xlu0.b32.cont [9/16] 0.0, 128
        %1679 = vxpose.xlu0.b32.cont [10/16] 0.0, 128
        %1680 = vxpose.xlu0.b32.cont [11/16] 0.0, 128
        %1681 = vxpose.xlu0.b32.cont [12/16] 0.0, 128
        %1682 = vxpose.xlu0.b32.cont [13/16] 0.0, 128
        %1683 = vxpose.xlu0.b32.cont [14/16] 0.0, 128
        %1684 = vxpose.xlu0.b32.cont [15/16] 0.0, 128
        %1685 = vxpose.xlu0.b32.end [16/16] 0.0, 128
        %v1686 = vpop.trf.xlu0
        %v1687 = vpop.trf.xlu0
        %v1688 = vpop.trf.xlu0
        %v1689 = vpop.trf.xlu0
        %v1690 = vpop.trf.xlu0
        %v1691 = vpop.trf.xlu0
        %v1692 = vpop.trf.xlu0
        %v1693 = vpop.trf.xlu0
        %v1694 = vpop.trf.xlu0
        %v1695 = vpop.trf.xlu0
        %v1696 = vpop.trf.xlu0
        %v1697 = vpop.trf.xlu0
        %v1698 = vpop.trf.xlu0
        %v1699 = vpop.trf.xlu0
        %v1700 = vpop.trf.xlu0
        %v1701 = vpop.trf.xlu0
        %v1702 = vcombine.low %v1378, %v1379
        %v1703 = vcombine.low %v1380, %v1381
        %v1705 = vunpack.c.l.s4 1983009808
        %v1706 = vunpack.c.0.s8 %v1705
        %v1707 = vlaneseq
        %v1708 = vshrl.u32 %v1707, 7
        %v1709 = vsub.s32 %v1706, %v1708
        %v1710 = vrot.slane %v1702, %v1709
        %v1712 = vunpack.c.l.s4 1983009808
        %v1713 = vunpack.c.0.s8 %v1712
        %v1714 = vlaneseq
        %v1715 = vshrl.u32 %v1714, 7
        %v1716 = vsub.s32 %v1713, %v1715
        %v1717 = vrot.slane %v1703, %v1716
        %v1718 = vcombine.low %v1710, %v1717
        %v1719 = vcombine.low %v1382, %v1383
        %v1720 = vcombine.low %v1384, %v1385
        %v1722 = vunpack.c.l.s4 1983009808
        %v1723 = vunpack.c.0.s8 %v1722
        %v1724 = vlaneseq
        %v1725 = vshrl.u32 %v1724, 7
        %v1726 = vsub.s32 %v1723, %v1725
        %v1727 = vrot.slane %v1719, %v1726
        %v1729 = vunpack.c.l.s4 1983009808
        %v1730 = vunpack.c.0.s8 %v1729
        %v1731 = vlaneseq
        %v1732 = vshrl.u32 %v1731, 7
        %v1733 = vsub.s32 %v1730, %v1732
        %v1734 = vrot.slane %v1720, %v1733
        %v1735 = vcombine.low %v1727, %v1734
        %v1736 = vcombine.low %v1507, %v1509
        %v1737 = vcombine.low %v1511, %v1513
        %v1739 = vunpack.c.l.s4 1983009808
        %v1740 = vunpack.c.0.s8 %v1739
        %v1741 = vlaneseq
        %v1742 = vshrl.u32 %v1741, 7
        %v1743 = vsub.s32 %v1740, %v1742
        %v1744 = vrot.slane %v1736, %v1743
        %v1746 = vunpack.c.l.s4 1983009808
        %v1747 = vunpack.c.0.s8 %v1746
        %v1748 = vlaneseq
        %v1749 = vshrl.u32 %v1748, 7
        %v1750 = vsub.s32 %v1747, %v1749
        %v1751 = vrot.slane %v1737, %v1750
        %v1752 = vcombine.low %v1744, %v1751
        %v1753 = vcombine.low %v1515, %v1517
        %v1754 = vcombine.low %v1519, %v1521
        %v1756 = vunpack.c.l.s4 1983009808
        %v1757 = vunpack.c.0.s8 %v1756
        %v1758 = vlaneseq
        %v1759 = vshrl.u32 %v1758, 7
        %v1760 = vsub.s32 %v1757, %v1759
        %v1761 = vrot.slane %v1753, %v1760
        %v1763 = vunpack.c.l.s4 1983009808
        %v1764 = vunpack.c.0.s8 %v1763
        %v1765 = vlaneseq
        %v1766 = vshrl.u32 %v1765, 7
        %v1767 = vsub.s32 %v1764, %v1766
        %v1768 = vrot.slane %v1754, %v1767
        %v1769 = vcombine.low %v1761, %v1768
        %v1770 = vcombine.low %v1386, %v1387
        %v1771 = vcombine.low %v1388, %v1389
        %v1773 = vunpack.c.l.s4 1983009808
        %v1774 = vunpack.c.0.s8 %v1773
        %v1775 = vlaneseq
        %v1776 = vshrl.u32 %v1775, 7
        %v1777 = vsub.s32 %v1774, %v1776
        %v1778 = vrot.slane %v1770, %v1777
        %v1780 = vunpack.c.l.s4 1983009808
        %v1781 = vunpack.c.0.s8 %v1780
        %v1782 = vlaneseq
        %v1783 = vshrl.u32 %v1782, 7
        %v1784 = vsub.s32 %v1781, %v1783
        %v1785 = vrot.slane %v1771, %v1784
        %v1786 = vcombine.low %v1778, %v1785
        %v1787 = vcombine.low %v1390, %v1391
        %v1788 = vcombine.low %v1392, %v1393
        %v1790 = vunpack.c.l.s4 1983009808
        %v1791 = vunpack.c.0.s8 %v1790
        %v1792 = vlaneseq
        %v1793 = vshrl.u32 %v1792, 7
        %v1794 = vsub.s32 %v1791, %v1793
        %v1795 = vrot.slane %v1787, %v1794
        %v1797 = vunpack.c.l.s4 1983009808
        %v1798 = vunpack.c.0.s8 %v1797
        %v1799 = vlaneseq
        %v1800 = vshrl.u32 %v1799, 7
        %v1801 = vsub.s32 %v1798, %v1800
        %v1802 = vrot.slane %v1788, %v1801
        %v1803 = vcombine.low %v1795, %v1802
        %v1804 = vcombine.low %v1523, %v1525
        %v1805 = vcombine.low %v1527, %v1529
        %v1807 = vunpack.c.l.s4 1983009808
        %v1808 = vunpack.c.0.s8 %v1807
        %v1809 = vlaneseq
        %v1810 = vshrl.u32 %v1809, 7
        %v1811 = vsub.s32 %v1808, %v1810
        %v1812 = vrot.slane %v1804, %v1811
        %v1814 = vunpack.c.l.s4 1983009808
        %v1815 = vunpack.c.0.s8 %v1814
        %v1816 = vlaneseq
        %v1817 = vshrl.u32 %v1816, 7
        %v1818 = vsub.s32 %v1815, %v1817
        %v1819 = vrot.slane %v1805, %v1818
        %v1820 = vcombine.low %v1812, %v1819
        %v1821 = vcombine.low %v1531, %v1533
        %v1822 = vcombine.low %v1535, %v1537
        %v1824 = vunpack.c.l.s4 1983009808
        %v1825 = vunpack.c.0.s8 %v1824
        %v1826 = vlaneseq
        %v1827 = vshrl.u32 %v1826, 7
        %v1828 = vsub.s32 %v1825, %v1827
        %v1829 = vrot.slane %v1821, %v1828
        %v1831 = vunpack.c.l.s4 1983009808
        %v1832 = vunpack.c.0.s8 %v1831
        %v1833 = vlaneseq
        %v1834 = vshrl.u32 %v1833, 7
        %v1835 = vsub.s32 %v1832, %v1834
        %v1836 = vrot.slane %v1822, %v1835
        %v1837 = vcombine.low %v1829, %v1836
        %v1838 = vcombine.low %v1394, %v1395
        %v1839 = vcombine.low %v1396, %v1397
        %v1841 = vunpack.c.l.s4 1983009808
        %v1842 = vunpack.c.0.s8 %v1841
        %v1843 = vlaneseq
        %v1844 = vshrl.u32 %v1843, 7
        %v1845 = vsub.s32 %v1842, %v1844
        %v1846 = vrot.slane %v1838, %v1845
        %v1848 = vunpack.c.l.s4 1983009808
        %v1849 = vunpack.c.0.s8 %v1848
        %v1850 = vlaneseq
        %v1851 = vshrl.u32 %v1850, 7
        %v1852 = vsub.s32 %v1849, %v1851
        %v1853 = vrot.slane %v1839, %v1852
        %v1854 = vcombine.low %v1846, %v1853
        %v1855 = vcombine.low %v1398, %v1399
        %v1856 = vcombine.low %v1400, %v1401
        %v1858 = vunpack.c.l.s4 1983009808
        %v1859 = vunpack.c.0.s8 %v1858
        %v1860 = vlaneseq
        %v1861 = vshrl.u32 %v1860, 7
        %v1862 = vsub.s32 %v1859, %v1861
        %v1863 = vrot.slane %v1855, %v1862
        %v1865 = vunpack.c.l.s4 1983009808
        %v1866 = vunpack.c.0.s8 %v1865
        %v1867 = vlaneseq
        %v1868 = vshrl.u32 %v1867, 7
        %v1869 = vsub.s32 %v1866, %v1868
        %v1870 = vrot.slane %v1856, %v1869
        %v1871 = vcombine.low %v1863, %v1870
        %v1872 = vcombine.low %v1539, %v1541
        %v1873 = vcombine.low %v1543, %v1545
        %v1875 = vunpack.c.l.s4 1983009808
        %v1876 = vunpack.c.0.s8 %v1875
        %v1877 = vlaneseq
        %v1878 = vshrl.u32 %v1877, 7
        %v1879 = vsub.s32 %v1876, %v1878
        %v1880 = vrot.slane %v1872, %v1879
        %v1882 = vunpack.c.l.s4 1983009808
        %v1883 = vunpack.c.0.s8 %v1882
        %v1884 = vlaneseq
        %v1885 = vshrl.u32 %v1884, 7
        %v1886 = vsub.s32 %v1883, %v1885
        %v1887 = vrot.slane %v1873, %v1886
        %v1888 = vcombine.low %v1880, %v1887
        %v1889 = vcombine.low %v1547, %v1549
        %v1890 = vcombine.low %v1551, %v1553
        %v1892 = vunpack.c.l.s4 1983009808
        %v1893 = vunpack.c.0.s8 %v1892
        %v1894 = vlaneseq
        %v1895 = vshrl.u32 %v1894, 7
        %v1896 = vsub.s32 %v1893, %v1895
        %v1897 = vrot.slane %v1889, %v1896
        %v1899 = vunpack.c.l.s4 1983009808
        %v1900 = vunpack.c.0.s8 %v1899
        %v1901 = vlaneseq
        %v1902 = vshrl.u32 %v1901, 7
        %v1903 = vsub.s32 %v1900, %v1902
        %v1904 = vrot.slane %v1890, %v1903
        %v1905 = vcombine.low %v1897, %v1904
        %v1906 = vcombine.low %v1402, %v1403
        %v1907 = vcombine.low %v1404, %v1405
        %v1909 = vunpack.c.l.s4 1983009808
        %v1910 = vunpack.c.0.s8 %v1909
        %v1911 = vlaneseq
        %v1912 = vshrl.u32 %v1911, 7
        %v1913 = vsub.s32 %v1910, %v1912
        %v1914 = vrot.slane %v1906, %v1913
        %v1916 = vunpack.c.l.s4 1983009808
        %v1917 = vunpack.c.0.s8 %v1916
        %v1918 = vlaneseq
        %v1919 = vshrl.u32 %v1918, 7
        %v1920 = vsub.s32 %v1917, %v1919
        %v1921 = vrot.slane %v1907, %v1920
        %v1922 = vcombine.low %v1914, %v1921
        %v1923 = vcombine.low %v1406, %v1407
        %v1924 = vcombine.low %v1408, %v1409
        %v1926 = vunpack.c.l.s4 1983009808
        %v1927 = vunpack.c.0.s8 %v1926
        %v1928 = vlaneseq
        %v1929 = vshrl.u32 %v1928, 7
        %v1930 = vsub.s32 %v1927, %v1929
        %v1931 = vrot.slane %v1923, %v1930
        %v1933 = vunpack.c.l.s4 1983009808
        %v1934 = vunpack.c.0.s8 %v1933
        %v1935 = vlaneseq
        %v1936 = vshrl.u32 %v1935, 7
        %v1937 = vsub.s32 %v1934, %v1936
        %v1938 = vrot.slane %v1924, %v1937
        %v1939 = vcombine.low %v1931, %v1938
        %v1940 = vcombine.low %v1555, %v1557
        %v1941 = vcombine.low %v1559, %v1561
        %v1943 = vunpack.c.l.s4 1983009808
        %v1944 = vunpack.c.0.s8 %v1943
        %v1945 = vlaneseq
        %v1946 = vshrl.u32 %v1945, 7
        %v1947 = vsub.s32 %v1944, %v1946
        %v1948 = vrot.slane %v1940, %v1947
        %v1950 = vunpack.c.l.s4 1983009808
        %v1951 = vunpack.c.0.s8 %v1950
        %v1952 = vlaneseq
        %v1953 = vshrl.u32 %v1952, 7
        %v1954 = vsub.s32 %v1951, %v1953
        %v1955 = vrot.slane %v1941, %v1954
        %v1956 = vcombine.low %v1948, %v1955
        %v1957 = vcombine.low %v1563, %v1565
        %v1958 = vcombine.low %v1567, %v1569
        %v1960 = vunpack.c.l.s4 1983009808
        %v1961 = vunpack.c.0.s8 %v1960
        %v1962 = vlaneseq
        %v1963 = vshrl.u32 %v1962, 7
        %v1964 = vsub.s32 %v1961, %v1963
        %v1965 = vrot.slane %v1957, %v1964
        %v1967 = vunpack.c.l.s4 1983009808
        %v1968 = vunpack.c.0.s8 %v1967
        %v1969 = vlaneseq
        %v1970 = vshrl.u32 %v1969, 7
        %v1971 = vsub.s32 %v1968, %v1970
        %v1972 = vrot.slane %v1958, %v1971
        %v1973 = vcombine.low %v1965, %v1972
        %v1974 = vcombine.low %v1410, %v1411
        %v1975 = vcombine.low %v1412, %v1413
        %v1977 = vunpack.c.l.s4 1983009808
        %v1978 = vunpack.c.0.s8 %v1977
        %v1979 = vlaneseq
        %v1980 = vshrl.u32 %v1979, 7
        %v1981 = vsub.s32 %v1978, %v1980
        %v1982 = vrot.slane %v1974, %v1981
        %v1984 = vunpack.c.l.s4 1983009808
        %v1985 = vunpack.c.0.s8 %v1984
        %v1986 = vlaneseq
        %v1987 = vshrl.u32 %v1986, 7
        %v1988 = vsub.s32 %v1985, %v1987
        %v1989 = vrot.slane %v1975, %v1988
        %v1990 = vcombine.low %v1982, %v1989
        %v1991 = vcombine.low %v1414, %v1415
        %v1992 = vcombine.low %v1416, %v1417
        %v1994 = vunpack.c.l.s4 1983009808
        %v1995 = vunpack.c.0.s8 %v1994
        %v1996 = vlaneseq
        %v1997 = vshrl.u32 %v1996, 7
        %v1998 = vsub.s32 %v1995, %v1997
        %v1999 = vrot.slane %v1991, %v1998
        %v2001 = vunpack.c.l.s4 1983009808
        %v2002 = vunpack.c.0.s8 %v2001
        %v2003 = vlaneseq
        %v2004 = vshrl.u32 %v2003, 7
        %v2005 = vsub.s32 %v2002, %v2004
        %v2006 = vrot.slane %v1992, %v2005
        %v2007 = vcombine.low %v1999, %v2006
        %v2008 = vcombine.low %v1571, %v1573
        %v2009 = vcombine.low %v1575, %v1577
        %v2011 = vunpack.c.l.s4 1983009808
        %v2012 = vunpack.c.0.s8 %v2011
        %v2013 = vlaneseq
        %v2014 = vshrl.u32 %v2013, 7
        %v2015 = vsub.s32 %v2012, %v2014
        %v2016 = vrot.slane %v2008, %v2015
        %v2018 = vunpack.c.l.s4 1983009808
        %v2019 = vunpack.c.0.s8 %v2018
        %v2020 = vlaneseq
        %v2021 = vshrl.u32 %v2020, 7
        %v2022 = vsub.s32 %v2019, %v2021
        %v2023 = vrot.slane %v2009, %v2022
        %v2024 = vcombine.low %v2016, %v2023
        %v2025 = vcombine.low %v1579, %v1581
        %v2026 = vcombine.low %v1583, %v1585
        %v2028 = vunpack.c.l.s4 1983009808
        %v2029 = vunpack.c.0.s8 %v2028
        %v2030 = vlaneseq
        %v2031 = vshrl.u32 %v2030, 7
        %v2032 = vsub.s32 %v2029, %v2031
        %v2033 = vrot.slane %v2025, %v2032
        %v2035 = vunpack.c.l.s4 1983009808
        %v2036 = vunpack.c.0.s8 %v2035
        %v2037 = vlaneseq
        %v2038 = vshrl.u32 %v2037, 7
        %v2039 = vsub.s32 %v2036, %v2038
        %v2040 = vrot.slane %v2026, %v2039
        %v2041 = vcombine.low %v2033, %v2040
        %v2042 = vcombine.low %v1418, %v1419
        %v2043 = vcombine.low %v1420, %v1421
        %v2045 = vunpack.c.l.s4 1983009808
        %v2046 = vunpack.c.0.s8 %v2045
        %v2047 = vlaneseq
        %v2048 = vshrl.u32 %v2047, 7
        %v2049 = vsub.s32 %v2046, %v2048
        %v2050 = vrot.slane %v2042, %v2049
        %v2052 = vunpack.c.l.s4 1983009808
        %v2053 = vunpack.c.0.s8 %v2052
        %v2054 = vlaneseq
        %v2055 = vshrl.u32 %v2054, 7
        %v2056 = vsub.s32 %v2053, %v2055
        %v2057 = vrot.slane %v2043, %v2056
        %v2058 = vcombine.low %v2050, %v2057
        %v2059 = vcombine.low %v1422, %v1423
        %v2060 = vcombine.low %v1424, %v1425
        %v2062 = vunpack.c.l.s4 1983009808
        %v2063 = vunpack.c.0.s8 %v2062
        %v2064 = vlaneseq
        %v2065 = vshrl.u32 %v2064, 7
        %v2066 = vsub.s32 %v2063, %v2065
        %v2067 = vrot.slane %v2059, %v2066
        %v2069 = vunpack.c.l.s4 1983009808
        %v2070 = vunpack.c.0.s8 %v2069
        %v2071 = vlaneseq
        %v2072 = vshrl.u32 %v2071, 7
        %v2073 = vsub.s32 %v2070, %v2072
        %v2074 = vrot.slane %v2060, %v2073
        %v2075 = vcombine.low %v2067, %v2074
        %v2076 = vcombine.low %v1587, %v1589
        %v2077 = vcombine.low %v1591, %v1593
        %v2079 = vunpack.c.l.s4 1983009808
        %v2080 = vunpack.c.0.s8 %v2079
        %v2081 = vlaneseq
        %v2082 = vshrl.u32 %v2081, 7
        %v2083 = vsub.s32 %v2080, %v2082
        %v2084 = vrot.slane %v2076, %v2083
        %v2086 = vunpack.c.l.s4 1983009808
        %v2087 = vunpack.c.0.s8 %v2086
        %v2088 = vlaneseq
        %v2089 = vshrl.u32 %v2088, 7
        %v2090 = vsub.s32 %v2087, %v2089
        %v2091 = vrot.slane %v2077, %v2090
        %v2092 = vcombine.low %v2084, %v2091
        %v2093 = vcombine.low %v1595, %v1597
        %v2094 = vcombine.low %v1599, %v1601
        %v2096 = vunpack.c.l.s4 1983009808
        %v2097 = vunpack.c.0.s8 %v2096
        %v2098 = vlaneseq
        %v2099 = vshrl.u32 %v2098, 7
        %v2100 = vsub.s32 %v2097, %v2099
        %v2101 = vrot.slane %v2093, %v2100
        %v2103 = vunpack.c.l.s4 1983009808
        %v2104 = vunpack.c.0.s8 %v2103
        %v2105 = vlaneseq
        %v2106 = vshrl.u32 %v2105, 7
        %v2107 = vsub.s32 %v2104, %v2106
        %v2108 = vrot.slane %v2094, %v2107
        %v2109 = vcombine.low %v2101, %v2108
        %v2110 = vcombine.low %v1426, %v1427
        %v2111 = vcombine.low %v1428, %v1429
        %v2113 = vunpack.c.l.s4 1983009808
        %v2114 = vunpack.c.0.s8 %v2113
        %v2115 = vlaneseq
        %v2116 = vshrl.u32 %v2115, 7
        %v2117 = vsub.s32 %v2114, %v2116
        %v2118 = vrot.slane %v2110, %v2117
        %v2120 = vunpack.c.l.s4 1983009808
        %v2121 = vunpack.c.0.s8 %v2120
        %v2122 = vlaneseq
        %v2123 = vshrl.u32 %v2122, 7
        %v2124 = vsub.s32 %v2121, %v2123
        %v2125 = vrot.slane %v2111, %v2124
        %v2126 = vcombine.low %v2118, %v2125
        %v2127 = vcombine.low %v1430, %v1431
        %v2128 = vcombine.low %v1432, %v1433
        %v2130 = vunpack.c.l.s4 1983009808
        %v2131 = vunpack.c.0.s8 %v2130
        %v2132 = vlaneseq
        %v2133 = vshrl.u32 %v2132, 7
        %v2134 = vsub.s32 %v2131, %v2133
        %v2135 = vrot.slane %v2127, %v2134
        %v2137 = vunpack.c.l.s4 1983009808
        %v2138 = vunpack.c.0.s8 %v2137
        %v2139 = vlaneseq
        %v2140 = vshrl.u32 %v2139, 7
        %v2141 = vsub.s32 %v2138, %v2140
        %v2142 = vrot.slane %v2128, %v2141
        %v2143 = vcombine.low %v2135, %v2142
        %v2144 = vcombine.low %v1603, %v1605
        %v2145 = vcombine.low %v1607, %v1609
        %v2147 = vunpack.c.l.s4 1983009808
        %v2148 = vunpack.c.0.s8 %v2147
        %v2149 = vlaneseq
        %v2150 = vshrl.u32 %v2149, 7
        %v2151 = vsub.s32 %v2148, %v2150
        %v2152 = vrot.slane %v2144, %v2151
        %v2154 = vunpack.c.l.s4 1983009808
        %v2155 = vunpack.c.0.s8 %v2154
        %v2156 = vlaneseq
        %v2157 = vshrl.u32 %v2156, 7
        %v2158 = vsub.s32 %v2155, %v2157
        %v2159 = vrot.slane %v2145, %v2158
        %v2160 = vcombine.low %v2152, %v2159
        %v2161 = vcombine.low %v1611, %v1613
        %v2162 = vcombine.low %v1615, %v1617
        %v2164 = vunpack.c.l.s4 1983009808
        %v2165 = vunpack.c.0.s8 %v2164
        %v2166 = vlaneseq
        %v2167 = vshrl.u32 %v2166, 7
        %v2168 = vsub.s32 %v2165, %v2167
        %v2169 = vrot.slane %v2161, %v2168
        %v2171 = vunpack.c.l.s4 1983009808
        %v2172 = vunpack.c.0.s8 %v2171
        %v2173 = vlaneseq
        %v2174 = vshrl.u32 %v2173, 7
        %v2175 = vsub.s32 %v2172, %v2174
        %v2176 = vrot.slane %v2162, %v2175
        %v2177 = vcombine.low %v2169, %v2176
        %v2178 = vcombine.low %v1434, %v1435
        %v2179 = vcombine.low %v1436, %v1437
        %v2181 = vunpack.c.l.s4 1983009808
        %v2182 = vunpack.c.0.s8 %v2181
        %v2183 = vlaneseq
        %v2184 = vshrl.u32 %v2183, 7
        %v2185 = vsub.s32 %v2182, %v2184
        %v2186 = vrot.slane %v2178, %v2185
        %v2188 = vunpack.c.l.s4 1983009808
        %v2189 = vunpack.c.0.s8 %v2188
        %v2190 = vlaneseq
        %v2191 = vshrl.u32 %v2190, 7
        %v2192 = vsub.s32 %v2189, %v2191
        %v2193 = vrot.slane %v2179, %v2192
        %v2194 = vcombine.low %v2186, %v2193
        %v2195 = vcombine.low %v1438, %v1439
        %v2196 = vcombine.low %v1440, %v1441
        %v2198 = vunpack.c.l.s4 1983009808
        %v2199 = vunpack.c.0.s8 %v2198
        %v2200 = vlaneseq
        %v2201 = vshrl.u32 %v2200, 7
        %v2202 = vsub.s32 %v2199, %v2201
        %v2203 = vrot.slane %v2195, %v2202
        %v2205 = vunpack.c.l.s4 1983009808
        %v2206 = vunpack.c.0.s8 %v2205
        %v2207 = vlaneseq
        %v2208 = vshrl.u32 %v2207, 7
        %v2209 = vsub.s32 %v2206, %v2208
        %v2210 = vrot.slane %v2196, %v2209
        %v2211 = vcombine.low %v2203, %v2210
        %v2212 = vcombine.low %v1619, %v1621
        %v2213 = vcombine.low %v1623, %v1625
        %v2215 = vunpack.c.l.s4 1983009808
        %v2216 = vunpack.c.0.s8 %v2215
        %v2217 = vlaneseq
        %v2218 = vshrl.u32 %v2217, 7
        %v2219 = vsub.s32 %v2216, %v2218
        %v2220 = vrot.slane %v2212, %v2219
        %v2222 = vunpack.c.l.s4 1983009808
        %v2223 = vunpack.c.0.s8 %v2222
        %v2224 = vlaneseq
        %v2225 = vshrl.u32 %v2224, 7
        %v2226 = vsub.s32 %v2223, %v2225
        %v2227 = vrot.slane %v2213, %v2226
        %v2228 = vcombine.low %v2220, %v2227
        %v2229 = vcombine.low %v1627, %v1629
        %v2230 = vcombine.low %v1631, %v1633
        %v2232 = vunpack.c.l.s4 1983009808
        %v2233 = vunpack.c.0.s8 %v2232
        %v2234 = vlaneseq
        %v2235 = vshrl.u32 %v2234, 7
        %v2236 = vsub.s32 %v2233, %v2235
        %v2237 = vrot.slane %v2229, %v2236
        %v2239 = vunpack.c.l.s4 1983009808
        %v2240 = vunpack.c.0.s8 %v2239
        %v2241 = vlaneseq
        %v2242 = vshrl.u32 %v2241, 7
        %v2243 = vsub.s32 %v2240, %v2242
        %v2244 = vrot.slane %v2230, %v2243
        %v2245 = vcombine.low %v2237, %v2244
        %2310 = vrot.lane.b32.xlu0 %v1654, 8
        %v2311 = vpop.permute.xlu0 %2310
        %2312 = vrot.lane.b32.xlu0 %v1655, 8
        %v2313 = vpop.permute.xlu0 %2312
        %2314 = vrot.lane.b32.xlu0 %v1656, 8
        %v2315 = vpop.permute.xlu0 %2314
        %2316 = vrot.lane.b32.xlu0 %v1657, 8
        %v2317 = vpop.permute.xlu0 %2316
        %2318 = vrot.lane.b32.xlu0 %v1658, 8
        %v2319 = vpop.permute.xlu0 %2318
        %2320 = vrot.lane.b32.xlu0 %v1659, 8
        %v2321 = vpop.permute.xlu0 %2320
        %2322 = vrot.lane.b32.xlu0 %v1660, 8
        %v2323 = vpop.permute.xlu0 %2322
        %2324 = vrot.lane.b32.xlu0 %v1661, 8
        %v2325 = vpop.permute.xlu0 %2324
        %2326 = vrot.lane.b32.xlu0 %v1662, 8
        %v2327 = vpop.permute.xlu0 %2326
        %2328 = vrot.lane.b32.xlu0 %v1663, 8
        %v2329 = vpop.permute.xlu0 %2328
        %2330 = vrot.lane.b32.xlu0 %v1664, 8
        %v2331 = vpop.permute.xlu0 %2330
        %2332 = vrot.lane.b32.xlu0 %v1665, 8
        %v2333 = vpop.permute.xlu0 %2332
        %2334 = vrot.lane.b32.xlu0 %v1666, 8
        %v2335 = vpop.permute.xlu0 %2334
        %2336 = vrot.lane.b32.xlu0 %v1667, 8
        %v2337 = vpop.permute.xlu0 %2336
        %2338 = vrot.lane.b32.xlu0 %v1668, 8
        %v2339 = vpop.permute.xlu0 %2338
        %2340 = vrot.lane.b32.xlu0 %v1669, 8
        %v2341 = vpop.permute.xlu0 %2340
        %2342 = vrot.lane.b32.xlu0 %v1686, 8
        %v2343 = vpop.permute.xlu0 %2342
        %2344 = vrot.lane.b32.xlu0 %v1687, 8
        %v2345 = vpop.permute.xlu0 %2344
        %2346 = vrot.lane.b32.xlu0 %v1688, 8
        %v2347 = vpop.permute.xlu0 %2346
        %2348 = vrot.lane.b32.xlu0 %v1689, 8
        %v2349 = vpop.permute.xlu0 %2348
        %2350 = vrot.lane.b32.xlu0 %v1690, 8
        %v2351 = vpop.permute.xlu0 %2350
        %2352 = vrot.lane.b32.xlu0 %v1691, 8
        %v2353 = vpop.permute.xlu0 %2352
        %2354 = vrot.lane.b32.xlu0 %v1692, 8
        %v2355 = vpop.permute.xlu0 %2354
        %2356 = vrot.lane.b32.xlu0 %v1693, 8
        %v2357 = vpop.permute.xlu0 %2356
        %2358 = vrot.lane.b32.xlu0 %v1694, 8
        %v2359 = vpop.permute.xlu0 %2358
        %2360 = vrot.lane.b32.xlu0 %v1695, 8
        %v2361 = vpop.permute.xlu0 %2360
        %2362 = vrot.lane.b32.xlu0 %v1696, 8
        %v2363 = vpop.permute.xlu0 %2362
        %2364 = vrot.lane.b32.xlu0 %v1697, 8
        %v2365 = vpop.permute.xlu0 %2364
        %2366 = vrot.lane.b32.xlu0 %v1698, 8
        %v2367 = vpop.permute.xlu0 %2366
        %2368 = vrot.lane.b32.xlu0 %v1699, 8
        %v2369 = vpop.permute.xlu0 %2368
        %2370 = vrot.lane.b32.xlu0 %v1700, 8
        %v2371 = vpop.permute.xlu0 %2370
        %2372 = vrot.lane.b32.xlu0 %v1701, 8
        %v2373 = vpop.permute.xlu0 %2372
        %v2406 = vsel %vm383, %v1718, %v2311
        %v2407 = vsel %vm383, %v1735, %v2313
        %v2408 = vsel %vm383, %v1752, %v2315
        %v2409 = vsel %vm383, %v1769, %v2317
        %v2410 = vsel %vm383, %v1786, %v2319
        %v2411 = vsel %vm383, %v1803, %v2321
        %v2412 = vsel %vm383, %v1820, %v2323
        %v2413 = vsel %vm383, %v1837, %v2325
        %v2414 = vsel %vm383, %v1854, %v2327
        %v2415 = vsel %vm383, %v1871, %v2329
        %v2416 = vsel %vm383, %v1888, %v2331
        %v2417 = vsel %vm383, %v1905, %v2333
        %v2418 = vsel %vm383, %v1922, %v2335
        %v2419 = vsel %vm383, %v1939, %v2337
        %v2420 = vsel %vm383, %v1956, %v2339
        %v2421 = vsel %vm383, %v1973, %v2341
        %v2422 = vsel %vm383, %v1990, %v2343
        %v2423 = vsel %vm383, %v2007, %v2345
        %v2424 = vsel %vm383, %v2024, %v2347
        %v2425 = vsel %vm383, %v2041, %v2349
        %v2426 = vsel %vm383, %v2058, %v2351
        %v2427 = vsel %vm383, %v2075, %v2353
        %v2428 = vsel %vm383, %v2092, %v2355
        %v2429 = vsel %vm383, %v2109, %v2357
        %v2430 = vsel %vm383, %v2126, %v2359
        %v2431 = vsel %vm383, %v2143, %v2361
        %v2432 = vsel %vm383, %v2160, %v2363
        %v2433 = vsel %vm383, %v2177, %v2365
        %v2434 = vsel %vm383, %v2194, %v2367
        %v2435 = vsel %vm383, %v2211, %v2369
        %v2436 = vsel %vm383, %v2228, %v2371
        %v2437 = vsel %vm383, %v2245, %v2373
        %v2470 = vrot.slane %v2406, 7
        %v2471 = vrot.slane %v2407, 7
        %v2472 = vsel %vm1377, %v2470, %v2471
        %v2473 = vrot.slane %v2408, 7
        %v2474 = vrot.slane %v2409, 7
        %v2475 = vsel %vm1377, %v2473, %v2474
        %v2476 = vrot.slane %v2410, 7
        %v2477 = vrot.slane %v2411, 7
        %v2478 = vsel %vm1377, %v2476, %v2477
        %v2479 = vrot.slane %v2412, 7
        %v2480 = vrot.slane %v2413, 7
        %v2481 = vsel %vm1377, %v2479, %v2480
        %v2482 = vrot.slane %v2414, 7
        %v2483 = vrot.slane %v2415, 7
        %v2484 = vsel %vm1377, %v2482, %v2483
        %v2485 = vrot.slane %v2416, 7
        %v2486 = vrot.slane %v2417, 7
        %v2487 = vsel %vm1377, %v2485, %v2486
        %v2488 = vrot.slane %v2418, 7
        %v2489 = vrot.slane %v2419, 7
        %v2490 = vsel %vm1377, %v2488, %v2489
        %v2491 = vrot.slane %v2420, 7
        %v2492 = vrot.slane %v2421, 7
        %v2493 = vsel %vm1377, %v2491, %v2492
        %v2494 = vrot.slane %v2422, 7
        %v2495 = vrot.slane %v2423, 7
        %v2496 = vsel %vm1377, %v2494, %v2495
        %v2497 = vrot.slane %v2424, 7
        %v2498 = vrot.slane %v2425, 7
        %v2499 = vsel %vm1377, %v2497, %v2498
        %v2500 = vrot.slane %v2426, 7
        %v2501 = vrot.slane %v2427, 7
        %v2502 = vsel %vm1377, %v2500, %v2501
        %v2503 = vrot.slane %v2428, 7
        %v2504 = vrot.slane %v2429, 7
        %v2505 = vsel %vm1377, %v2503, %v2504
        %v2506 = vrot.slane %v2430, 7
        %v2507 = vrot.slane %v2431, 7
        %v2508 = vsel %vm1377, %v2506, %v2507
        %v2509 = vrot.slane %v2432, 7
        %v2510 = vrot.slane %v2433, 7
        %v2511 = vsel %vm1377, %v2509, %v2510
        %v2512 = vrot.slane %v2434, 7
        %v2513 = vrot.slane %v2435, 7
        %v2514 = vsel %vm1377, %v2512, %v2513
        %v2515 = vrot.slane %v2436, 7
        %v2516 = vrot.slane %v2437, 7
        %v2517 = vsel %vm1377, %v2515, %v2516
        %v2566 = vsel %vm1377, 0.0, %v2470
        %v2567 = vsel %vm1377, 0.0, %v2473
        %v2568 = vsel %vm1377, 0.0, %v2476
        %v2569 = vsel %vm1377, 0.0, %v2479
        %v2570 = vsel %vm1377, 0.0, %v2482
        %v2571 = vsel %vm1377, 0.0, %v2485
        %v2572 = vsel %vm1377, 0.0, %v2488
        %v2573 = vsel %vm1377, 0.0, %v2491
        %v2574 = vsel %vm1377, 0.0, %v2494
        %v2575 = vsel %vm1377, 0.0, %v2497
        %v2576 = vsel %vm1377, 0.0, %v2500
        %v2577 = vsel %vm1377, 0.0, %v2503
        %v2578 = vsel %vm1377, 0.0, %v2506
        %v2579 = vsel %vm1377, 0.0, %v2509
        %v2580 = vsel %vm1377, 0.0, %v2512
        %v2581 = vsel %vm1377, 0.0, %v2515
        %v2582 = vsel %vm1377, %v2471, 0.0
        %v2583 = vsel %vm1377, %v2474, 0.0
        %v2584 = vsel %vm1377, %v2477, 0.0
        %v2585 = vsel %vm1377, %v2480, 0.0
        %v2586 = vsel %vm1377, %v2483, 0.0
        %v2587 = vsel %vm1377, %v2486, 0.0
        %v2588 = vsel %vm1377, %v2489, 0.0
        %v2589 = vsel %vm1377, %v2492, 0.0
        %v2590 = vsel %vm1377, %v2495, 0.0
        %v2591 = vsel %vm1377, %v2498, 0.0
        %v2592 = vsel %vm1377, %v2501, 0.0
        %v2593 = vsel %vm1377, %v2504, 0.0
        %v2594 = vsel %vm1377, %v2507, 0.0
        %v2595 = vsel %vm1377, %v2510, 0.0
        %v2596 = vsel %vm1377, %v2513, 0.0
        %v2597 = vsel %vm1377, %v2516, 0.0
        %v2598 = vpack.c.bf16 0.0, 0.0
        %v2599 = vpack.c.bf16 %v2472, %v2566
        %v2600 = vpack.c.bf16 %v2582, %v2582
        %v2601 = vpack.c.bf16 %v2475, %v2567
        %v2602 = vpack.c.bf16 %v2583, %v2583
        %v2603 = vpack.c.bf16 %v2478, %v2568
        %v2604 = vpack.c.bf16 %v2584, %v2584
        %v2605 = vpack.c.bf16 %v2481, %v2569
        %v2606 = vpack.c.bf16 %v2585, %v2585
        %v2607 = vpack.c.bf16 %v2484, %v2570
        %v2608 = vpack.c.bf16 %v2586, %v2586
        %v2609 = vpack.c.bf16 %v2487, %v2571
        %v2610 = vpack.c.bf16 %v2587, %v2587
        %v2611 = vpack.c.bf16 %v2490, %v2572
        %v2612 = vpack.c.bf16 %v2588, %v2588
        %v2613 = vpack.c.bf16 %v2493, %v2573
        %v2614 = vpack.c.bf16 %v2589, %v2589
        %v2615 = vpack.c.bf16 %v2496, %v2574
        %v2616 = vpack.c.bf16 %v2590, %v2590
        %v2617 = vpack.c.bf16 %v2499, %v2575
        %v2618 = vpack.c.bf16 %v2591, %v2591
        %v2619 = vpack.c.bf16 %v2502, %v2576
        %v2620 = vpack.c.bf16 %v2592, %v2592
        %v2621 = vpack.c.bf16 %v2505, %v2577
        %v2622 = vpack.c.bf16 %v2593, %v2593
        %v2623 = vpack.c.bf16 %v2508, %v2578
        %v2624 = vpack.c.bf16 %v2594, %v2594
        %v2625 = vpack.c.bf16 %v2511, %v2579
        %v2626 = vpack.c.bf16 %v2595, %v2595
        %v2627 = vpack.c.bf16 %v2514, %v2580
        %v2628 = vpack.c.bf16 %v2596, %v2596
        %v2629 = vpack.c.bf16 %v2517, %v2581
        %v2630 = vpack.c.bf16 %v2597, %v2597
        %vm2631 = vsmask.f32 7424
        %v2633 = vshrl.u32 %v2598, 16
        %v2635 = vshll.u32 %v2598, 16
        %v2637 = vrot.slane %v2635, 1
        %v2638 = vor.u32 %v2633, %v2637
        %v2639 = vsel %vm2631, %v2638, %v2637
        %v2641 = vshrl.u32 %v2599, 16
        %v2643 = vshll.u32 %v2599, 16
        %v2645 = vrot.slane %v2643, 1
        %v2646 = vor.u32 %v2641, %v2645
        %v2648 = vshll.u32 %v2600, 16
        %v2650 = vrot.slane %v2648, 1
        %v2651 = vsel %vm2631, %v2646, %v2650
        %v2653 = vshrl.u32 %v2601, 16
        %v2655 = vshll.u32 %v2601, 16
        %v2657 = vrot.slane %v2655, 1
        %v2658 = vor.u32 %v2653, %v2657
        %v2660 = vshll.u32 %v2602, 16
        %v2662 = vrot.slane %v2660, 1
        %v2663 = vsel %vm2631, %v2658, %v2662
        %v2665 = vshrl.u32 %v2603, 16
        %v2667 = vshll.u32 %v2603, 16
        %v2669 = vrot.slane %v2667, 1
        %v2670 = vor.u32 %v2665, %v2669
        %v2672 = vshll.u32 %v2604, 16
        %v2674 = vrot.slane %v2672, 1
        %v2675 = vsel %vm2631, %v2670, %v2674
        %v2677 = vshrl.u32 %v2605, 16
        %v2679 = vshll.u32 %v2605, 16
        %v2681 = vrot.slane %v2679, 1
        %v2682 = vor.u32 %v2677, %v2681
        %v2684 = vshll.u32 %v2606, 16
        %v2686 = vrot.slane %v2684, 1
        %v2687 = vsel %vm2631, %v2682, %v2686
        %v2689 = vshrl.u32 %v2607, 16
        %v2691 = vshll.u32 %v2607, 16
        %v2693 = vrot.slane %v2691, 1
        %v2694 = vor.u32 %v2689, %v2693
        %v2696 = vshll.u32 %v2608, 16
        %v2698 = vrot.slane %v2696, 1
        %v2699 = vsel %vm2631, %v2694, %v2698
        %v2701 = vshrl.u32 %v2609, 16
        %v2703 = vshll.u32 %v2609, 16
        %v2705 = vrot.slane %v2703, 1
        %v2706 = vor.u32 %v2701, %v2705
        %v2708 = vshll.u32 %v2610, 16
        %v2710 = vrot.slane %v2708, 1
        %v2711 = vsel %vm2631, %v2706, %v2710
        %v2713 = vshrl.u32 %v2611, 16
        %v2715 = vshll.u32 %v2611, 16
        %v2717 = vrot.slane %v2715, 1
        %v2718 = vor.u32 %v2713, %v2717
        %v2720 = vshll.u32 %v2612, 16
        %v2722 = vrot.slane %v2720, 1
        %v2723 = vsel %vm2631, %v2718, %v2722
        %v2725 = vshrl.u32 %v2613, 16
        %v2727 = vshll.u32 %v2613, 16
        %v2729 = vrot.slane %v2727, 1
        %v2730 = vor.u32 %v2725, %v2729
        %v2732 = vshll.u32 %v2614, 16
        %v2734 = vrot.slane %v2732, 1
        %v2735 = vsel %vm2631, %v2730, %v2734
        %v2737 = vshrl.u32 %v2615, 16
        %v2739 = vshll.u32 %v2615, 16
        %v2741 = vrot.slane %v2739, 1
        %v2742 = vor.u32 %v2737, %v2741
        %v2744 = vshll.u32 %v2616, 16
        %v2746 = vrot.slane %v2744, 1
        %v2747 = vsel %vm2631, %v2742, %v2746
        %v2749 = vshrl.u32 %v2617, 16
        %v2751 = vshll.u32 %v2617, 16
        %v2753 = vrot.slane %v2751, 1
        %v2754 = vor.u32 %v2749, %v2753
        %v2756 = vshll.u32 %v2618, 16
        %v2758 = vrot.slane %v2756, 1
        %v2759 = vsel %vm2631, %v2754, %v2758
        %v2761 = vshrl.u32 %v2619, 16
        %v2763 = vshll.u32 %v2619, 16
        %v2765 = vrot.slane %v2763, 1
        %v2766 = vor.u32 %v2761, %v2765
        %v2768 = vshll.u32 %v2620, 16
        %v2770 = vrot.slane %v2768, 1
        %v2771 = vsel %vm2631, %v2766, %v2770
        %v2773 = vshrl.u32 %v2621, 16
        %v2775 = vshll.u32 %v2621, 16
        %v2777 = vrot.slane %v2775, 1
        %v2778 = vor.u32 %v2773, %v2777
        %v2780 = vshll.u32 %v2622, 16
        %v2782 = vrot.slane %v2780, 1
        %v2783 = vsel %vm2631, %v2778, %v2782
        %v2785 = vshrl.u32 %v2623, 16
        %v2787 = vshll.u32 %v2623, 16
        %v2789 = vrot.slane %v2787, 1
        %v2790 = vor.u32 %v2785, %v2789
        %v2792 = vshll.u32 %v2624, 16
        %v2794 = vrot.slane %v2792, 1
        %v2795 = vsel %vm2631, %v2790, %v2794
        %v2797 = vshrl.u32 %v2625, 16
        %v2799 = vshll.u32 %v2625, 16
        %v2801 = vrot.slane %v2799, 1
        %v2802 = vor.u32 %v2797, %v2801
        %v2804 = vshll.u32 %v2626, 16
        %v2806 = vrot.slane %v2804, 1
        %v2807 = vsel %vm2631, %v2802, %v2806
        %v2809 = vshrl.u32 %v2627, 16
        %v2811 = vshll.u32 %v2627, 16
        %v2813 = vrot.slane %v2811, 1
        %v2814 = vor.u32 %v2809, %v2813
        %v2816 = vshll.u32 %v2628, 16
        %v2818 = vrot.slane %v2816, 1
        %v2819 = vsel %vm2631, %v2814, %v2818
        %2820 = vrot.lane.b32.xlu0 %v2639, 12
        %v2821 = vpop.permute.xlu0 %2820
        %2822 = vrot.lane.b32.xlu0 %v2651, 12
        %v2823 = vpop.permute.xlu0 %2822
        %2824 = vrot.lane.b32.xlu0 %v2663, 12
        %v2825 = vpop.permute.xlu0 %2824
        %2826 = vrot.lane.b32.xlu0 %v2675, 12
        %v2827 = vpop.permute.xlu0 %2826
        %2828 = vrot.lane.b32.xlu0 %v2687, 12
        %v2829 = vpop.permute.xlu0 %2828
        %2830 = vrot.lane.b32.xlu0 %v2699, 12
        %v2831 = vpop.permute.xlu0 %2830
        %2832 = vrot.lane.b32.xlu0 %v2711, 12
        %v2833 = vpop.permute.xlu0 %2832
        %2834 = vrot.lane.b32.xlu0 %v2723, 12
        %v2835 = vpop.permute.xlu0 %2834
        %2836 = vrot.lane.b32.xlu0 %v2735, 12
        %v2837 = vpop.permute.xlu0 %2836
        %2838 = vrot.lane.b32.xlu0 %v2747, 12
        %v2839 = vpop.permute.xlu0 %2838
        %2840 = vrot.lane.b32.xlu0 %v2759, 12
        %v2841 = vpop.permute.xlu0 %2840
        %2842 = vrot.lane.b32.xlu0 %v2771, 12
        %v2843 = vpop.permute.xlu0 %2842
        %2844 = vrot.lane.b32.xlu0 %v2783, 12
        %v2845 = vpop.permute.xlu0 %2844
        %2846 = vrot.lane.b32.xlu0 %v2795, 12
        %v2847 = vpop.permute.xlu0 %2846
        %2848 = vrot.lane.b32.xlu0 %v2807, 12
        %v2849 = vpop.permute.xlu0 %2848
        %2850 = vrot.lane.b32.xlu0 %v2819, 12
        %v2851 = vpop.permute.xlu0 %2850
        %vm2883 = vcmask 1046528
        %v2884 = vrot.slane %v2598, 1
        %v2885 = vsel %vm2883, %v2884, %v2884
        %v2886 = vrot.slane %v2599, 1
        %v2887 = vrot.slane %v2600, 1
        %v2888 = vsel %vm2883, %v2886, %v2887
        %v2889 = vrot.slane %v2601, 1
        %v2890 = vrot.slane %v2602, 1
        %v2891 = vsel %vm2883, %v2889, %v2890
        %v2892 = vrot.slane %v2603, 1
        %v2893 = vrot.slane %v2604, 1
        %v2894 = vsel %vm2883, %v2892, %v2893
        %v2895 = vrot.slane %v2605, 1
        %v2896 = vrot.slane %v2606, 1
        %v2897 = vsel %vm2883, %v2895, %v2896
        %v2898 = vrot.slane %v2607, 1
        %v2899 = vrot.slane %v2608, 1
        %v2900 = vsel %vm2883, %v2898, %v2899
        %v2901 = vrot.slane %v2609, 1
        %v2902 = vrot.slane %v2610, 1
        %v2903 = vsel %vm2883, %v2901, %v2902
        %v2904 = vrot.slane %v2611, 1
        %v2905 = vrot.slane %v2612, 1
        %v2906 = vsel %vm2883, %v2904, %v2905
        %v2907 = vrot.slane %v2613, 1
        %v2908 = vrot.slane %v2614, 1
        %v2909 = vsel %vm2883, %v2907, %v2908
        %v2910 = vrot.slane %v2615, 1
        %v2911 = vrot.slane %v2616, 1
        %v2912 = vsel %vm2883, %v2910, %v2911
        %v2913 = vrot.slane %v2617, 1
        %v2914 = vrot.slane %v2618, 1
        %v2915 = vsel %vm2883, %v2913, %v2914
        %v2916 = vrot.slane %v2619, 1
        %v2917 = vrot.slane %v2620, 1
        %v2918 = vsel %vm2883, %v2916, %v2917
        %v2919 = vrot.slane %v2621, 1
        %v2920 = vrot.slane %v2622, 1
        %v2921 = vsel %vm2883, %v2919, %v2920
        %v2922 = vrot.slane %v2623, 1
        %v2923 = vrot.slane %v2624, 1
        %v2924 = vsel %vm2883, %v2922, %v2923
        %v2925 = vrot.slane %v2625, 1
        %v2926 = vrot.slane %v2626, 1
        %v2927 = vsel %vm2883, %v2925, %v2926
        %v2928 = vrot.slane %v2627, 1
        %v2929 = vrot.slane %v2628, 1
        %v2930 = vsel %vm2883, %v2928, %v2929
        %2931 = vrot.lane.b32.xlu0 %v2885, 24
        %v2932 = vpop.permute.xlu0 %2931
        %2933 = vrot.lane.b32.xlu0 %v2888, 24
        %v2934 = vpop.permute.xlu0 %2933
        %2935 = vrot.lane.b32.xlu0 %v2891, 24
        %v2936 = vpop.permute.xlu0 %2935
        %2937 = vrot.lane.b32.xlu0 %v2894, 24
        %v2938 = vpop.permute.xlu0 %2937
        %2939 = vrot.lane.b32.xlu0 %v2897, 24
        %v2940 = vpop.permute.xlu0 %2939
        %2941 = vrot.lane.b32.xlu0 %v2900, 24
        %v2942 = vpop.permute.xlu0 %2941
        %2943 = vrot.lane.b32.xlu0 %v2903, 24
        %v2944 = vpop.permute.xlu0 %2943
        %2945 = vrot.lane.b32.xlu0 %v2906, 24
        %v2946 = vpop.permute.xlu0 %2945
        %2947 = vrot.lane.b32.xlu0 %v2909, 24
        %v2948 = vpop.permute.xlu0 %2947
        %2949 = vrot.lane.b32.xlu0 %v2912, 24
        %v2950 = vpop.permute.xlu0 %2949
        %2951 = vrot.lane.b32.xlu0 %v2915, 24
        %v2952 = vpop.permute.xlu0 %2951
        %2953 = vrot.lane.b32.xlu0 %v2918, 24
        %v2954 = vpop.permute.xlu0 %2953
        %2955 = vrot.lane.b32.xlu0 %v2921, 24
        %v2956 = vpop.permute.xlu0 %2955
        %2957 = vrot.lane.b32.xlu0 %v2924, 24
        %v2958 = vpop.permute.xlu0 %2957
        %2959 = vrot.lane.b32.xlu0 %v2927, 24
        %v2960 = vpop.permute.xlu0 %2959
        %2961 = vrot.lane.b32.xlu0 %v2930, 24
        %v2962 = vpop.permute.xlu0 %2961
        %2964 = vrot.lane.b32.xlu0 %v2599, 36
        %v2965 = vpop.permute.xlu0 %2964
        %2966 = vrot.lane.b32.xlu0 %v2601, 36
        %v2967 = vpop.permute.xlu0 %2966
        %2968 = vrot.lane.b32.xlu0 %v2603, 36
        %v2969 = vpop.permute.xlu0 %2968
        %2970 = vrot.lane.b32.xlu0 %v2605, 36
        %v2971 = vpop.permute.xlu0 %2970
        %2972 = vrot.lane.b32.xlu0 %v2607, 36
        %v2973 = vpop.permute.xlu0 %2972
        %2974 = vrot.lane.b32.xlu0 %v2609, 36
        %v2975 = vpop.permute.xlu0 %2974
        %2976 = vrot.lane.b32.xlu0 %v2611, 36
        %v2977 = vpop.permute.xlu0 %2976
        %2978 = vrot.lane.b32.xlu0 %v2613, 36
        %v2979 = vpop.permute.xlu0 %2978
        %2980 = vrot.lane.b32.xlu0 %v2615, 36
        %v2981 = vpop.permute.xlu0 %2980
        %2982 = vrot.lane.b32.xlu0 %v2617, 36
        %v2983 = vpop.permute.xlu0 %2982
        %2984 = vrot.lane.b32.xlu0 %v2619, 36
        %v2985 = vpop.permute.xlu0 %2984
        %2986 = vrot.lane.b32.xlu0 %v2621, 36
        %v2987 = vpop.permute.xlu0 %2986
        %2988 = vrot.lane.b32.xlu0 %v2623, 36
        %v2989 = vpop.permute.xlu0 %2988
        %2990 = vrot.lane.b32.xlu0 %v2625, 36
        %v2991 = vpop.permute.xlu0 %2990
        %2992 = vrot.lane.b32.xlu0 %v2627, 36
        %v2993 = vpop.permute.xlu0 %2992
        %2994 = vrot.lane.b32.xlu0 %v2629, 36
        %v2995 = vpop.permute.xlu0 %2994
        %v2997 = vshrl.u32 %v2629, 16
        %v2999 = vshll.u32 %v2629, 16
        %v3001 = vrot.slane %v2999, 1
        %v3002 = vor.u32 %v2997, %v3001
        %v3004 = vshll.u32 %v2630, 16
        %v3006 = vrot.slane %v3004, 1
        %v3007 = vsel %vm2631, %v3002, %v3006
        %3008 = vrot.lane.b32.xlu0 %v2651, 48
        %v3009 = vpop.permute.xlu0 %3008
        %3010 = vrot.lane.b32.xlu0 %v2663, 48
        %v3011 = vpop.permute.xlu0 %3010
        %3012 = vrot.lane.b32.xlu0 %v2675, 48
        %v3013 = vpop.permute.xlu0 %3012
        %3014 = vrot.lane.b32.xlu0 %v2687, 48
        %v3015 = vpop.permute.xlu0 %3014
        %3016 = vrot.lane.b32.xlu0 %v2699, 48
        %v3017 = vpop.permute.xlu0 %3016
        %3018 = vrot.lane.b32.xlu0 %v2711, 48
        %v3019 = vpop.permute.xlu0 %3018
        %3020 = vrot.lane.b32.xlu0 %v2723, 48
        %v3021 = vpop.permute.xlu0 %3020
        %3022 = vrot.lane.b32.xlu0 %v2735, 48
        %v3023 = vpop.permute.xlu0 %3022
        %3024 = vrot.lane.b32.xlu0 %v2747, 48
        %v3025 = vpop.permute.xlu0 %3024
        %3026 = vrot.lane.b32.xlu0 %v2759, 48
        %v3027 = vpop.permute.xlu0 %3026
        %3028 = vrot.lane.b32.xlu0 %v2771, 48
        %v3029 = vpop.permute.xlu0 %3028
        %3030 = vrot.lane.b32.xlu0 %v2783, 48
        %v3031 = vpop.permute.xlu0 %3030
        %3032 = vrot.lane.b32.xlu0 %v2795, 48
        %v3033 = vpop.permute.xlu0 %3032
        %3034 = vrot.lane.b32.xlu0 %v2807, 48
        %v3035 = vpop.permute.xlu0 %3034
        %3036 = vrot.lane.b32.xlu0 %v2819, 48
        %v3037 = vpop.permute.xlu0 %3036
        %3038 = vrot.lane.b32.xlu0 %v3007, 48
        %v3039 = vpop.permute.xlu0 %3038
        %v3041 = vrot.slane %v2629, 1
        %v3042 = vrot.slane %v2630, 1
        %v3043 = vsel %vm2883, %v3041, %v3042
        %3044 = vrot.lane.b32.xlu0 %v2888, 60
        %v3045 = vpop.permute.xlu0 %3044
        %3046 = vrot.lane.b32.xlu0 %v2891, 60
        %v3047 = vpop.permute.xlu0 %3046
        %3048 = vrot.lane.b32.xlu0 %v2894, 60
        %v3049 = vpop.permute.xlu0 %3048
        %3050 = vrot.lane.b32.xlu0 %v2897, 60
        %v3051 = vpop.permute.xlu0 %3050
        %3052 = vrot.lane.b32.xlu0 %v2900, 60
        %v3053 = vpop.permute.xlu0 %3052
        %3054 = vrot.lane.b32.xlu0 %v2903, 60
        %v3055 = vpop.permute.xlu0 %3054
        %3056 = vrot.lane.b32.xlu0 %v2906, 60
        %v3057 = vpop.permute.xlu0 %3056
        %3058 = vrot.lane.b32.xlu0 %v2909, 60
        %v3059 = vpop.permute.xlu0 %3058
        %3060 = vrot.lane.b32.xlu0 %v2912, 60
        %v3061 = vpop.permute.xlu0 %3060
        %3062 = vrot.lane.b32.xlu0 %v2915, 60
        %v3063 = vpop.permute.xlu0 %3062
        %3064 = vrot.lane.b32.xlu0 %v2918, 60
        %v3065 = vpop.permute.xlu0 %3064
        %3066 = vrot.lane.b32.xlu0 %v2921, 60
        %v3067 = vpop.permute.xlu0 %3066
        %3068 = vrot.lane.b32.xlu0 %v2924, 60
        %v3069 = vpop.permute.xlu0 %3068
        %3070 = vrot.lane.b32.xlu0 %v2927, 60
        %v3071 = vpop.permute.xlu0 %3070
        %3072 = vrot.lane.b32.xlu0 %v2930, 60
        %v3073 = vpop.permute.xlu0 %3072
        %3074 = vrot.lane.b32.xlu0 %v3043, 60
        %v3075 = vpop.permute.xlu0 %3074
        %3076 = vrot.lane.b32.xlu0 %v2601, 72
        %v3077 = vpop.permute.xlu0 %3076
        %3078 = vrot.lane.b32.xlu0 %v2603, 72
        %v3079 = vpop.permute.xlu0 %3078
        %3080 = vrot.lane.b32.xlu0 %v2605, 72
        %v3081 = vpop.permute.xlu0 %3080
        %3082 = vrot.lane.b32.xlu0 %v2607, 72
        %v3083 = vpop.permute.xlu0 %3082
        %3084 = vrot.lane.b32.xlu0 %v2609, 72
        %v3085 = vpop.permute.xlu0 %3084
        %3086 = vrot.lane.b32.xlu0 %v2611, 72
        %v3087 = vpop.permute.xlu0 %3086
        %3088 = vrot.lane.b32.xlu0 %v2613, 72
        %v3089 = vpop.permute.xlu0 %3088
        %3090 = vrot.lane.b32.xlu0 %v2615, 72
        %v3091 = vpop.permute.xlu0 %3090
        %3092 = vrot.lane.b32.xlu0 %v2617, 72
        %v3093 = vpop.permute.xlu0 %3092
        %3094 = vrot.lane.b32.xlu0 %v2619, 72
        %v3095 = vpop.permute.xlu0 %3094
        %3096 = vrot.lane.b32.xlu0 %v2621, 72
        %v3097 = vpop.permute.xlu0 %3096
        %3098 = vrot.lane.b32.xlu0 %v2623, 72
        %v3099 = vpop.permute.xlu0 %3098
        %3100 = vrot.lane.b32.xlu0 %v2625, 72
        %v3101 = vpop.permute.xlu0 %3100
        %3102 = vrot.lane.b32.xlu0 %v2627, 72
        %v3103 = vpop.permute.xlu0 %3102
        %3104 = vrot.lane.b32.xlu0 %v2629, 72
        %v3105 = vpop.permute.xlu0 %3104
        %3106 = vrot.lane.b32.xlu0 %v2598, 72
        %v3107 = vpop.permute.xlu0 %3106
        %3108 = vrot.lane.b32.xlu0 %v2663, 84
        %v3109 = vpop.permute.xlu0 %3108
        %3110 = vrot.lane.b32.xlu0 %v2675, 84
        %v3111 = vpop.permute.xlu0 %3110
        %3112 = vrot.lane.b32.xlu0 %v2687, 84
        %v3113 = vpop.permute.xlu0 %3112
        %3114 = vrot.lane.b32.xlu0 %v2699, 84
        %v3115 = vpop.permute.xlu0 %3114
        %3116 = vrot.lane.b32.xlu0 %v2711, 84
        %v3117 = vpop.permute.xlu0 %3116
        %3118 = vrot.lane.b32.xlu0 %v2723, 84
        %v3119 = vpop.permute.xlu0 %3118
        %3120 = vrot.lane.b32.xlu0 %v2735, 84
        %v3121 = vpop.permute.xlu0 %3120
        %3122 = vrot.lane.b32.xlu0 %v2747, 84
        %v3123 = vpop.permute.xlu0 %3122
        %3124 = vrot.lane.b32.xlu0 %v2759, 84
        %v3125 = vpop.permute.xlu0 %3124
        %3126 = vrot.lane.b32.xlu0 %v2771, 84
        %v3127 = vpop.permute.xlu0 %3126
        %3128 = vrot.lane.b32.xlu0 %v2783, 84
        %v3129 = vpop.permute.xlu0 %3128
        %3130 = vrot.lane.b32.xlu0 %v2795, 84
        %v3131 = vpop.permute.xlu0 %3130
        %3132 = vrot.lane.b32.xlu0 %v2807, 84
        %v3133 = vpop.permute.xlu0 %3132
        %3134 = vrot.lane.b32.xlu0 %v2819, 84
        %v3135 = vpop.permute.xlu0 %3134
        %3136 = vrot.lane.b32.xlu0 %v3007, 84
        %v3137 = vpop.permute.xlu0 %3136
        %3138 = vrot.lane.b32.xlu0 %v2639, 84
        %v3139 = vpop.permute.xlu0 %3138
        %3140 = vrot.lane.b32.xlu0 %v2891, 96
        %v3141 = vpop.permute.xlu0 %3140
        %3142 = vrot.lane.b32.xlu0 %v2894, 96
        %v3143 = vpop.permute.xlu0 %3142
        %3144 = vrot.lane.b32.xlu0 %v2897, 96
        %v3145 = vpop.permute.xlu0 %3144
        %3146 = vrot.lane.b32.xlu0 %v2900, 96
        %v3147 = vpop.permute.xlu0 %3146
        %3148 = vrot.lane.b32.xlu0 %v2903, 96
        %v3149 = vpop.permute.xlu0 %3148
        %3150 = vrot.lane.b32.xlu0 %v2906, 96
        %v3151 = vpop.permute.xlu0 %3150
        %3152 = vrot.lane.b32.xlu0 %v2909, 96
        %v3153 = vpop.permute.xlu0 %3152
        %3154 = vrot.lane.b32.xlu0 %v2912, 96
        %v3155 = vpop.permute.xlu0 %3154
        %3156 = vrot.lane.b32.xlu0 %v2915, 96
        %v3157 = vpop.permute.xlu0 %3156
        %3158 = vrot.lane.b32.xlu0 %v2918, 96
        %v3159 = vpop.permute.xlu0 %3158
        %3160 = vrot.lane.b32.xlu0 %v2921, 96
        %v3161 = vpop.permute.xlu0 %3160
        %3162 = vrot.lane.b32.xlu0 %v2924, 96
        %v3163 = vpop.permute.xlu0 %3162
        %3164 = vrot.lane.b32.xlu0 %v2927, 96
        %v3165 = vpop.permute.xlu0 %3164
        %3166 = vrot.lane.b32.xlu0 %v2930, 96
        %v3167 = vpop.permute.xlu0 %3166
        %3168 = vrot.lane.b32.xlu0 %v3043, 96
        %v3169 = vpop.permute.xlu0 %3168
        %3170 = vrot.lane.b32.xlu0 %v2885, 96
        %v3171 = vpop.permute.xlu0 %3170
        %vm3172 = vcmask 97280
        %v3174 = vsel %vm3172, %v2598, %v2821
        %v3176 = vsel %vm3172, %v2599, %v2823
        %v3178 = vsel %vm3172, %v2601, %v2825
        %v3180 = vsel %vm3172, %v2603, %v2827
        %v3182 = vsel %vm3172, %v2605, %v2829
        %v3184 = vsel %vm3172, %v2607, %v2831
        %v3186 = vsel %vm3172, %v2609, %v2833
        %v3188 = vsel %vm3172, %v2611, %v2835
        %v3190 = vsel %vm3172, %v2613, %v2837
        %v3192 = vsel %vm3172, %v2615, %v2839
        %v3194 = vsel %vm3172, %v2617, %v2841
        %v3196 = vsel %vm3172, %v2619, %v2843
        %v3198 = vsel %vm3172, %v2621, %v2845
        %v3200 = vsel %vm3172, %v2623, %v2847
        %v3202 = vsel %vm3172, %v2625, %v2849
        %v3204 = vsel %vm3172, %v2627, %v2851
        %vm3205 = vcmask 195584
        %v3207 = vsel %vm3205, %v3174, %v2932
        %v3209 = vsel %vm3205, %v3176, %v2934
        %v3211 = vsel %vm3205, %v3178, %v2936
        %v3213 = vsel %vm3205, %v3180, %v2938
        %v3215 = vsel %vm3205, %v3182, %v2940
        %v3217 = vsel %vm3205, %v3184, %v2942
        %v3219 = vsel %vm3205, %v3186, %v2944
        %v3221 = vsel %vm3205, %v3188, %v2946
        %v3223 = vsel %vm3205, %v3190, %v2948
        %v3225 = vsel %vm3205, %v3192, %v2950
        %v3227 = vsel %vm3205, %v3194, %v2952
        %v3229 = vsel %vm3205, %v3196, %v2954
        %v3231 = vsel %vm3205, %v3198, %v2956
        %v3233 = vsel %vm3205, %v3200, %v2958
        %v3235 = vsel %vm3205, %v3202, %v2960
        %v3237 = vsel %vm3205, %v3204, %v2962
        %vm3238 = vcmask 293888
        %v3240 = vsel %vm3238, %v3207, %v2965
        %v3242 = vsel %vm3238, %v3209, %v2967
        %v3244 = vsel %vm3238, %v3211, %v2969
        %v3246 = vsel %vm3238, %v3213, %v2971
        %v3248 = vsel %vm3238, %v3215, %v2973
        %v3250 = vsel %vm3238, %v3217, %v2975
        %v3252 = vsel %vm3238, %v3219, %v2977
        %v3254 = vsel %vm3238, %v3221, %v2979
        %v3256 = vsel %vm3238, %v3223, %v2981
        %v3258 = vsel %vm3238, %v3225, %v2983
        %v3260 = vsel %vm3238, %v3227, %v2985
        %v3262 = vsel %vm3238, %v3229, %v2987
        %v3264 = vsel %vm3238, %v3231, %v2989
        %v3266 = vsel %vm3238, %v3233, %v2991
        %v3268 = vsel %vm3238, %v3235, %v2993
        %v3270 = vsel %vm3238, %v3237, %v2995
        %vm3271 = vcmask 392192
        %v3273 = vsel %vm3271, %v3240, %v3009
        %v3275 = vsel %vm3271, %v3242, %v3011
        %v3277 = vsel %vm3271, %v3244, %v3013
        %v3279 = vsel %vm3271, %v3246, %v3015
        %v3281 = vsel %vm3271, %v3248, %v3017
        %v3283 = vsel %vm3271, %v3250, %v3019
        %v3285 = vsel %vm3271, %v3252, %v3021
        %v3287 = vsel %vm3271, %v3254, %v3023
        %v3289 = vsel %vm3271, %v3256, %v3025
        %v3291 = vsel %vm3271, %v3258, %v3027
        %v3293 = vsel %vm3271, %v3260, %v3029
        %v3295 = vsel %vm3271, %v3262, %v3031
        %v3297 = vsel %vm3271, %v3264, %v3033
        %v3299 = vsel %vm3271, %v3266, %v3035
        %v3301 = vsel %vm3271, %v3268, %v3037
        %v3303 = vsel %vm3271, %v3270, %v3039
        %vm3304 = vcmask 490496
        %v3306 = vsel %vm3304, %v3273, %v3045
        %v3308 = vsel %vm3304, %v3275, %v3047
        %v3310 = vsel %vm3304, %v3277, %v3049
        %v3312 = vsel %vm3304, %v3279, %v3051
        %v3314 = vsel %vm3304, %v3281, %v3053
        %v3316 = vsel %vm3304, %v3283, %v3055
        %v3318 = vsel %vm3304, %v3285, %v3057
        %v3320 = vsel %vm3304, %v3287, %v3059
        %v3322 = vsel %vm3304, %v3289, %v3061
        %v3324 = vsel %vm3304, %v3291, %v3063
        %v3326 = vsel %vm3304, %v3293, %v3065
        %v3328 = vsel %vm3304, %v3295, %v3067
        %v3330 = vsel %vm3304, %v3297, %v3069
        %v3332 = vsel %vm3304, %v3299, %v3071
        %v3334 = vsel %vm3304, %v3301, %v3073
        %v3336 = vsel %vm3304, %v3303, %v3075
        %vm3337 = vcmask 588800
        %v3339 = vsel %vm3337, %v3306, %v3077
        %v3341 = vsel %vm3337, %v3308, %v3079
        %v3343 = vsel %vm3337, %v3310, %v3081
        %v3345 = vsel %vm3337, %v3312, %v3083
        %v3347 = vsel %vm3337, %v3314, %v3085
        %v3349 = vsel %vm3337, %v3316, %v3087
        %v3351 = vsel %vm3337, %v3318, %v3089
        %v3353 = vsel %vm3337, %v3320, %v3091
        %v3355 = vsel %vm3337, %v3322, %v3093
        %v3357 = vsel %vm3337, %v3324, %v3095
        %v3359 = vsel %vm3337, %v3326, %v3097
        %v3361 = vsel %vm3337, %v3328, %v3099
        %v3363 = vsel %vm3337, %v3330, %v3101
        %v3365 = vsel %vm3337, %v3332, %v3103
        %v3367 = vsel %vm3337, %v3334, %v3105
        %v3369 = vsel %vm3337, %v3336, %v3107
        %vm3370 = vcmask 687104
        %v3372 = vsel %vm3370, %v3339, %v3109
        %v3374 = vsel %vm3370, %v3341, %v3111
        %v3376 = vsel %vm3370, %v3343, %v3113
        %v3378 = vsel %vm3370, %v3345, %v3115
        %v3380 = vsel %vm3370, %v3347, %v3117
        %v3382 = vsel %vm3370, %v3349, %v3119
        %v3384 = vsel %vm3370, %v3351, %v3121
        %v3386 = vsel %vm3370, %v3353, %v3123
        %v3388 = vsel %vm3370, %v3355, %v3125
        %v3390 = vsel %vm3370, %v3357, %v3127
        %v3392 = vsel %vm3370, %v3359, %v3129
        %v3394 = vsel %vm3370, %v3361, %v3131
        %v3396 = vsel %vm3370, %v3363, %v3133
        %v3398 = vsel %vm3370, %v3365, %v3135
        %v3400 = vsel %vm3370, %v3367, %v3137
        %v3402 = vsel %vm3370, %v3369, %v3139
        %vm3403 = vcmask 785408
        %v3405 = vsel %vm3403, %v3372, %v3141
        %v3407 = vsel %vm3403, %v3374, %v3143
        %v3409 = vsel %vm3403, %v3376, %v3145
        %v3411 = vsel %vm3403, %v3378, %v3147
        %v3413 = vsel %vm3403, %v3380, %v3149
        %v3415 = vsel %vm3403, %v3382, %v3151
        %v3417 = vsel %vm3403, %v3384, %v3153
        %v3419 = vsel %vm3403, %v3386, %v3155
        %v3421 = vsel %vm3403, %v3388, %v3157
        %v3423 = vsel %vm3403, %v3390, %v3159
        %v3425 = vsel %vm3403, %v3392, %v3161
        %v3427 = vsel %vm3403, %v3394, %v3163
        %v3429 = vsel %vm3403, %v3396, %v3165
        %v3431 = vsel %vm3403, %v3398, %v3167
        %v3433 = vsel %vm3403, %v3400, %v3169
        %v3435 = vsel %vm3403, %v3402, %v3171
        %v3436 = vld [vmem:[%s4] sm:$0xf]
        %v3437 = vld [vmem:[%s4 + $0x4] sm:$0xf]
        %v3438 = vld [vmem:[%s4 + $0x8] sm:$0xf]
        %v3439 = vld [vmem:[%s4 + $0xc] sm:$0xf]
        %v3440 = vld [vmem:[%s4 + $0x10] sm:$0xf]
        %v3441 = vld [vmem:[%s4 + $0x14] sm:$0xf]
        %v3442 = vld [vmem:[%s4 + $0x18] sm:$0xf]
        %v3443 = vld [vmem:[%s4 + $0x1c] sm:$0xf]
        %v3444 = vld [vmem:[%s4 + $0x20] sm:$0xf]
        %v3445 = vld [vmem:[%s4 + $0x24] sm:$0xf]
        %v3446 = vld [vmem:[%s4 + $0x28] sm:$0xf]
        %v3447 = vld [vmem:[%s4 + $0x2c] sm:$0xf]
        %v3448 = vld [vmem:[%s4 + $0x30] sm:$0xf]
        %v3449 = vld [vmem:[%s4 + $0x34] sm:$0x3]
        %v3450 = vld [vmem:[%s5] sm:$0x1]
        %v3452 = vlaneseq
        %v3453 = vshrl.u32 %v3452, 7
        %v3454 = vsub.s32 0, %v3453
        %v3455 = vrot.slane %v3450, %v3454
        %v3471 = vunpack.c.l.b16 %v3436
        %v3472 = vunpack.c.l.b16 %v3437
        %v3473 = vunpack.c.l.b16 %v3438
        %v3474 = vunpack.c.l.b16 %v3439
        %v3475 = vunpack.c.l.b16 %v3440
        %v3476 = vunpack.c.l.b16 %v3441
        %v3477 = vunpack.c.l.b16 %v3442
        %v3478 = vunpack.c.l.b16 %v3443
        %v3479 = vunpack.c.l.b16 %v3444
        %v3480 = vunpack.c.l.b16 %v3445
        %v3481 = vunpack.c.l.b16 %v3446
        %v3482 = vunpack.c.l.b16 %v3447
        %v3483 = vunpack.c.l.b16 %v3448
        %v3484 = vunpack.c.l.b16 %v3449
        %v3485 = vpack.c.b16 %v3472, %v3471
        %v3486 = vpack.c.b16 %v3474, %v3473
        %v3487 = vpack.c.b16 %v3476, %v3475
        %v3488 = vpack.c.b16 %v3478, %v3477
        %v3489 = vpack.c.b16 %v3480, %v3479
        %v3490 = vpack.c.b16 %v3482, %v3481
        %v3491 = vpack.c.b16 %v3484, %v3483
        %vm3498 = vcmask 883712
        %v3499 = vsel %vm3498, %v3405, 0
        %v3501 = vsel %vm3498, %v3407, 0
        %v3503 = vsel %vm3498, %v3409, 0
        %v3505 = vsel %vm3498, %v3411, 0
        %v3507 = vsel %vm3498, %v3413, 0
        %v3509 = vsel %vm3498, %v3415, 0
        %v3511 = vsel %vm3498, %v3417, 0
        %v3513 = vsel %vm3498, %v3419, 0
        %v3515 = vsel %vm3498, %v3421, 0
        %v3517 = vsel %vm3498, %v3423, 0
        %v3519 = vsel %vm3498, %v3425, 0
        %v3521 = vsel %vm3498, %v3427, 0
        %v3523 = vsel %vm3498, %v3429, 0
        %v3525 = vsel %vm3498, %v3431, 0
        %v3527 = vsel %vm3498, %v3433, 0
        %v3529 = vsel %vm3498, %v3435, 0
        %vm3531 = vcmask 1045504
        %v3533 = vsel %vm3531, %v3491, 0
        %3535 = vmatprep.subr.bf16.mxu0 0
        %3536 = vmatpush1.bf16.msra.mxu0 0
        %3537 = vmatprep.subr.bf16.mxu0 0
        %3538 = vmatpush1.bf16.msra.mxu0 %v3533
        %3539 = vmatprep.subr.bf16.mxu0 0
        %3540 = vmatpush1.bf16.msra.mxu0 %v3490
        %3541 = vmatprep.subr.bf16.mxu0 0
        %3542 = vmatpush1.bf16.msra.mxu0 %v3489
        %3543 = vmatprep.subr.bf16.mxu0 0
        %3544 = vmatpush1.bf16.msra.mxu0 %v3488
        %3545 = vmatprep.subr.bf16.mxu0 0
        %3546 = vmatpush1.bf16.msra.mxu0 %v3487
        %3547 = vmatprep.subr.bf16.mxu0 0
        %3548 = vmatpush1.bf16.msra.mxu0 %v3486
        %3549 = vmatprep.subr.bf16.mxu0 0
        %3550 = vmatpush1.bf16.msra.mxu0 %v3485
        %3551 = vmatprep.subr.bf16.mxu0 0
        %3552 = vmatpush2.bf16.msra.mxu0 0
        %3553 = vmatprep.subr.bf16.mxu0 0
        %3554 = vmatpush2.bf16.msra.mxu0 0
        %3555 = vmatprep.subr.bf16.mxu0 0
        %3556 = vmatpush2.bf16.msra.mxu0 0
        %3557 = vmatprep.subr.bf16.mxu0 0
        %3558 = vmatpush2.bf16.msra.mxu0 0
        %3559 = vmatprep.subr.bf16.mxu0 0
        %3560 = vmatpush2.bf16.msra.mxu0 0
        %3561 = vmatprep.subr.bf16.mxu0 0
        %3562 = vmatpush2.bf16.msra.mxu0 0
        %3563 = vmatprep.subr.bf16.mxu0 0
        %3564 = vmatpush2.bf16.msra.mxu0 0
        %3565 = vmatprep.subr.bf16.mxu0 0
        %3566 = vmatpush2.bf16.msra.mxu0 0
        %3567 = vmatprep.mubr.bf16.mxu0 0
        %3568 = vmatmul.mubr.bf16.gmra.mxu0 %v3499
        %v3569 = vpop.f32.mrf.mxu0
        %v3570 = vadd.f32 %v3455, %v3569
        %v3571 = vpop.f32.mrf.mxu0
        %v3572 = vpop.f32.mrf.mxu0
        %v3573 = vadd.f32 %v3455, %v3572
        %v3574 = vpop.f32.mrf.mxu0
        %3575 = vmatprep.mubr.bf16.mxu0 0
        %3576 = vmatmul.mubr.bf16.gmra.mxu0 %v3501
        %v3577 = vpop.f32.mrf.mxu0
        %v3578 = vadd.f32 %v3455, %v3577
        %v3579 = vpop.f32.mrf.mxu0
        %v3580 = vpop.f32.mrf.mxu0
        %v3581 = vadd.f32 %v3455, %v3580
        %v3582 = vpop.f32.mrf.mxu0
        %3583 = vmatprep.mubr.bf16.mxu0 0
        %3584 = vmatmul.mubr.bf16.gmra.mxu0 %v3503
        %v3585 = vpop.f32.mrf.mxu0
        %v3586 = vadd.f32 %v3455, %v3585
        %v3587 = vpop.f32.mrf.mxu0
        %v3588 = vpop.f32.mrf.mxu0
        %v3589 = vadd.f32 %v3455, %v3588
        %v3590 = vpop.f32.mrf.mxu0
        %3591 = vmatprep.mubr.bf16.mxu0 0
        %3592 = vmatmul.mubr.bf16.gmra.mxu0 %v3505
        %v3593 = vpop.f32.mrf.mxu0
        %v3594 = vadd.f32 %v3455, %v3593
        %v3595 = vpop.f32.mrf.mxu0
        %v3596 = vpop.f32.mrf.mxu0
        %v3597 = vadd.f32 %v3455, %v3596
        %v3598 = vpop.f32.mrf.mxu0
        %3599 = vmatprep.mubr.bf16.mxu0 0
        %3600 = vmatmul.mubr.bf16.gmra.mxu0 %v3507
        %v3601 = vpop.f32.mrf.mxu0
        %v3602 = vadd.f32 %v3455, %v3601
        %v3603 = vpop.f32.mrf.mxu0
        %v3604 = vpop.f32.mrf.mxu0
        %v3605 = vadd.f32 %v3455, %v3604
        %v3606 = vpop.f32.mrf.mxu0
        %3607 = vmatprep.mubr.bf16.mxu0 0
        %3608 = vmatmul.mubr.bf16.gmra.mxu0 %v3509
        %v3609 = vpop.f32.mrf.mxu0
        %v3610 = vadd.f32 %v3455, %v3609
        %v3611 = vpop.f32.mrf.mxu0
        %v3612 = vpop.f32.mrf.mxu0
        %v3613 = vadd.f32 %v3455, %v3612
        %v3614 = vpop.f32.mrf.mxu0
        %3615 = vmatprep.mubr.bf16.mxu0 0
        %3616 = vmatmul.mubr.bf16.gmra.mxu0 %v3511
        %v3617 = vpop.f32.mrf.mxu0
        %v3618 = vadd.f32 %v3455, %v3617
        %v3619 = vpop.f32.mrf.mxu0
        %v3620 = vpop.f32.mrf.mxu0
        %v3621 = vadd.f32 %v3455, %v3620
        %v3622 = vpop.f32.mrf.mxu0
        %3623 = vmatprep.mubr.bf16.mxu0 0
        %3624 = vmatmul.mubr.bf16.gmra.mxu0 %v3513
        %v3625 = vpop.f32.mrf.mxu0
        %v3626 = vadd.f32 %v3455, %v3625
        %v3627 = vpop.f32.mrf.mxu0
        %v3628 = vpop.f32.mrf.mxu0
        %v3629 = vadd.f32 %v3455, %v3628
        %v3630 = vpop.f32.mrf.mxu0
        %3631 = vmatprep.mubr.bf16.mxu0 0
        %3632 = vmatmul.mubr.bf16.gmra.mxu0 %v3515
        %v3633 = vpop.f32.mrf.mxu0
        %v3634 = vadd.f32 %v3455, %v3633
        %v3635 = vpop.f32.mrf.mxu0
        %v3636 = vpop.f32.mrf.mxu0
        %v3637 = vadd.f32 %v3455, %v3636
        %v3638 = vpop.f32.mrf.mxu0
        %3639 = vmatprep.mubr.bf16.mxu0 0
        %3640 = vmatmul.mubr.bf16.gmra.mxu0 %v3517
        %v3641 = vpop.f32.mrf.mxu0
        %v3642 = vadd.f32 %v3455, %v3641
        %v3643 = vpop.f32.mrf.mxu0
        %v3644 = vpop.f32.mrf.mxu0
        %v3645 = vadd.f32 %v3455, %v3644
        %v3646 = vpop.f32.mrf.mxu0
        %3647 = vmatprep.mubr.bf16.mxu0 0
        %3648 = vmatmul.mubr.bf16.gmra.mxu0 %v3519
        %v3649 = vpop.f32.mrf.mxu0
        %v3650 = vadd.f32 %v3455, %v3649
        %v3651 = vpop.f32.mrf.mxu0
        %v3652 = vpop.f32.mrf.mxu0
        %v3653 = vadd.f32 %v3455, %v3652
        %v3654 = vpop.f32.mrf.mxu0
        %3655 = vmatprep.mubr.bf16.mxu0 0
        %3656 = vmatmul.mubr.bf16.gmra.mxu0 %v3521
        %v3657 = vpop.f32.mrf.mxu0
        %v3658 = vadd.f32 %v3455, %v3657
        %v3659 = vpop.f32.mrf.mxu0
        %v3660 = vpop.f32.mrf.mxu0
        %v3661 = vadd.f32 %v3455, %v3660
        %v3662 = vpop.f32.mrf.mxu0
        %3663 = vmatprep.mubr.bf16.mxu0 0
        %3664 = vmatmul.mubr.bf16.gmra.mxu0 %v3523
        %v3665 = vpop.f32.mrf.mxu0
        %v3666 = vadd.f32 %v3455, %v3665
        %v3667 = vpop.f32.mrf.mxu0
        %v3668 = vpop.f32.mrf.mxu0
        %v3669 = vadd.f32 %v3455, %v3668
        %v3670 = vpop.f32.mrf.mxu0
        %3671 = vmatprep.mubr.bf16.mxu0 0
        %3672 = vmatmul.mubr.bf16.gmra.mxu0 %v3525
        %v3673 = vpop.f32.mrf.mxu0
        %v3674 = vadd.f32 %v3455, %v3673
        %v3675 = vpop.f32.mrf.mxu0
        %v3676 = vpop.f32.mrf.mxu0
        %v3677 = vadd.f32 %v3455, %v3676
        %v3678 = vpop.f32.mrf.mxu0
        %3679 = vmatprep.mubr.bf16.mxu0 0
        %3680 = vmatmul.mubr.bf16.gmra.mxu0 %v3527
        %v3681 = vpop.f32.mrf.mxu0
        %v3682 = vadd.f32 %v3455, %v3681
        %v3683 = vpop.f32.mrf.mxu0
        %v3684 = vpop.f32.mrf.mxu0
        %v3685 = vadd.f32 %v3455, %v3684
        %v3686 = vpop.f32.mrf.mxu0
        %3687 = vmatprep.mubr.bf16.mxu0 0
        %3688 = vmatmul.mubr.bf16.gmra.mxu0 %v3529
        %v3689 = vpop.f32.mrf.mxu0
        %v3690 = vadd.f32 %v3455, %v3689
        %v3691 = vpop.f32.mrf.mxu0
        %v3692 = vpop.f32.mrf.mxu0
        %v3693 = vadd.f32 %v3455, %v3692
        %v3694 = vpop.f32.mrf.mxu0
        %3695 = vdwg.mxu0
        %3696 = vxpose.xlu0.b32.start [1/16] %v3570, 128
        %3697 = vxpose.xlu0.b32.cont [2/16] %v3573, 128
        %3698 = vxpose.xlu0.b32.cont [3/16] %v3578, 128
        %3699 = vxpose.xlu0.b32.cont [4/16] %v3581, 128
        %3700 = vxpose.xlu0.b32.cont [5/16] %v3586, 128
        %3701 = vxpose.xlu0.b32.cont [6/16] %v3589, 128
        %3702 = vxpose.xlu0.b32.cont [7/16] %v3594, 128
        %3703 = vxpose.xlu0.b32.cont [8/16] %v3597, 128
        %3704 = vxpose.xlu0.b32.cont [9/16] %v3602, 128
        %3705 = vxpose.xlu0.b32.cont [10/16] %v3605, 128
        %3706 = vxpose.xlu0.b32.cont [11/16] %v3610, 128
        %3707 = vxpose.xlu0.b32.cont [12/16] %v3613, 128
        %3708 = vxpose.xlu0.b32.cont [13/16] %v3618, 128
        %3709 = vxpose.xlu0.b32.cont [14/16] %v3621, 128
        %3710 = vxpose.xlu0.b32.cont [15/16] %v3626, 128
        %3711 = vxpose.xlu0.b32.end [16/16] %v3629, 128
        %v3712 = vpop.trf.xlu0
        %v3713 = vpop.trf.xlu0
        %v3714 = vpop.trf.xlu0
        %v3715 = vpop.trf.xlu0
        %v3716 = vpop.trf.xlu0
        %v3717 = vpop.trf.xlu0
        %v3718 = vpop.trf.xlu0
        %v3719 = vpop.trf.xlu0
        %v3720 = vpop.trf.xlu0
        %v3721 = vpop.trf.xlu0
        %v3722 = vpop.trf.xlu0
        %v3723 = vpop.trf.xlu0
        %v3724 = vpop.trf.xlu0
        %v3725 = vpop.trf.xlu0
        %v3726 = vpop.trf.xlu0
        %v3727 = vpop.trf.xlu0
        %3728 = vxpose.xlu0.b32.start [1/16] %v3634, 128
        %3729 = vxpose.xlu0.b32.cont [2/16] %v3637, 128
        %3730 = vxpose.xlu0.b32.cont [3/16] %v3642, 128
        %3731 = vxpose.xlu0.b32.cont [4/16] %v3645, 128
        %3732 = vxpose.xlu0.b32.cont [5/16] %v3650, 128
        %3733 = vxpose.xlu0.b32.cont [6/16] %v3653, 128
        %3734 = vxpose.xlu0.b32.cont [7/16] %v3658, 128
        %3735 = vxpose.xlu0.b32.cont [8/16] %v3661, 128
        %3736 = vxpose.xlu0.b32.cont [9/16] %v3666, 128
        %3737 = vxpose.xlu0.b32.cont [10/16] %v3669, 128
        %3738 = vxpose.xlu0.b32.cont [11/16] %v3674, 128
        %3739 = vxpose.xlu0.b32.cont [12/16] %v3677, 128
        %3740 = vxpose.xlu0.b32.cont [13/16] %v3682, 128
        %3741 = vxpose.xlu0.b32.cont [14/16] %v3685, 128
        %3742 = vxpose.xlu0.b32.cont [15/16] %v3690, 128
        %3743 = vxpose.xlu0.b32.end [16/16] %v3693, 128
        %v3744 = vpop.trf.xlu0
        %v3745 = vpop.trf.xlu0
        %v3746 = vpop.trf.xlu0
        %v3747 = vpop.trf.xlu0
        %v3748 = vpop.trf.xlu0
        %v3749 = vpop.trf.xlu0
        %v3750 = vpop.trf.xlu0
        %v3751 = vpop.trf.xlu0
        %v3752 = vpop.trf.xlu0
        %v3753 = vpop.trf.xlu0
        %v3754 = vpop.trf.xlu0
        %v3755 = vpop.trf.xlu0
        %v3756 = vpop.trf.xlu0
        %v3757 = vpop.trf.xlu0
        %v3758 = vpop.trf.xlu0
        %v3759 = vpop.trf.xlu0
        %v3760 = vpack.c.bf16 %v3712, %v3712
        %v3761 = vpack.c.bf16 %v3744, %v3744
        %v3764 = vunpack.c.l.b16 %v3760
        %v3765 = vunpack.c.l.b16 %v3761
        %v3766 = vpack.c.b16 %v3765, %v3764
        %3768 = vst [vmem:[%s315] sm:$0xff] %v3766
        %v3769 = vsel %vm383, %v3570, 0.0
        %v3770 = vsel %vm383, %v3573, 0.0
        %v3771 = vadd.f32 %v3769, %v3770
        %v3772 = vsel %vm383, %v3578, 0.0
        %v3773 = vadd.f32 %v3771, %v3772
        %v3774 = vsel %vm383, %v3581, 0.0
        %v3775 = vadd.f32 %v3773, %v3774
        %v3776 = vsel %vm383, %v3586, 0.0
        %v3777 = vadd.f32 %v3775, %v3776
        %v3778 = vsel %vm383, %v3589, 0.0
        %v3779 = vadd.f32 %v3777, %v3778
        %v3780 = vsel %vm383, %v3594, 0.0
        %v3781 = vadd.f32 %v3779, %v3780
        %v3782 = vsel %vm383, %v3597, 0.0
        %v3783 = vadd.f32 %v3781, %v3782
        %v3784 = vsel %vm383, %v3602, 0.0
        %v3785 = vadd.f32 %v3783, %v3784
        %v3786 = vsel %vm383, %v3605, 0.0
        %v3787 = vadd.f32 %v3785, %v3786
        %v3788 = vsel %vm383, %v3610, 0.0
        %v3789 = vadd.f32 %v3787, %v3788
        %v3790 = vsel %vm383, %v3613, 0.0
        %v3791 = vadd.f32 %v3789, %v3790
        %v3792 = vsel %vm383, %v3618, 0.0
        %v3793 = vadd.f32 %v3791, %v3792
        %v3794 = vsel %vm383, %v3621, 0.0
        %v3795 = vadd.f32 %v3793, %v3794
        %v3796 = vsel %vm383, %v3626, 0.0
        %v3797 = vadd.f32 %v3795, %v3796
        %v3798 = vsel %vm383, %v3629, 0.0
        %v3799 = vadd.f32 %v3797, %v3798
        %v3800 = vsel %vm383, %v3634, 0.0
        %v3801 = vadd.f32 %v3799, %v3800
        %v3802 = vsel %vm383, %v3637, 0.0
        %v3803 = vadd.f32 %v3801, %v3802
        %v3804 = vsel %vm383, %v3642, 0.0
        %v3805 = vadd.f32 %v3803, %v3804
        %v3806 = vsel %vm383, %v3645, 0.0
        %v3807 = vadd.f32 %v3805, %v3806
        %v3808 = vsel %vm383, %v3650, 0.0
        %v3809 = vadd.f32 %v3807, %v3808
        %v3810 = vsel %vm383, %v3653, 0.0
        %v3811 = vadd.f32 %v3809, %v3810
        %v3812 = vsel %vm383, %v3658, 0.0
        %v3813 = vadd.f32 %v3811, %v3812
        %v3814 = vsel %vm383, %v3661, 0.0
        %v3815 = vadd.f32 %v3813, %v3814
        %v3816 = vsel %vm383, %v3666, 0.0
        %v3817 = vadd.f32 %v3815, %v3816
        %v3818 = vsel %vm383, %v3669, 0.0
        %v3819 = vadd.f32 %v3817, %v3818
        %v3820 = vsel %vm383, %v3674, 0.0
        %v3821 = vadd.f32 %v3819, %v3820
        %v3822 = vsel %vm383, %v3677, 0.0
        %v3823 = vadd.f32 %v3821, %v3822
        %v3824 = vsel %vm383, %v3682, 0.0
        %v3825 = vadd.f32 %v3823, %v3824
        %v3826 = vsel %vm383, %v3685, 0.0
        %v3827 = vadd.f32 %v3825, %v3826
        %v3828 = vsel %vm383, %v3690, 0.0
        %v3829 = vadd.f32 %v3827, %v3828
        %v3830 = vsel %vm383, %v3693, 0.0
        %v3831 = vadd.f32 %v3829, %v3830
        %v3832 = vrot.slane %v3831, 4
        %v3833 = vadd.f32 %v3831, %v3832
        %v3834 = vrot.slane %v3833, 2
        %v3835 = vadd.f32 %v3833, %v3834
        %v3836 = vrot.slane %v3835, 1
        %v3837 = vadd.f32 %v3835, %v3836
        %vm3838 = vcmask 57344
        %3839 = vst.msk [vmem:[%s321] sm:$0x1] %vm3838, %v3837
        %v3840 = vmul.f32 %v3570, %v3570
        %v3841 = vmul.f32 %v3573, %v3573
        %v3842 = vmul.f32 %v3578, %v3578
        %v3843 = vmul.f32 %v3581, %v3581
        %v3844 = vmul.f32 %v3586, %v3586
        %v3845 = vmul.f32 %v3589, %v3589
        %v3846 = vmul.f32 %v3594, %v3594
        %v3847 = vmul.f32 %v3597, %v3597
        %v3848 = vmul.f32 %v3602, %v3602
        %v3849 = vmul.f32 %v3605, %v3605
        %v3850 = vmul.f32 %v3610, %v3610
        %v3851 = vmul.f32 %v3613, %v3613
        %v3852 = vmul.f32 %v3618, %v3618
        %v3853 = vmul.f32 %v3621, %v3621
        %v3854 = vmul.f32 %v3626, %v3626
        %v3855 = vmul.f32 %v3629, %v3629
        %v3856 = vmul.f32 %v3634, %v3634
        %v3857 = vmul.f32 %v3637, %v3637
        %v3858 = vmul.f32 %v3642, %v3642
        %v3859 = vmul.f32 %v3645, %v3645
        %v3860 = vmul.f32 %v3650, %v3650
        %v3861 = vmul.f32 %v3653, %v3653
        %v3862 = vmul.f32 %v3658, %v3658
        %v3863 = vmul.f32 %v3661, %v3661
        %v3864 = vmul.f32 %v3666, %v3666
        %v3865 = vmul.f32 %v3669, %v3669
        %v3866 = vmul.f32 %v3674, %v3674
        %v3867 = vmul.f32 %v3677, %v3677
        %v3868 = vmul.f32 %v3682, %v3682
        %v3869 = vmul.f32 %v3685, %v3685
        %v3870 = vmul.f32 %v3690, %v3690
        %v3871 = vmul.f32 %v3693, %v3693
        %v3872 = vsel %vm383, %v3840, 0.0
        %v3873 = vsel %vm383, %v3841, 0.0
        %v3874 = vadd.f32 %v3872, %v3873
        %v3875 = vsel %vm383, %v3842, 0.0
        %v3876 = vadd.f32 %v3874, %v3875
        %v3877 = vsel %vm383, %v3843, 0.0
        %v3878 = vadd.f32 %v3876, %v3877
        %v3879 = vsel %vm383, %v3844, 0.0
        %v3880 = vadd.f32 %v3878, %v3879
        %v3881 = vsel %vm383, %v3845, 0.0
        %v3882 = vadd.f32 %v3880, %v3881
        %v3883 = vsel %vm383, %v3846, 0.0
        %v3884 = vadd.f32 %v3882, %v3883
        %v3885 = vsel %vm383, %v3847, 0.0
        %v3886 = vadd.f32 %v3884, %v3885
        %v3887 = vsel %vm383, %v3848, 0.0
        %v3888 = vadd.f32 %v3886, %v3887
        %v3889 = vsel %vm383, %v3849, 0.0
        %v3890 = vadd.f32 %v3888, %v3889
        %v3891 = vsel %vm383, %v3850, 0.0
        %v3892 = vadd.f32 %v3890, %v3891
        %v3893 = vsel %vm383, %v3851, 0.0
        %v3894 = vadd.f32 %v3892, %v3893
        %v3895 = vsel %vm383, %v3852, 0.0
        %v3896 = vadd.f32 %v3894, %v3895
        %v3897 = vsel %vm383, %v3853, 0.0
        %v3898 = vadd.f32 %v3896, %v3897
        %v3899 = vsel %vm383, %v3854, 0.0
        %v3900 = vadd.f32 %v3898, %v3899
        %v3901 = vsel %vm383, %v3855, 0.0
        %v3902 = vadd.f32 %v3900, %v3901
        %v3903 = vsel %vm383, %v3856, 0.0
        %v3904 = vadd.f32 %v3902, %v3903
        %v3905 = vsel %vm383, %v3857, 0.0
        %v3906 = vadd.f32 %v3904, %v3905
        %v3907 = vsel %vm383, %v3858, 0.0
        %v3908 = vadd.f32 %v3906, %v3907
        %v3909 = vsel %vm383, %v3859, 0.0
        %v3910 = vadd.f32 %v3908, %v3909
        %v3911 = vsel %vm383, %v3860, 0.0
        %v3912 = vadd.f32 %v3910, %v3911
        %v3913 = vsel %vm383, %v3861, 0.0
        %v3914 = vadd.f32 %v3912, %v3913
        %v3915 = vsel %vm383, %v3862, 0.0
        %v3916 = vadd.f32 %v3914, %v3915
        %v3917 = vsel %vm383, %v3863, 0.0
        %v3918 = vadd.f32 %v3916, %v3917
        %v3919 = vsel %vm383, %v3864, 0.0
        %v3920 = vadd.f32 %v3918, %v3919
        %v3921 = vsel %vm383, %v3865, 0.0
        %v3922 = vadd.f32 %v3920, %v3921
        %v3923 = vsel %vm383, %v3866, 0.0
        %v3924 = vadd.f32 %v3922, %v3923
        %v3925 = vsel %vm383, %v3867, 0.0
        %v3926 = vadd.f32 %v3924, %v3925
        %v3927 = vsel %vm383, %v3868, 0.0
        %v3928 = vadd.f32 %v3926, %v3927
        %v3929 = vsel %vm383, %v3869, 0.0
        %v3930 = vadd.f32 %v3928, %v3929
        %v3931 = vsel %vm383, %v3870, 0.0
        %v3932 = vadd.f32 %v3930, %v3931
        %v3933 = vsel %vm383, %v3871, 0.0
        %v3934 = vadd.f32 %v3932, %v3933
        %v3935 = vrot.slane %v3934, 4
        %v3936 = vadd.f32 %v3934, %v3935
        %v3937 = vrot.slane %v3936, 2
        %v3938 = vadd.f32 %v3936, %v3937
        %v3939 = vrot.slane %v3938, 1
        %v3940 = vadd.f32 %v3938, %v3939
        %3941 = vst.msk [vmem:[%s327] sm:$0x1] %vm3838, %v3940
        %s3942 = sand.u32 %s170, 1
        %s3943 = scalar_lea.sflag [#allocation3], %s3942
        %s3944 = sand.u32 %s170, 1
        %s3945 = smul.addr %s3944, 8
        %s3946 = scalar_lea.vmem [#allocation2], %s3945
        %s3947 = sand.u32 %s26, 1
        %s3948 = scalar_lea.sflag [#allocation5], %s3947
        %s3949 = sand.u32 %s196, 1
        %s3950 = scalar_lea.vmem [#allocation4], %s3949
        %s3951 = sand.u32 %s26, 1
        %s3952 = scalar_lea.sflag [#allocation5], %s3951
        %s3953 = sand.u32 %s222, 1
        %s3954 = scalar_lea.vmem [#allocation6], %s3953
        // Predicated region
        $region45: #{tpu_custom_call.1} parent=43 // pred_check
          %p3955 = pneg %p180
        $region46: #{tpu_custom_call.1} parent=43 // pred_check_branch
          %3957 = sbr.rel (%p3955) target = $region48
        $region47: #{tpu_custom_call.1} parent=43 // pred_region
          %s3959 = ssub.s32 128, 128
          %3960 = vsyncadd %s3943, %s3959
          %s3961 = smul.addr %s26, 2
          %s3962 = smul.addr %s3961, 64
          %s3963 = scalar_lea.hbm %s6, %s3962
          %s3965 = sshll.u32 %s3946, 4
          %s3966 = int_to_ptr.vmem [resolvable:$true] %s3965
          %3968 = dma.vmem_to_hbm [thread:$0]  %s3966, 128, %s3963, %s3943
        $region48: #{tpu_custom_call.1} parent=43 // pred_fallthru
          _
        // Predicated region
        $region49: #{tpu_custom_call.1} parent=43 // pred_check
          %p3969 = pneg %p206
        $region50: #{tpu_custom_call.1} parent=43 // pred_check_branch
          %3971 = sbr.rel (%p3969) target = $region52
        $region51: #{tpu_custom_call.1} parent=43 // pred_region
          %s3973 = ssub.s32 16, 16
          %3974 = vsyncadd %s3948, %s3973
          %s3975 = smul.addr %s26, 16
          %s3976 = scalar_lea.hbm %s7, %s3975
          %s3978 = sshll.u32 %s3950, 4
          %s3979 = int_to_ptr.vmem [resolvable:$true] %s3978
          %3981 = dma.vmem_to_hbm [thread:$0]  %s3979, 16, %s3976, %s3948
        $region52: #{tpu_custom_call.1} parent=43 // pred_fallthru
          _
        // Predicated region
        $region53: #{tpu_custom_call.1} parent=43 // pred_check
          %p3982 = pneg %p232
        $region54: #{tpu_custom_call.1} parent=43 // pred_check_branch
          %3984 = sbr.rel (%p3982) target = $region56
        $region55: #{tpu_custom_call.1} parent=43 // pred_region
          %s3986 = ssub.s32 16, 16
          %3987 = vsyncadd %s3952, %s3986
          %s3988 = smul.addr %s26, 16
          %s3989 = scalar_lea.hbm %s8, %s3988
          %s3991 = sshll.u32 %s3954, 4
          %s3992 = int_to_ptr.vmem [resolvable:$true] %s3991
          %3994 = dma.vmem_to_hbm [thread:$0]  %s3992, 16, %s3989, %s3952
        $region56: #{tpu_custom_call.1} parent=43 // pred_fallthru
          _
      $region44: #{tpu_custom_call.1} parent=5 // pred_fallthru
        _
      %p3995 = scmp.le.s32.totalorder 2, %s21
      // Predicated region
      $region57: #{tpu_custom_call.1} parent=5 // pred_check
        %p3996 = pneg %p3995
      $region58: #{tpu_custom_call.1} parent=5 // pred_check_branch
        %3998 = sbr.rel (%p3996) target = $region60
      $region59: #{tpu_custom_call.1} parent=5 // pred_region
        %s3999 = ssub.s32 %s21, 2
        // Predicated region
        $region61: #{tpu_custom_call.1} parent=59 // pred_check
          %p4000 = pneg %p186
        $region62: #{tpu_custom_call.1} parent=59 // pred_check_branch
          %4002 = sbr.rel (%p4000) target = $region64
        $region63: #{tpu_custom_call.1} parent=59 // pred_region
          %s4003 = sand.u32 %s171, 1
          %s4004 = scalar_lea.sflag [#allocation3], %s4003
          %s4005 = sand.u32 %s171, 1
          %s4006 = smul.addr %s4005, 8
          %s4007 = scalar_lea.vmem [#allocation2], %s4006
          %4008 = dma.done %s4004, 128
        $region64: #{tpu_custom_call.1} parent=59 // pred_fallthru
          _
        // Predicated region
        $region65: #{tpu_custom_call.1} parent=59 // pred_check
          %p4009 = pneg %p212
        $region66: #{tpu_custom_call.1} parent=59 // pred_check_branch
          %4011 = sbr.rel (%p4009) target = $region68
        $region67: #{tpu_custom_call.1} parent=59 // pred_region
          %s4012 = sand.u32 %s27, 1
          %s4013 = scalar_lea.sflag [#allocation5], %s4012
          %s4014 = sand.u32 %s197, 1
          %s4015 = scalar_lea.vmem [#allocation4], %s4014
          %4016 = dma.done %s4013, 16
        $region68: #{tpu_custom_call.1} parent=59 // pred_fallthru
          _
        // Predicated region
        $region69: #{tpu_custom_call.1} parent=59 // pred_check
          %p4017 = pneg %p238
        $region70: #{tpu_custom_call.1} parent=59 // pred_check_branch
          %4019 = sbr.rel (%p4017) target = $region72
        $region71: #{tpu_custom_call.1} parent=59 // pred_region
          %s4020 = sand.u32 %s27, 1
          %s4021 = scalar_lea.sflag [#allocation5], %s4020
          %s4022 = sand.u32 %s223, 1
          %s4023 = scalar_lea.vmem [#allocation6], %s4022
          %4024 = dma.done %s4021, 16
        $region72: #{tpu_custom_call.1} parent=59 // pred_fallthru
          _
      $region60: #{tpu_custom_call.1} parent=5 // pred_fallthru
        _
    $region6: #{tpu_custom_call.1} parent=1 // loop_footer
      %s25 = sadd.s32 1, %s21
    $region7: #{tpu_custom_call.1} parent=1 // loop_footer_branch
      %20 = sbr.rel target = $region3
    $region8: #{tpu_custom_call.1} parent=1 // loop_exit
      _
    %4025 = vsyncpa [#allocation3], 1
    %s4026 = scalar_lea.sflag [#allocation3], 1
    %4027 = vsyncpa %s4026, 1
    %4028 = vsyncpa [#allocation5], 1
    %s4029 = scalar_lea.sflag [#allocation5], 1
    %4030 = vsyncpa %s4029, 1

</llo_original>
